<compile_context>
chip_gen: v6e
topology: v6e:2x2x1
jax: 0.10.0
libtpu: 0.0.40
codegen_flags: <defaults>
</compile_context>

<pallas_src>
import jax
import jax.numpy as jnp
from jax.experimental import pallas as pl
from jax.experimental.pallas import tpu as pltpu

D_IN = 784
H1, H2, D_OUT = 500, 250, 10
# Lane-dense (multiple-of-128) padded feature dims.
H1_P, H2_P, D_OUT_P = 512, 256, 128


def mlp_kernel(x_ref, w1_ref, b1_ref, w2_ref, b2_ref, w3_ref, b3_ref, o_ref):
    # Layer 1: (TB, 784) @ (784, 512) + (1, 512), ReLU   (f32 accumulation on MXU)
    h = jnp.dot(x_ref[...], w1_ref[...], preferred_element_type=jnp.float32)
    h = jnp.maximum(h + b1_ref[...], 0.0)
    # Layer 2: (TB, 512) @ (512, 256) + (1, 256), ReLU
    h = jnp.dot(h.astype(w2_ref.dtype), w2_ref[...],
                preferred_element_type=jnp.float32)
    h = jnp.maximum(h + b2_ref[...], 0.0)
    # Output: (TB, 256) @ (256, 128) + (1, 128)   (cols 10..127 are exactly zero)
    o = jnp.dot(h.astype(w3_ref.dtype), w3_ref[...],
                preferred_element_type=jnp.float32)
    o_ref[...] = (o + b3_ref[...]).astype(o_ref.dtype)


# ----------------------------------------------------------------------------- helpers
def _round_up(n, m):
    return -(-n // m) * m


def _pad2(a, rows, cols):
    r, c = a.shape
    return jnp.pad(a, ((0, rows - r), (0, cols - c)))


def _num_tensorcores_per_chip():
    """2 for v7x and megacore chips (v4/v5p), 1 for v5e/v6e; best-effort."""
    try:
        kind = jax.devices()[0].device_kind.lower()
    except Exception:
        return 1
    if "v7" in kind or "v4" in kind:
        return 2
    if "v5" in kind and "lite" not in kind and "5e" not in kind:   # v5p megacore
        return 2
    return 1


def _pick_batch_tile(batch, align, n_cores, max_tile):
    b_al = _round_up(batch, align)
    if n_cores >= 2 and b_al >= 2 * align:
        # Keep >= 2 grid steps so both TensorCores get work (dimension_semantics
        # marks the batch axis "parallel").
        tile = min(max_tile, _round_up(b_al // 2, align))
    else:
        # Single-TC chip: one grid step when the batch fits (no artificial split).
        tile = min(max_tile, b_al)
    return max(align, tile)


def _resident_spec(shape, buffered):
    """Whole-array, VMEM-resident BlockSpec (constant index_map)."""
    if buffered:
        # Single-buffer the never-changing weights/biases (saves VMEM).
        return pl.BlockSpec(shape, lambda i: (0, 0), pipeline_mode=pl.Buffered(1))
    return pl.BlockSpec(shape, lambda i: (0, 0))


# ----------------------------------------------------------------------------- params
def prepare_params(params, compute_dtype=jnp.bfloat16):
    """Pad feature dims to lane multiples and cast ONCE (hoisted out of the
    per-call path). Weights in compute_dtype, biases kept f32."""
    return {
        "w1": _pad2(params["w1"], D_IN, H1_P).astype(compute_dtype),
        "b1": _pad2(params["b1"], 1, H1_P).astype(jnp.float32),
        "w2": _pad2(params["w2"], H1_P, H2_P).astype(compute_dtype),
        "b2": _pad2(params["b2"], 1, H2_P).astype(jnp.float32),
        "w3": _pad2(params["w3"], H2_P, D_OUT_P).astype(compute_dtype),
        "b3": _pad2(params["b3"], 1, D_OUT_P).astype(jnp.float32),
    }


# ----------------------------------------------------------------------------- forward
def mnist_mlp_forward(x, prepped, *, batch_tile=None):
    """x: (B, 784). prepped: output of prepare_params(). Returns (B, 10) f32."""
    B = x.shape[0]
    cdt = prepped["w1"].dtype                       # compute dtype (bf16 default)
    align = 16 if cdt.itemsize < 4 else 8           # sublane packing (bf16: 16)
    n_cores = _num_tensorcores_per_chip()

    if batch_tile is None:
        max_tile = 512 if (n_cores >= 2 and cdt.itemsize < 4) else 256
        batch_tile = _pick_batch_tile(B, align, n_cores, max_tile)
    else:
        batch_tile = max(align, _round_up(batch_tile, align))
    assert batch_tile % align == 0

    B_pad = _round_up(B, batch_tile)
    x_p = x.astype(cdt)
    if B_pad != B:
        x_p = jnp.pad(x_p, ((0, B_pad - B), (0, 0)))

    out_dtype = cdt  # bf16 out when computing in bf16 (halved writeback), f32 otherwise

    w_bytes = sum(int(prepped[k].size) * prepped[k].dtype.itemsize
                  for k in ("w1", "b1", "w2", "b2", "w3", "b3"))
    cost = pl.CostEstimate(
        flops=2 * B_pad * (D_IN * H1_P + H1_P * H2_P + H2_P * D_OUT_P),
        transcendentals=0,
        bytes_accessed=(B_pad * D_IN * cdt.itemsize + w_bytes
                        + B_pad * D_OUT_P * out_dtype.itemsize),
    )

    def run(buffered_weights):
        return pl.pallas_call(
            mlp_kernel,
            out_shape=jax.ShapeDtypeStruct((B_pad, D_OUT_P), out_dtype),
            grid_spec=pltpu.PrefetchScalarGridSpec(
                num_scalar_prefetch=0,
                grid=(B_pad // batch_tile,),
                in_specs=[
                    pl.BlockSpec((batch_tile, D_IN), lambda i: (i, 0)),   # x tile
                    _resident_spec((D_IN, H1_P), buffered_weights),       # w1
                    _resident_spec((1, H1_P), buffered_weights),          # b1
                    _resident_spec((H1_P, H2_P), buffered_weights),       # w2
                    _resident_spec((1, H2_P), buffered_weights),          # b2
                    _resident_spec((H2_P, D_OUT_P), buffered_weights),    # w3
                    _resident_spec((1, D_OUT_P), buffered_weights),       # b3
                ],
                out_specs=pl.BlockSpec((batch_tile, D_OUT_P), lambda i: (i, 0)),
            ),
            compiler_params=pltpu.CompilerParams(
                dimension_semantics=("parallel",)),
            cost_estimate=cost,
        )(x_p, prepped["w1"], prepped["b1"], prepped["w2"], prepped["b2"],
          prepped["w3"], prepped["b3"])

    try:
        out = run(True)       # single-buffered resident weights
    except Exception:         # pl.Buffered(1) not supported in this build
        out = run(False)

    return out[:B, :D_OUT].astype(jnp.float32)


# ----------------------------------------------------------------------------- testing
def init_params(key):
    """Deterministic synthetic init matching nn.Linear shapes (stored transposed)."""
    ks = jax.random.split(key, 6)

    def linear(kw, kb, fan_in, fan_out):
        # PyTorch Linear default: U(-1/sqrt(fan_in), 1/sqrt(fan_in))
        bound = 1.0 / jnp.sqrt(jnp.float32(fan_in))
        w = jax.random.uniform(kw, (fan_in, fan_out), jnp.float32, -bound, bound)
        b = jax.random.uniform(kb, (1, fan_out), jnp.float32, -bound, bound)
        return w, b

    w1, b1 = linear(ks[0], ks[1], D_IN, H1)
    w2, b2 = linear(ks[2], ks[3], H1, H2)
    w3, b3 = linear(ks[4], ks[5], H2, D_OUT)
    return {"w1": w1, "b1": b1, "w2": w2, "b2": b2, "w3": w3, "b3": b3}


def reference_forward(x, p):
    h = jnp.maximum(x @ p["w1"] + p["b1"], 0.0)
    h = jnp.maximum(h @ p["w2"] + p["b2"], 0.0)
    return h @ p["w3"] + p["b3"]


if __name__ == "__main__":
    key = jax.random.PRNGKey(0)
    k_x, k_p = jax.random.split(key)
    params = init_params(k_p)

    B = 64
    x = jax.random.normal(k_x, (B, D_IN), jnp.float32)
    ref = reference_forward(x, params)

    # Default path: bf16 compute (MXU-native), f32 accumulation per layer.
    prepped_bf16 = prepare_params(params)  # pad + cast once, reused below
    out = jax.block_until_ready(mnist_mlp_forward(x, prepped_bf16))
    assert out.shape == (B, D_OUT) and out.dtype == jnp.float32
    assert jnp.allclose(out, ref, atol=5e-2, rtol=5e-2), "bf16 mismatch vs reference"

    # f32 compute path, tight tolerance.
    prepped_f32 = prepare_params(params, compute_dtype=jnp.float32)
    out_f32 = jax.block_until_ready(mnist_mlp_forward(x, prepped_f32))
    assert out_f32.shape == (B, D_OUT)
    assert jnp.allclose(out_f32, ref, atol=1e-3, rtol=1e-3), "f32 mismatch vs reference"

    # Ragged batch (exercises row padding + slice-back and bf16 16-row alignment).
    B2 = 19
    x2 = jax.random.normal(k_x, (B2, D_IN), jnp.float32)
    out2 = jax.block_until_ready(mnist_mlp_forward(x2, prepped_bf16))
    ref2 = reference_forward(x2, params)
    assert out2.shape == (B2, D_OUT)
    assert jnp.allclose(out2, ref2, atol=5e-2, rtol=5e-2), "ragged-batch mismatch"

    print("KERNEL_OK")
</pallas_src>

<mosaic_0001>
module attributes {stable_mosaic.version = 11 : i64} {
  func.func @mlp_kernel(%arg0: i32, %arg1: memref<64x784xbf16, #tpu.memory_space<vmem>>, %arg2: memref<784x512xbf16, #tpu.memory_space<vmem>>, %arg3: memref<1x512xf32, #tpu.memory_space<vmem>>, %arg4: memref<512x256xbf16, #tpu.memory_space<vmem>>, %arg5: memref<1x256xf32, #tpu.memory_space<vmem>>, %arg6: memref<256x128xbf16, #tpu.memory_space<vmem>>, %arg7: memref<1x128xf32, #tpu.memory_space<vmem>>, %arg8: memref<64x128xbf16, #tpu.memory_space<vmem>>) attributes {dimension_semantics = [#tpu.dimension_semantics<parallel>], iteration_bounds = array<i64: 1>, scalar_prefetch = 0 : i64, scratch_operands = 0 : i64, tpu.core_type = #tpu.core_type<tc>, window_params = [{transform_indices = @transform_0, window_bounds = array<i64: 64, 784>}, {pipeline_mode = #tpu.pipeline_mode<synchronous>, transform_indices = @transform_1, window_bounds = array<i64: 784, 512>}, {pipeline_mode = #tpu.pipeline_mode<synchronous>, transform_indices = @transform_2, window_bounds = array<i64: 1, 512>}, {pipeline_mode = #tpu.pipeline_mode<synchronous>, transform_indices = @transform_3, window_bounds = array<i64: 512, 256>}, {pipeline_mode = #tpu.pipeline_mode<synchronous>, transform_indices = @transform_4, window_bounds = array<i64: 1, 256>}, {pipeline_mode = #tpu.pipeline_mode<synchronous>, transform_indices = @transform_5, window_bounds = array<i64: 256, 128>}, {pipeline_mode = #tpu.pipeline_mode<synchronous>, transform_indices = @transform_6, window_bounds = array<i64: 1, 128>}, {transform_indices = @transform_7, window_bounds = array<i64: 64, 128>}]} {
    %c0 = arith.constant 0 : index
    %c0_0 = arith.constant 0 : index
    %0 = vector.load %arg1[%c0, %c0_0] : memref<64x784xbf16, #tpu.memory_space<vmem>>, vector<64x784xbf16>
    %c0_1 = arith.constant 0 : index
    %c0_2 = arith.constant 0 : index
    %1 = vector.load %arg2[%c0_1, %c0_2] : memref<784x512xbf16, #tpu.memory_space<vmem>>, vector<784x512xbf16>
    %cst = arith.constant dense<0.000000e+00> : vector<64x512xf32>
    %2 = tpu.matmul %0, %1, %cst {dimension_numbers = #tpu.dot_dimension_numbers<[1], [0], [0], [1], [0, 0, 1, 1], [], []>} : vector<64x784xbf16>, vector<784x512xbf16>, vector<64x512xf32> -> vector<64x512xf32>
    %c0_3 = arith.constant 0 : index
    %c0_4 = arith.constant 0 : index
    %3 = vector.load %arg3[%c0_3, %c0_4] : memref<1x512xf32, #tpu.memory_space<vmem>>, vector<1x512xf32>
    %4 = vector.broadcast %3 : vector<1x512xf32> to vector<64x512xf32>
    %5 = arith.addf %2, %4 : vector<64x512xf32>
    %cst_5 = arith.constant 0.000000e+00 : f32
    %6 = vector.broadcast %cst_5 : f32 to vector<64x512xf32>
    %7 = arith.maximumf %5, %6 : vector<64x512xf32>
    %8 = arith.truncf %7 : vector<64x512xf32> to vector<64x512xbf16>
    %c0_6 = arith.constant 0 : index
    %c0_7 = arith.constant 0 : index
    %9 = vector.load %arg4[%c0_6, %c0_7] : memref<512x256xbf16, #tpu.memory_space<vmem>>, vector<512x256xbf16>
    %cst_8 = arith.constant dense<0.000000e+00> : vector<64x256xf32>
    %10 = tpu.matmul %8, %9, %cst_8 {dimension_numbers = #tpu.dot_dimension_numbers<[1], [0], [0], [1], [0, 0, 1, 1], [], []>} : vector<64x512xbf16>, vector<512x256xbf16>, vector<64x256xf32> -> vector<64x256xf32>
    %c0_9 = arith.constant 0 : index
    %c0_10 = arith.constant 0 : index
    %11 = vector.load %arg5[%c0_9, %c0_10] : memref<1x256xf32, #tpu.memory_space<vmem>>, vector<1x256xf32>
    %12 = vector.broadcast %11 : vector<1x256xf32> to vector<64x256xf32>
    %13 = arith.addf %10, %12 : vector<64x256xf32>
    %cst_11 = arith.constant 0.000000e+00 : f32
    %14 = vector.broadcast %cst_11 : f32 to vector<64x256xf32>
    %15 = arith.maximumf %13, %14 : vector<64x256xf32>
    %16 = arith.truncf %15 : vector<64x256xf32> to vector<64x256xbf16>
    %c0_12 = arith.constant 0 : index
    %c0_13 = arith.constant 0 : index
    %17 = vector.load %arg6[%c0_12, %c0_13] : memref<256x128xbf16, #tpu.memory_space<vmem>>, vector<256x128xbf16>
    %cst_14 = arith.constant dense<0.000000e+00> : vector<64x128xf32>
    %18 = tpu.matmul %16, %17, %cst_14 {dimension_numbers = #tpu.dot_dimension_numbers<[1], [0], [0], [1], [0, 0, 1, 1], [], []>} : vector<64x256xbf16>, vector<256x128xbf16>, vector<64x128xf32> -> vector<64x128xf32>
    %c0_15 = arith.constant 0 : index
    %c0_16 = arith.constant 0 : index
    %19 = vector.load %arg7[%c0_15, %c0_16] : memref<1x128xf32, #tpu.memory_space<vmem>>, vector<1x128xf32>
    %20 = vector.broadcast %19 : vector<1x128xf32> to vector<64x128xf32>
    %21 = arith.addf %18, %20 : vector<64x128xf32>
    %22 = arith.truncf %21 : vector<64x128xf32> to vector<64x128xbf16>
    %c0_17 = arith.constant 0 : index
    %c0_18 = arith.constant 0 : index
    %23 = vector.load %arg8[%c0_17, %c0_18] : memref<64x128xbf16, #tpu.memory_space<vmem>>, vector<64x128xbf16>
    tpu.vector_store %arg8[%c0_17, %c0_18], %22 {strides = array<i32>} : memref<64x128xbf16, #tpu.memory_space<vmem>>, vector<64x128xbf16>,
    return
  }
  func.func @transform_0(%arg0: i32) -> (i32, i32) {
    %c0_i32 = arith.constant 0 : i32
    %c0_i32_0 = arith.constant 0 : i32
    return %arg0, %c0_i32 : i32, i32
  }
  func.func @transform_1(%arg0: i32) -> (i32, i32) {
    %c0_i32 = arith.constant 0 : i32
    %c0_i32_0 = arith.constant 0 : i32
    %c0_i32_1 = arith.constant 0 : i32
    return %c0_i32, %c0_i32_0 : i32, i32
  }
  func.func @transform_2(%arg0: i32) -> (i32, i32) {
    %c0_i32 = arith.constant 0 : i32
    %c0_i32_0 = arith.constant 0 : i32
    %c0_i32_1 = arith.constant 0 : i32
    return %c0_i32, %c0_i32_0 : i32, i32
  }
  func.func @transform_3(%arg0: i32) -> (i32, i32) {
    %c0_i32 = arith.constant 0 : i32
    %c0_i32_0 = arith.constant 0 : i32
    %c0_i32_1 = arith.constant 0 : i32
    return %c0_i32, %c0_i32_0 : i32, i32
  }
  func.func @transform_4(%arg0: i32) -> (i32, i32) {
    %c0_i32 = arith.constant 0 : i32
    %c0_i32_0 = arith.constant 0 : i32
    %c0_i32_1 = arith.constant 0 : i32
    return %c0_i32, %c0_i32_0 : i32, i32
  }
  func.func @transform_5(%arg0: i32) -> (i32, i32) {
    %c0_i32 = arith.constant 0 : i32
    %c0_i32_0 = arith.constant 0 : i32
    %c0_i32_1 = arith.constant 0 : i32
    return %c0_i32, %c0_i32_0 : i32, i32
  }
  func.func @transform_6(%arg0: i32) -> (i32, i32) {
    %c0_i32 = arith.constant 0 : i32
    %c0_i32_0 = arith.constant 0 : i32
    %c0_i32_1 = arith.constant 0 : i32
    return %c0_i32, %c0_i32_0 : i32, i32
  }
  func.func @transform_7(%arg0: i32) -> (i32, i32) {
    %c0_i32 = arith.constant 0 : i32
    %c0_i32_0 = arith.constant 0 : i32
    return %arg0, %c0_i32 : i32, i32
  }
}

module attributes {stable_mosaic.version = 11 : i64} {
  func.func @mlp_kernel(%arg0: i32, %arg1: memref<64x784xbf16, #tpu.memory_space<vmem>>, %arg2: memref<784x512xbf16, #tpu.memory_space<vmem>>, %arg3: memref<1x512xf32, #tpu.memory_space<vmem>>, %arg4: memref<512x256xbf16, #tpu.memory_space<vmem>>, %arg5: memref<1x256xf32, #tpu.memory_space<vmem>>, %arg6: memref<256x128xbf16, #tpu.memory_space<vmem>>, %arg7: memref<1x128xf32, #tpu.memory_space<vmem>>, %arg8: memref<64x128xbf16, #tpu.memory_space<vmem>>) attributes {dimension_semantics = [#tpu.dimension_semantics<parallel>], iteration_bounds = array<i64: 1>, scalar_prefetch = 0 : i64, scratch_operands = 0 : i64, tpu.core_type = #tpu.core_type<tc>, window_params = [{transform_indices = @transform_0, window_bounds = array<i64: 64, 784>}, {pipeline_mode = #tpu.pipeline_mode<synchronous>, transform_indices = @transform_1, window_bounds = array<i64: 784, 512>}, {pipeline_mode = #tpu.pipeline_mode<synchronous>, transform_indices = @transform_2, window_bounds = array<i64: 1, 512>}, {pipeline_mode = #tpu.pipeline_mode<synchronous>, transform_indices = @transform_3, window_bounds = array<i64: 512, 256>}, {pipeline_mode = #tpu.pipeline_mode<synchronous>, transform_indices = @transform_4, window_bounds = array<i64: 1, 256>}, {pipeline_mode = #tpu.pipeline_mode<synchronous>, transform_indices = @transform_5, window_bounds = array<i64: 256, 128>}, {pipeline_mode = #tpu.pipeline_mode<synchronous>, transform_indices = @transform_6, window_bounds = array<i64: 1, 128>}, {transform_indices = @transform_7, window_bounds = array<i64: 64, 128>}]} {
    %c0 = arith.constant 0 : index
    %c0_0 = arith.constant 0 : index
    %0 = vector.load %arg1[%c0, %c0_0] : memref<64x784xbf16, #tpu.memory_space<vmem>>, vector<64x784xbf16>
    %c0_1 = arith.constant 0 : index
    %c0_2 = arith.constant 0 : index
    %1 = vector.load %arg2[%c0_1, %c0_2] : memref<784x512xbf16, #tpu.memory_space<vmem>>, vector<784x512xbf16>
    %cst = arith.constant dense<0.000000e+00> : vector<64x512xf32>
    %2 = tpu.matmul %0, %1, %cst {dimension_numbers = #tpu.dot_dimension_numbers<[1], [0], [0], [1], [0, 0, 1, 1], [], []>} : vector<64x784xbf16>, vector<784x512xbf16>, vector<64x512xf32> -> vector<64x512xf32>
    %c0_3 = arith.constant 0 : index
    %c0_4 = arith.constant 0 : index
    %3 = vector.load %arg3[%c0_3, %c0_4] : memref<1x512xf32, #tpu.memory_space<vmem>>, vector<1x512xf32>
    %4 = vector.broadcast %3 : vector<1x512xf32> to vector<64x512xf32>
    %5 = arith.addf %2, %4 : vector<64x512xf32>
    %cst_5 = arith.constant 0.000000e+00 : f32
    %6 = vector.broadcast %cst_5 : f32 to vector<64x512xf32>
    %7 = arith.maximumf %5, %6 : vector<64x512xf32>
    %8 = arith.truncf %7 : vector<64x512xf32> to vector<64x512xbf16>
    %c0_6 = arith.constant 0 : index
    %c0_7 = arith.constant 0 : index
    %9 = vector.load %arg4[%c0_6, %c0_7] : memref<512x256xbf16, #tpu.memory_space<vmem>>, vector<512x256xbf16>
    %cst_8 = arith.constant dense<0.000000e+00> : vector<64x256xf32>
    %10 = tpu.matmul %8, %9, %cst_8 {dimension_numbers = #tpu.dot_dimension_numbers<[1], [0], [0], [1], [0, 0, 1, 1], [], []>} : vector<64x512xbf16>, vector<512x256xbf16>, vector<64x256xf32> -> vector<64x256xf32>
    %c0_9 = arith.constant 0 : index
    %c0_10 = arith.constant 0 : index
    %11 = vector.load %arg5[%c0_9, %c0_10] : memref<1x256xf32, #tpu.memory_space<vmem>>, vector<1x256xf32>
    %12 = vector.broadcast %11 : vector<1x256xf32> to vector<64x256xf32>
    %13 = arith.addf %10, %12 : vector<64x256xf32>
    %cst_11 = arith.constant 0.000000e+00 : f32
    %14 = vector.broadcast %cst_11 : f32 to vector<64x256xf32>
    %15 = arith.maximumf %13, %14 : vector<64x256xf32>
    %16 = arith.truncf %15 : vector<64x256xf32> to vector<64x256xbf16>
    %c0_12 = arith.constant 0 : index
    %c0_13 = arith.constant 0 : index
    %17 = vector.load %arg6[%c0_12, %c0_13] : memref<256x128xbf16, #tpu.memory_space<vmem>>, vector<256x128xbf16>
    %cst_14 = arith.constant dense<0.000000e+00> : vector<64x128xf32>
    %18 = tpu.matmul %16, %17, %cst_14 {dimension_numbers = #tpu.dot_dimension_numbers<[1], [0], [0], [1], [0, 0, 1, 1], [], []>} : vector<64x256xbf16>, vector<256x128xbf16>, vector<64x128xf32> -> vector<64x128xf32>
    %c0_15 = arith.constant 0 : index
    %c0_16 = arith.constant 0 : index
    %19 = vector.load %arg7[%c0_15, %c0_16] : memref<1x128xf32, #tpu.memory_space<vmem>>, vector<1x128xf32>
    %20 = vector.broadcast %19 : vector<1x128xf32> to vector<64x128xf32>
    %21 = arith.addf %18, %20 : vector<64x128xf32>
    %22 = arith.truncf %21 : vector<64x128xf32> to vector<64x128xbf16>
    %c0_17 = arith.constant 0 : index
    %c0_18 = arith.constant 0 : index
    %23 = vector.load %arg8[%c0_17, %c0_18] : memref<64x128xbf16, #tpu.memory_space<vmem>>, vector<64x128xbf16>
    tpu.vector_store %arg8[%c0_17, %c0_18], %22 {strides = array<i32>} : memref<64x128xbf16, #tpu.memory_space<vmem>>, vector<64x128xbf16>,
    return
  }
  func.func @transform_0(%arg0: i32) -> (i32, i32) {
    %c0_i32 = arith.constant 0 : i32
    %c0_i32_0 = arith.constant 0 : i32
    return %arg0, %c0_i32 : i32, i32
  }
  func.func @transform_1(%arg0: i32) -> (i32, i32) {
    %c0_i32 = arith.constant 0 : i32
    %c0_i32_0 = arith.constant 0 : i32
    %c0_i32_1 = arith.constant 0 : i32
    return %c0_i32, %c0_i32_0 : i32, i32
  }
  func.func @transform_2(%arg0: i32) -> (i32, i32) {
    %c0_i32 = arith.constant 0 : i32
    %c0_i32_0 = arith.constant 0 : i32
    %c0_i32_1 = arith.constant 0 : i32
    return %c0_i32, %c0_i32_0 : i32, i32
  }
  func.func @transform_3(%arg0: i32) -> (i32, i32) {
    %c0_i32 = arith.constant 0 : i32
    %c0_i32_0 = arith.constant 0 : i32
    %c0_i32_1 = arith.constant 0 : i32
    return %c0_i32, %c0_i32_0 : i32, i32
  }
  func.func @transform_4(%arg0: i32) -> (i32, i32) {
    %c0_i32 = arith.constant 0 : i32
    %c0_i32_0 = arith.constant 0 : i32
    %c0_i32_1 = arith.constant 0 : i32
    return %c0_i32, %c0_i32_0 : i32, i32
  }
  func.func @transform_5(%arg0: i32) -> (i32, i32) {
    %c0_i32 = arith.constant 0 : i32
    %c0_i32_0 = arith.constant 0 : i32
    %c0_i32_1 = arith.constant 0 : i32
    return %c0_i32, %c0_i32_0 : i32, i32
  }
  func.func @transform_6(%arg0: i32) -> (i32, i32) {
    %c0_i32 = arith.constant 0 : i32
    %c0_i32_0 = arith.constant 0 : i32
    %c0_i32_1 = arith.constant 0 : i32
    return %c0_i32, %c0_i32_0 : i32, i32
  }
  func.func @transform_7(%arg0: i32) -> (i32, i32) {
    %c0_i32 = arith.constant 0 : i32
    %c0_i32_0 = arith.constant 0 : i32
    return %arg0, %c0_i32 : i32, i32
  }
}

</mosaic_0001>

<llo_original>
// kernel: tpu_custom_call.1
$region0: #{tpu_custom_call.1}
  #allocation0 [shape = 'u32[]', space=smem, size = 0x4, offset = 0x4, fixed_abs, tag = 'smem constant byte address 0x4 - core index']
  #allocation1 [shape = 'u32[144,128]{1,0:T(1,128)}', space=vmem, size = 0x12000, scoped, tag = 'internal scratch']
  %s0 = inlined_call_operand.hbm [shape: bf16[64,784], index: 0, kind: input, shape index: {}]
  %s1 = inlined_call_operand.hbm [shape: bf16[784,512], index: 1, kind: input, shape index: {}]
  %s2 = inlined_call_operand.hbm [shape: f32[1,512], index: 2, kind: input, shape index: {}]
  %s3 = inlined_call_operand.hbm [shape: bf16[512,256], index: 3, kind: input, shape index: {}]
  %s4 = inlined_call_operand.vmem [shape: f32[1,256], index: 4, kind: input, shape index: {}]
  %s5 = inlined_call_operand.hbm [shape: bf16[256,128], index: 5, kind: input, shape index: {}]
  %s6 = inlined_call_operand.vmem [shape: f32[1,128], index: 6, kind: input, shape index: {}]
  %s7 = inlined_call_operand.hbm [shape: bf16[64,128], index: 7, kind: output, shape index: {}]
  %s8 = sld [smem:[#allocation0]]
  $region58: #{tpu_custom_call.1} parent=0
    _
  %s10 = ssub.s32 1, %s8
  %s11 = scalar_select 0, %s10, %s8
  $region1: #{tpu_custom_call.1} parent=0
    #allocation2 [shape = 'u8[114688]{0}', space=vmem, size = 0x1c000, scoped, tag = 'input window, operand 0, single buffered']
    #allocation3 [shape = 's32[1]{0}', space=sflag, size = 0x4, scoped, tag = 'scoped memory for tpu_custom_call.1']
    #allocation4 [shape = 's32[1]{0}', space=sflag, size = 0x4, scoped, tag = 'scoped memory for tpu_custom_call.1']
    #allocation5 [shape = 'u8[802816]{0}', space=vmem, size = 0xc4000, scoped, tag = 'input window, operand 1, single buffered']
    #allocation6 [shape = 's32[1]{0}', space=sflag, size = 0x4, scoped, tag = 'scoped memory for tpu_custom_call.1']
    #allocation7 [shape = 'u8[2048]{0}', space=vmem, size = 0x800, scoped, tag = 'input window, operand 2, single buffered']
    #allocation8 [shape = 'u8[262144]{0}', space=vmem, size = 0x40000, scoped, tag = 'input window, operand 3, single buffered']
    #allocation9 [shape = 's32[1]{0}', space=sflag, size = 0x4, scoped, tag = 'scoped memory for tpu_custom_call.1']
    #allocation10 [shape = 'u8[65536]{0}', space=vmem, size = 0x10000, scoped, tag = 'input window, operand 5, single buffered']
    #allocation11 [shape = 'u8[16384]{0}', space=vmem, size = 0x4000, scoped, tag = 'output window, operand 0, single buffered']
    %12 = vsyncpa [#allocation3], 0
    %13 = vsyncpa [#allocation6], 0
    %14 = vsyncpa [#allocation9], 0
    %15 = vsyncpa [#allocation4], 0
    // Predicated region
    $region2: #{tpu_custom_call.1} parent=1 // pred_check
      _
    $region3: #{tpu_custom_call.1} parent=1 // pred_check_branch
      %17 = sbr.rel (0) target = $region5
    $region4: #{tpu_custom_call.1} parent=1 // pred_region
      %s19 = ssub.s32 3584, 3584
      %20 = vsyncadd [#allocation3], %s19
      %s21 = sshll.u32 [#allocation2], 4
      %s22 = int_to_ptr.vmem [resolvable:$true] %s21
      %27 = dma.hbm_to_vmem [thread:$0]  %s0, 3584, %s22, [#allocation3], 448, 448, 28
    $region5: #{tpu_custom_call.1} parent=1 // pred_fallthru
      _
    // Predicated region
    $region6: #{tpu_custom_call.1} parent=1 // pred_check
      _
    $region7: #{tpu_custom_call.1} parent=1 // pred_check_branch
      %29 = sbr.rel (0) target = $region9
    $region8: #{tpu_custom_call.1} parent=1 // pred_region
      %s31 = ssub.s32 25088, 25088
      %32 = vsyncadd [#allocation6], %s31
      %s33 = sshll.u32 [#allocation5], 4
      %s34 = int_to_ptr.vmem [resolvable:$true] %s33
      %39 = dma.hbm_to_vmem [thread:$0]  %s1, 25088, %s34, [#allocation6], 256, 256, 16
    $region9: #{tpu_custom_call.1} parent=1 // pred_fallthru
      _
    // Predicated region
    $region10: #{tpu_custom_call.1} parent=1 // pred_check
      _
    $region11: #{tpu_custom_call.1} parent=1 // pred_check_branch
      %41 = sbr.rel (0) target = $region13
    $region12: #{tpu_custom_call.1} parent=1 // pred_region
      %s43 = ssub.s32 64, 64
      %44 = vsyncadd [#allocation6], %s43
      %s46 = sshll.u32 [#allocation7], 4
      %s47 = int_to_ptr.vmem [resolvable:$true] %s46
      %49 = dma.hbm_to_vmem [thread:$0]  %s2, 64, %s47, [#allocation6]
    $region13: #{tpu_custom_call.1} parent=1 // pred_fallthru
      _
    // Predicated region
    $region14: #{tpu_custom_call.1} parent=1 // pred_check
      _
    $region15: #{tpu_custom_call.1} parent=1 // pred_check_branch
      %51 = sbr.rel (0) target = $region17
    $region16: #{tpu_custom_call.1} parent=1 // pred_region
      %s53 = ssub.s32 8192, 8192
      %54 = vsyncadd [#allocation9], %s53
      %s55 = sshll.u32 [#allocation8], 4
      %s56 = int_to_ptr.vmem [resolvable:$true] %s55
      %61 = dma.hbm_to_vmem [thread:$0]  %s3, 8192, %s56, [#allocation9], 128, 128, 8
    $region17: #{tpu_custom_call.1} parent=1 // pred_fallthru
      _
    // Predicated region
    $region18: #{tpu_custom_call.1} parent=1 // pred_check
      _
    $region19: #{tpu_custom_call.1} parent=1 // pred_check_branch
      %63 = sbr.rel (0) target = $region21
    $region20: #{tpu_custom_call.1} parent=1 // pred_region
      _
    $region21: #{tpu_custom_call.1} parent=1 // pred_fallthru
      _
    // Predicated region
    $region22: #{tpu_custom_call.1} parent=1 // pred_check
      _
    $region23: #{tpu_custom_call.1} parent=1 // pred_check_branch
      %65 = sbr.rel (0) target = $region25
    $region24: #{tpu_custom_call.1} parent=1 // pred_region
      %s67 = ssub.s32 2048, 2048
      %68 = vsyncadd [#allocation9], %s67
      %s69 = sshll.u32 [#allocation10], 4
      %s70 = int_to_ptr.vmem [resolvable:$true] %s69
      %75 = dma.hbm_to_vmem [thread:$0]  %s5, 2048, %s70, [#allocation9], 64, 64, 4
    $region25: #{tpu_custom_call.1} parent=1 // pred_fallthru
      _
    // Predicated region
    $region26: #{tpu_custom_call.1} parent=1 // pred_check
      _
    $region27: #{tpu_custom_call.1} parent=1 // pred_check_branch
      %77 = sbr.rel (0) target = $region29
    $region28: #{tpu_custom_call.1} parent=1 // pred_region
      _
    $region29: #{tpu_custom_call.1} parent=1 // pred_fallthru
      _
    // Predicated region
    $region30: #{tpu_custom_call.1} parent=1 // pred_check
      _
    $region31: #{tpu_custom_call.1} parent=1 // pred_check_branch
      %79 = sbr.rel (0) target = $region33
    $region32: #{tpu_custom_call.1} parent=1 // pred_region
      %80 = dma.done [#allocation3], 3584
    $region33: #{tpu_custom_call.1} parent=1 // pred_fallthru
      _
    // Predicated region
    $region34: #{tpu_custom_call.1} parent=1 // pred_check
      _
    $region35: #{tpu_custom_call.1} parent=1 // pred_check_branch
      %82 = sbr.rel (0) target = $region37
    $region36: #{tpu_custom_call.1} parent=1 // pred_region
      %83 = dma.done [#allocation6], 25088
    $region37: #{tpu_custom_call.1} parent=1 // pred_fallthru
      _
    // Predicated region
    $region38: #{tpu_custom_call.1} parent=1 // pred_check
      _
    $region39: #{tpu_custom_call.1} parent=1 // pred_check_branch
      %85 = sbr.rel (0) target = $region41
    $region40: #{tpu_custom_call.1} parent=1 // pred_region
      %86 = dma.done [#allocation6], 64
    $region41: #{tpu_custom_call.1} parent=1 // pred_fallthru
      _
    // Predicated region
    $region42: #{tpu_custom_call.1} parent=1 // pred_check
      _
    $region43: #{tpu_custom_call.1} parent=1 // pred_check_branch
      %88 = sbr.rel (0) target = $region45
    $region44: #{tpu_custom_call.1} parent=1 // pred_region
      %89 = dma.done [#allocation9], 8192
    $region45: #{tpu_custom_call.1} parent=1 // pred_fallthru
      _
    // Predicated region
    $region46: #{tpu_custom_call.1} parent=1 // pred_check
      _
    $region47: #{tpu_custom_call.1} parent=1 // pred_check_branch
      %91 = sbr.rel (0) target = $region49
    $region48: #{tpu_custom_call.1} parent=1 // pred_region
      %92 = dma.done [#allocation9], 2048
    $region49: #{tpu_custom_call.1} parent=1 // pred_fallthru
      _
    %v94 = vld [vmem:[#allocation2] sm:$0xff]
    %v95 = vld [vmem:[#allocation2 + $0x8] sm:$0xff]
    %v96 = vld [vmem:[#allocation2 + $0x10] sm:$0xff]
    %v97 = vld [vmem:[#allocation2 + $0x18] sm:$0xf]
    %v98 = vld [vmem:[#allocation2 + $0x1c] sm:$0xff]
    %v99 = vld [vmem:[#allocation2 + $0x24] sm:$0xff]
    %v100 = vld [vmem:[#allocation2 + $0x2c] sm:$0xff]
    %v101 = vld [vmem:[#allocation2 + $0x34] sm:$0xf]
    %v102 = vld [vmem:[#allocation2 + $0x38] sm:$0xff]
    %v103 = vld [vmem:[#allocation2 + $0x40] sm:$0xff]
    %v104 = vld [vmem:[#allocation2 + $0x48] sm:$0xff]
    %v105 = vld [vmem:[#allocation2 + $0x50] sm:$0xf]
    %v106 = vld [vmem:[#allocation2 + $0x54] sm:$0xff]
    %v107 = vld [vmem:[#allocation2 + $0x5c] sm:$0xff]
    %v108 = vld [vmem:[#allocation2 + $0x64] sm:$0xff]
    %v109 = vld [vmem:[#allocation2 + $0x6c] sm:$0xf]
    %v110 = vld [vmem:[#allocation2 + $0x70] sm:$0xff]
    %v111 = vld [vmem:[#allocation2 + $0x78] sm:$0xff]
    %v112 = vld [vmem:[#allocation2 + $0x80] sm:$0xff]
    %v113 = vld [vmem:[#allocation2 + $0x88] sm:$0xf]
    %v114 = vld [vmem:[#allocation2 + $0x8c] sm:$0xff]
    %v115 = vld [vmem:[#allocation2 + $0x94] sm:$0xff]
    %v116 = vld [vmem:[#allocation2 + $0x9c] sm:$0xff]
    %v117 = vld [vmem:[#allocation2 + $0xa4] sm:$0xf]
    %v118 = vld [vmem:[#allocation2 + $0xa8] sm:$0xff]
    %v119 = vld [vmem:[#allocation2 + $0xb0] sm:$0xff]
    %v120 = vld [vmem:[#allocation2 + $0xb8] sm:$0xff]
    %v121 = vld [vmem:[#allocation2 + $0xc0] sm:$0xf]
    %v122 = vld [vmem:[#allocation2 + $0xc4] sm:$0xff]
    %v123 = vld [vmem:[#allocation2 + $0xcc] sm:$0xff]
    %v124 = vld [vmem:[#allocation2 + $0xd4] sm:$0xff]
    %v125 = vld [vmem:[#allocation2 + $0xdc] sm:$0xf]
    %v126 = vld [vmem:[#allocation5] sm:$0xff]
    %v127 = vld [vmem:[#allocation5 + $0x8] sm:$0xff]
    %v128 = vld [vmem:[#allocation5 + $0x10] sm:$0xff]
    %v129 = vld [vmem:[#allocation5 + $0x18] sm:$0xff]
    %v130 = vld [vmem:[#allocation5 + $0x20] sm:$0xff]
    %v131 = vld [vmem:[#allocation5 + $0x28] sm:$0xff]
    %v132 = vld [vmem:[#allocation5 + $0x30] sm:$0xff]
    %v133 = vld [vmem:[#allocation5 + $0x38] sm:$0xff]
    %v134 = vld [vmem:[#allocation5 + $0x40] sm:$0xff]
    %v135 = vld [vmem:[#allocation5 + $0x48] sm:$0xff]
    %v136 = vld [vmem:[#allocation5 + $0x50] sm:$0xff]
    %v137 = vld [vmem:[#allocation5 + $0x58] sm:$0xff]
    %v138 = vld [vmem:[#allocation5 + $0x60] sm:$0xff]
    %v139 = vld [vmem:[#allocation5 + $0x68] sm:$0xff]
    %v140 = vld [vmem:[#allocation5 + $0x70] sm:$0xff]
    %v141 = vld [vmem:[#allocation5 + $0x78] sm:$0xff]
    %v142 = vld [vmem:[#allocation5 + $0x80] sm:$0xff]
    %v143 = vld [vmem:[#allocation5 + $0x88] sm:$0xff]
    %v144 = vld [vmem:[#allocation5 + $0x90] sm:$0xff]
    %v145 = vld [vmem:[#allocation5 + $0x98] sm:$0xff]
    %v146 = vld [vmem:[#allocation5 + $0xa0] sm:$0xff]
    %v147 = vld [vmem:[#allocation5 + $0xa8] sm:$0xff]
    %v148 = vld [vmem:[#allocation5 + $0xb0] sm:$0xff]
    %v149 = vld [vmem:[#allocation5 + $0xb8] sm:$0xff]
    %v150 = vld [vmem:[#allocation5 + $0xc0] sm:$0xff]
    %v151 = vld [vmem:[#allocation5 + $0xc8] sm:$0xff]
    %v152 = vld [vmem:[#allocation5 + $0xd0] sm:$0xff]
    %v153 = vld [vmem:[#allocation5 + $0xd8] sm:$0xff]
    %v154 = vld [vmem:[#allocation5 + $0xe0] sm:$0xff]
    %v155 = vld [vmem:[#allocation5 + $0xe8] sm:$0xff]
    %v156 = vld [vmem:[#allocation5 + $0xf0] sm:$0xff]
    %v157 = vld [vmem:[#allocation5 + $0xf8] sm:$0xff]
    %v158 = vld [vmem:[#allocation5 + $0x100] sm:$0xff]
    %v159 = vld [vmem:[#allocation5 + $0x108] sm:$0xff]
    %v160 = vld [vmem:[#allocation5 + $0x110] sm:$0xff]
    %v161 = vld [vmem:[#allocation5 + $0x118] sm:$0xff]
    %v162 = vld [vmem:[#allocation5 + $0x120] sm:$0xff]
    %v163 = vld [vmem:[#allocation5 + $0x128] sm:$0xff]
    %v164 = vld [vmem:[#allocation5 + $0x130] sm:$0xff]
    %v165 = vld [vmem:[#allocation5 + $0x138] sm:$0xff]
    %v166 = vld [vmem:[#allocation5 + $0x140] sm:$0xff]
    %v167 = vld [vmem:[#allocation5 + $0x148] sm:$0xff]
    %v168 = vld [vmem:[#allocation5 + $0x150] sm:$0xff]
    %v169 = vld [vmem:[#allocation5 + $0x158] sm:$0xff]
    %v170 = vld [vmem:[#allocation5 + $0x160] sm:$0xff]
    %v171 = vld [vmem:[#allocation5 + $0x168] sm:$0xff]
    %v172 = vld [vmem:[#allocation5 + $0x170] sm:$0xff]
    %v173 = vld [vmem:[#allocation5 + $0x178] sm:$0xff]
    %v174 = vld [vmem:[#allocation5 + $0x180] sm:$0xff]
    %v175 = vld [vmem:[#allocation5 + $0x188] sm:$0xff]
    %v176 = vld [vmem:[#allocation5 + $0x190] sm:$0xff]
    %v177 = vld [vmem:[#allocation5 + $0x198] sm:$0xff]
    %v178 = vld [vmem:[#allocation5 + $0x1a0] sm:$0xff]
    %v179 = vld [vmem:[#allocation5 + $0x1a8] sm:$0xff]
    %v180 = vld [vmem:[#allocation5 + $0x1b0] sm:$0xff]
    %v181 = vld [vmem:[#allocation5 + $0x1b8] sm:$0xff]
    %v182 = vld [vmem:[#allocation5 + $0x1c0] sm:$0xff]
    %v183 = vld [vmem:[#allocation5 + $0x1c8] sm:$0xff]
    %v184 = vld [vmem:[#allocation5 + $0x1d0] sm:$0xff]
    %v185 = vld [vmem:[#allocation5 + $0x1d8] sm:$0xff]
    %v186 = vld [vmem:[#allocation5 + $0x1e0] sm:$0xff]
    %v187 = vld [vmem:[#allocation5 + $0x1e8] sm:$0xff]
    %v188 = vld [vmem:[#allocation5 + $0x1f0] sm:$0xff]
    %v189 = vld [vmem:[#allocation5 + $0x1f8] sm:$0xff]
    %v190 = vld [vmem:[#allocation5 + $0x200] sm:$0xff]
    %v191 = vld [vmem:[#allocation5 + $0x208] sm:$0xff]
    %v192 = vld [vmem:[#allocation5 + $0x210] sm:$0xff]
    %v193 = vld [vmem:[#allocation5 + $0x218] sm:$0xff]
    %v194 = vld [vmem:[#allocation5 + $0x220] sm:$0xff]
    %v195 = vld [vmem:[#allocation5 + $0x228] sm:$0xff]
    %v196 = vld [vmem:[#allocation5 + $0x230] sm:$0xff]
    %v197 = vld [vmem:[#allocation5 + $0x238] sm:$0xff]
    %v198 = vld [vmem:[#allocation5 + $0x240] sm:$0xff]
    %v199 = vld [vmem:[#allocation5 + $0x248] sm:$0xff]
    %v200 = vld [vmem:[#allocation5 + $0x250] sm:$0xff]
    %v201 = vld [vmem:[#allocation5 + $0x258] sm:$0xff]
    %v202 = vld [vmem:[#allocation5 + $0x260] sm:$0xff]
    %v203 = vld [vmem:[#allocation5 + $0x268] sm:$0xff]
    %v204 = vld [vmem:[#allocation5 + $0x270] sm:$0xff]
    %v205 = vld [vmem:[#allocation5 + $0x278] sm:$0xff]
    %v206 = vld [vmem:[#allocation5 + $0x280] sm:$0xff]
    %v207 = vld [vmem:[#allocation5 + $0x288] sm:$0xff]
    %v208 = vld [vmem:[#allocation5 + $0x290] sm:$0xff]
    %v209 = vld [vmem:[#allocation5 + $0x298] sm:$0xff]
    %v210 = vld [vmem:[#allocation5 + $0x2a0] sm:$0xff]
    %v211 = vld [vmem:[#allocation5 + $0x2a8] sm:$0xff]
    %v212 = vld [vmem:[#allocation5 + $0x2b0] sm:$0xff]
    %v213 = vld [vmem:[#allocation5 + $0x2b8] sm:$0xff]
    %v214 = vld [vmem:[#allocation5 + $0x2c0] sm:$0xff]
    %v215 = vld [vmem:[#allocation5 + $0x2c8] sm:$0xff]
    %v216 = vld [vmem:[#allocation5 + $0x2d0] sm:$0xff]
    %v217 = vld [vmem:[#allocation5 + $0x2d8] sm:$0xff]
    %v218 = vld [vmem:[#allocation5 + $0x2e0] sm:$0xff]
    %v219 = vld [vmem:[#allocation5 + $0x2e8] sm:$0xff]
    %v220 = vld [vmem:[#allocation5 + $0x2f0] sm:$0xff]
    %v221 = vld [vmem:[#allocation5 + $0x2f8] sm:$0xff]
    %v222 = vld [vmem:[#allocation5 + $0x300] sm:$0xff]
    %v223 = vld [vmem:[#allocation5 + $0x308] sm:$0xff]
    %v224 = vld [vmem:[#allocation5 + $0x310] sm:$0xff]
    %v225 = vld [vmem:[#allocation5 + $0x318] sm:$0xff]
    %v226 = vld [vmem:[#allocation5 + $0x320] sm:$0xff]
    %v227 = vld [vmem:[#allocation5 + $0x328] sm:$0xff]
    %v228 = vld [vmem:[#allocation5 + $0x330] sm:$0xff]
    %v229 = vld [vmem:[#allocation5 + $0x338] sm:$0xff]
    %v230 = vld [vmem:[#allocation5 + $0x340] sm:$0xff]
    %v231 = vld [vmem:[#allocation5 + $0x348] sm:$0xff]
    %v232 = vld [vmem:[#allocation5 + $0x350] sm:$0xff]
    %v233 = vld [vmem:[#allocation5 + $0x358] sm:$0xff]
    %v234 = vld [vmem:[#allocation5 + $0x360] sm:$0xff]
    %v235 = vld [vmem:[#allocation5 + $0x368] sm:$0xff]
    %v236 = vld [vmem:[#allocation5 + $0x370] sm:$0xff]
    %v237 = vld [vmem:[#allocation5 + $0x378] sm:$0xff]
    %v238 = vld [vmem:[#allocation5 + $0x380] sm:$0xff]
    %v239 = vld [vmem:[#allocation5 + $0x388] sm:$0xff]
    %v240 = vld [vmem:[#allocation5 + $0x390] sm:$0xff]
    %v241 = vld [vmem:[#allocation5 + $0x398] sm:$0xff]
    %v242 = vld [vmem:[#allocation5 + $0x3a0] sm:$0xff]
    %v243 = vld [vmem:[#allocation5 + $0x3a8] sm:$0xff]
    %v244 = vld [vmem:[#allocation5 + $0x3b0] sm:$0xff]
    %v245 = vld [vmem:[#allocation5 + $0x3b8] sm:$0xff]
    %v246 = vld [vmem:[#allocation5 + $0x3c0] sm:$0xff]
    %v247 = vld [vmem:[#allocation5 + $0x3c8] sm:$0xff]
    %v248 = vld [vmem:[#allocation5 + $0x3d0] sm:$0xff]
    %v249 = vld [vmem:[#allocation5 + $0x3d8] sm:$0xff]
    %v250 = vld [vmem:[#allocation5 + $0x3e0] sm:$0xff]
    %v251 = vld [vmem:[#allocation5 + $0x3e8] sm:$0xff]
    %v252 = vld [vmem:[#allocation5 + $0x3f0] sm:$0xff]
    %v253 = vld [vmem:[#allocation5 + $0x3f8] sm:$0xff]
    %v254 = vld [vmem:[#allocation5 + $0x400] sm:$0xff]
    %v255 = vld [vmem:[#allocation5 + $0x408] sm:$0xff]
    %v256 = vld [vmem:[#allocation5 + $0x410] sm:$0xff]
    %v257 = vld [vmem:[#allocation5 + $0x418] sm:$0xff]
    %v258 = vld [vmem:[#allocation5 + $0x420] sm:$0xff]
    %v259 = vld [vmem:[#allocation5 + $0x428] sm:$0xff]
    %v260 = vld [vmem:[#allocation5 + $0x430] sm:$0xff]
    %v261 = vld [vmem:[#allocation5 + $0x438] sm:$0xff]
    %v262 = vld [vmem:[#allocation5 + $0x440] sm:$0xff]
    %v263 = vld [vmem:[#allocation5 + $0x448] sm:$0xff]
    %v264 = vld [vmem:[#allocation5 + $0x450] sm:$0xff]
    %v265 = vld [vmem:[#allocation5 + $0x458] sm:$0xff]
    %v266 = vld [vmem:[#allocation5 + $0x460] sm:$0xff]
    %v267 = vld [vmem:[#allocation5 + $0x468] sm:$0xff]
    %v268 = vld [vmem:[#allocation5 + $0x470] sm:$0xff]
    %v269 = vld [vmem:[#allocation5 + $0x478] sm:$0xff]
    %v270 = vld [vmem:[#allocation5 + $0x480] sm:$0xff]
    %v271 = vld [vmem:[#allocation5 + $0x488] sm:$0xff]
    %v272 = vld [vmem:[#allocation5 + $0x490] sm:$0xff]
    %v273 = vld [vmem:[#allocation5 + $0x498] sm:$0xff]
    %v274 = vld [vmem:[#allocation5 + $0x4a0] sm:$0xff]
    %v275 = vld [vmem:[#allocation5 + $0x4a8] sm:$0xff]
    %v276 = vld [vmem:[#allocation5 + $0x4b0] sm:$0xff]
    %v277 = vld [vmem:[#allocation5 + $0x4b8] sm:$0xff]
    %v278 = vld [vmem:[#allocation5 + $0x4c0] sm:$0xff]
    %v279 = vld [vmem:[#allocation5 + $0x4c8] sm:$0xff]
    %v280 = vld [vmem:[#allocation5 + $0x4d0] sm:$0xff]
    %v281 = vld [vmem:[#allocation5 + $0x4d8] sm:$0xff]
    %v282 = vld [vmem:[#allocation5 + $0x4e0] sm:$0xff]
    %v283 = vld [vmem:[#allocation5 + $0x4e8] sm:$0xff]
    %v284 = vld [vmem:[#allocation5 + $0x4f0] sm:$0xff]
    %v285 = vld [vmem:[#allocation5 + $0x4f8] sm:$0xff]
    %v286 = vld [vmem:[#allocation5 + $0x500] sm:$0xff]
    %v287 = vld [vmem:[#allocation5 + $0x508] sm:$0xff]
    %v288 = vld [vmem:[#allocation5 + $0x510] sm:$0xff]
    %v289 = vld [vmem:[#allocation5 + $0x518] sm:$0xff]
    %v290 = vld [vmem:[#allocation5 + $0x520] sm:$0xff]
    %v291 = vld [vmem:[#allocation5 + $0x528] sm:$0xff]
    %v292 = vld [vmem:[#allocation5 + $0x530] sm:$0xff]
    %v293 = vld [vmem:[#allocation5 + $0x538] sm:$0xff]
    %v294 = vld [vmem:[#allocation5 + $0x540] sm:$0xff]
    %v295 = vld [vmem:[#allocation5 + $0x548] sm:$0xff]
    %v296 = vld [vmem:[#allocation5 + $0x550] sm:$0xff]
    %v297 = vld [vmem:[#allocation5 + $0x558] sm:$0xff]
    %v298 = vld [vmem:[#allocation5 + $0x560] sm:$0xff]
    %v299 = vld [vmem:[#allocation5 + $0x568] sm:$0xff]
    %v300 = vld [vmem:[#allocation5 + $0x570] sm:$0xff]
    %v301 = vld [vmem:[#allocation5 + $0x578] sm:$0xff]
    %v302 = vld [vmem:[#allocation5 + $0x580] sm:$0xff]
    %v303 = vld [vmem:[#allocation5 + $0x588] sm:$0xff]
    %v304 = vld [vmem:[#allocation5 + $0x590] sm:$0xff]
    %v305 = vld [vmem:[#allocation5 + $0x598] sm:$0xff]
    %v306 = vld [vmem:[#allocation5 + $0x5a0] sm:$0xff]
    %v307 = vld [vmem:[#allocation5 + $0x5a8] sm:$0xff]
    %v308 = vld [vmem:[#allocation5 + $0x5b0] sm:$0xff]
    %v309 = vld [vmem:[#allocation5 + $0x5b8] sm:$0xff]
    %v310 = vld [vmem:[#allocation5 + $0x5c0] sm:$0xff]
    %v311 = vld [vmem:[#allocation5 + $0x5c8] sm:$0xff]
    %v312 = vld [vmem:[#allocation5 + $0x5d0] sm:$0xff]
    %v313 = vld [vmem:[#allocation5 + $0x5d8] sm:$0xff]
    %v314 = vld [vmem:[#allocation5 + $0x5e0] sm:$0xff]
    %v315 = vld [vmem:[#allocation5 + $0x5e8] sm:$0xff]
    %v316 = vld [vmem:[#allocation5 + $0x5f0] sm:$0xff]
    %v317 = vld [vmem:[#allocation5 + $0x5f8] sm:$0xff]
    %v318 = vld [vmem:[#allocation5 + $0x600] sm:$0xff]
    %v319 = vld [vmem:[#allocation5 + $0x608] sm:$0xff]
    %v320 = vld [vmem:[#allocation5 + $0x610] sm:$0xff]
    %v321 = vld [vmem:[#allocation5 + $0x618] sm:$0xff]
    %v322 = vld [vmem:[#allocation7] sm:$0xf]
    %v324 = vlaneseq
    %v325 = vshrl.u32 %v324, 7
    %v326 = vsub.s32 0, %v325
    %v327 = vrot.slane %v322, %v326
    %v328 = vlaneseq
    %v329 = vshrl.u32 %v328, 7
    %v330 = vsub.s32 1, %v329
    %v331 = vrot.slane %v322, %v330
    %v332 = vlaneseq
    %v333 = vshrl.u32 %v332, 7
    %v334 = vsub.s32 2, %v333
    %v335 = vrot.slane %v322, %v334
    %v336 = vlaneseq
    %v337 = vshrl.u32 %v336, 7
    %v338 = vsub.s32 3, %v337
    %v339 = vrot.slane %v322, %v338
    %v376 = vunpack.c.l.b16 %v94
    %v377 = vunpack.c.h.b16 %v94
    %v378 = vunpack.c.l.b16 %v95
    %v379 = vunpack.c.h.b16 %v95
    %v380 = vunpack.c.l.b16 %v96
    %v381 = vunpack.c.h.b16 %v96
    %v382 = vunpack.c.l.b16 %v97
    %v383 = vunpack.c.l.b16 %v98
    %v384 = vunpack.c.h.b16 %v98
    %v385 = vunpack.c.l.b16 %v99
    %v386 = vunpack.c.h.b16 %v99
    %v387 = vunpack.c.l.b16 %v100
    %v388 = vunpack.c.h.b16 %v100
    %v389 = vunpack.c.l.b16 %v101
    %v390 = vunpack.c.l.b16 %v102
    %v391 = vunpack.c.h.b16 %v102
    %v392 = vunpack.c.l.b16 %v103
    %v393 = vunpack.c.h.b16 %v103
    %v394 = vunpack.c.l.b16 %v104
    %v395 = vunpack.c.h.b16 %v104
    %v396 = vunpack.c.l.b16 %v105
    %v397 = vunpack.c.l.b16 %v106
    %v398 = vunpack.c.h.b16 %v106
    %v399 = vunpack.c.l.b16 %v107
    %v400 = vunpack.c.h.b16 %v107
    %v401 = vunpack.c.l.b16 %v108
    %v402 = vunpack.c.h.b16 %v108
    %v403 = vunpack.c.l.b16 %v109
    %v404 = vunpack.c.l.b16 %v110
    %v405 = vunpack.c.h.b16 %v110
    %v406 = vunpack.c.l.b16 %v111
    %v407 = vunpack.c.h.b16 %v111
    %v408 = vunpack.c.l.b16 %v112
    %v409 = vunpack.c.h.b16 %v112
    %v410 = vunpack.c.l.b16 %v113
    %v411 = vunpack.c.l.b16 %v114
    %v412 = vunpack.c.h.b16 %v114
    %v413 = vunpack.c.l.b16 %v115
    %v414 = vunpack.c.h.b16 %v115
    %v415 = vunpack.c.l.b16 %v116
    %v416 = vunpack.c.h.b16 %v116
    %v417 = vunpack.c.l.b16 %v117
    %v418 = vunpack.c.l.b16 %v118
    %v419 = vunpack.c.h.b16 %v118
    %v420 = vunpack.c.l.b16 %v119
    %v421 = vunpack.c.h.b16 %v119
    %v422 = vunpack.c.l.b16 %v120
    %v423 = vunpack.c.h.b16 %v120
    %v424 = vunpack.c.l.b16 %v121
    %v425 = vunpack.c.l.b16 %v122
    %v426 = vunpack.c.h.b16 %v122
    %v427 = vunpack.c.l.b16 %v123
    %v428 = vunpack.c.h.b16 %v123
    %v429 = vunpack.c.l.b16 %v124
    %v430 = vunpack.c.h.b16 %v124
    %v431 = vunpack.c.l.b16 %v125
    %v432 = vpack.c.b16 %v383, %v376
    %v433 = vpack.c.b16 %v384, %v377
    %v434 = vpack.c.b16 %v385, %v378
    %v435 = vpack.c.b16 %v386, %v379
    %v436 = vpack.c.b16 %v387, %v380
    %v437 = vpack.c.b16 %v388, %v381
    %v438 = vpack.c.b16 %v389, %v382
    %v439 = vpack.c.b16 %v397, %v390
    %v440 = vpack.c.b16 %v398, %v391
    %v441 = vpack.c.b16 %v399, %v392
    %v442 = vpack.c.b16 %v400, %v393
    %v443 = vpack.c.b16 %v401, %v394
    %v444 = vpack.c.b16 %v402, %v395
    %v445 = vpack.c.b16 %v403, %v396
    %v446 = vpack.c.b16 %v411, %v404
    %v447 = vpack.c.b16 %v412, %v405
    %v448 = vpack.c.b16 %v413, %v406
    %v449 = vpack.c.b16 %v414, %v407
    %v450 = vpack.c.b16 %v415, %v408
    %v451 = vpack.c.b16 %v416, %v409
    %v452 = vpack.c.b16 %v417, %v410
    %v453 = vpack.c.b16 %v425, %v418
    %v454 = vpack.c.b16 %v426, %v419
    %v455 = vpack.c.b16 %v427, %v420
    %v456 = vpack.c.b16 %v428, %v421
    %v457 = vpack.c.b16 %v429, %v422
    %v458 = vpack.c.b16 %v430, %v423
    %v459 = vpack.c.b16 %v431, %v424
    %v680 = vunpack.c.l.b16 %v126
    %v681 = vunpack.c.h.b16 %v126
    %v682 = vunpack.c.l.b16 %v127
    %v683 = vunpack.c.h.b16 %v127
    %v684 = vunpack.c.l.b16 %v128
    %v685 = vunpack.c.h.b16 %v128
    %v686 = vunpack.c.l.b16 %v129
    %v687 = vunpack.c.h.b16 %v129
    %v688 = vunpack.c.l.b16 %v130
    %v689 = vunpack.c.h.b16 %v130
    %v690 = vunpack.c.l.b16 %v131
    %v691 = vunpack.c.h.b16 %v131
    %v692 = vunpack.c.l.b16 %v132
    %v693 = vunpack.c.h.b16 %v132
    %v694 = vunpack.c.l.b16 %v133
    %v695 = vunpack.c.h.b16 %v133
    %v696 = vunpack.c.l.b16 %v134
    %v697 = vunpack.c.h.b16 %v134
    %v698 = vunpack.c.l.b16 %v135
    %v699 = vunpack.c.h.b16 %v135
    %v700 = vunpack.c.l.b16 %v136
    %v701 = vunpack.c.h.b16 %v136
    %v702 = vunpack.c.l.b16 %v137
    %v703 = vunpack.c.h.b16 %v137
    %v704 = vunpack.c.l.b16 %v138
    %v705 = vunpack.c.h.b16 %v138
    %v706 = vunpack.c.l.b16 %v139
    %v707 = vunpack.c.h.b16 %v139
    %v708 = vunpack.c.l.b16 %v140
    %v709 = vunpack.c.h.b16 %v140
    %v710 = vunpack.c.l.b16 %v141
    %v711 = vunpack.c.h.b16 %v141
    %v712 = vunpack.c.l.b16 %v142
    %v713 = vunpack.c.h.b16 %v142
    %v714 = vunpack.c.l.b16 %v143
    %v715 = vunpack.c.h.b16 %v143
    %v716 = vunpack.c.l.b16 %v144
    %v717 = vunpack.c.h.b16 %v144
    %v718 = vunpack.c.l.b16 %v145
    %v719 = vunpack.c.h.b16 %v145
    %v720 = vunpack.c.l.b16 %v146
    %v721 = vunpack.c.h.b16 %v146
    %v722 = vunpack.c.l.b16 %v147
    %v723 = vunpack.c.h.b16 %v147
    %v724 = vunpack.c.l.b16 %v148
    %v725 = vunpack.c.h.b16 %v148
    %v726 = vunpack.c.l.b16 %v149
    %v727 = vunpack.c.h.b16 %v149
    %v728 = vunpack.c.l.b16 %v150
    %v729 = vunpack.c.h.b16 %v150
    %v730 = vunpack.c.l.b16 %v151
    %v731 = vunpack.c.h.b16 %v151
    %v732 = vunpack.c.l.b16 %v152
    %v733 = vunpack.c.h.b16 %v152
    %v734 = vunpack.c.l.b16 %v153
    %v735 = vunpack.c.h.b16 %v153
    %v736 = vunpack.c.l.b16 %v154
    %v737 = vunpack.c.h.b16 %v154
    %v738 = vunpack.c.l.b16 %v155
    %v739 = vunpack.c.h.b16 %v155
    %v740 = vunpack.c.l.b16 %v156
    %v741 = vunpack.c.h.b16 %v156
    %v742 = vunpack.c.l.b16 %v157
    %v743 = vunpack.c.h.b16 %v157
    %v744 = vunpack.c.l.b16 %v158
    %v745 = vunpack.c.h.b16 %v158
    %v746 = vunpack.c.l.b16 %v159
    %v747 = vunpack.c.h.b16 %v159
    %v748 = vunpack.c.l.b16 %v160
    %v749 = vunpack.c.h.b16 %v160
    %v750 = vunpack.c.l.b16 %v161
    %v751 = vunpack.c.h.b16 %v161
    %v752 = vunpack.c.l.b16 %v162
    %v753 = vunpack.c.h.b16 %v162
    %v754 = vunpack.c.l.b16 %v163
    %v755 = vunpack.c.h.b16 %v163
    %v756 = vunpack.c.l.b16 %v164
    %v757 = vunpack.c.h.b16 %v164
    %v758 = vunpack.c.l.b16 %v165
    %v759 = vunpack.c.h.b16 %v165
    %v760 = vunpack.c.l.b16 %v166
    %v761 = vunpack.c.h.b16 %v166
    %v762 = vunpack.c.l.b16 %v167
    %v763 = vunpack.c.h.b16 %v167
    %v764 = vunpack.c.l.b16 %v168
    %v765 = vunpack.c.h.b16 %v168
    %v766 = vunpack.c.l.b16 %v169
    %v767 = vunpack.c.h.b16 %v169
    %v768 = vunpack.c.l.b16 %v170
    %v769 = vunpack.c.h.b16 %v170
    %v770 = vunpack.c.l.b16 %v171
    %v771 = vunpack.c.h.b16 %v171
    %v772 = vunpack.c.l.b16 %v172
    %v773 = vunpack.c.h.b16 %v172
    %v774 = vunpack.c.l.b16 %v173
    %v775 = vunpack.c.h.b16 %v173
    %v776 = vunpack.c.l.b16 %v174
    %v777 = vunpack.c.h.b16 %v174
    %v778 = vunpack.c.l.b16 %v175
    %v779 = vunpack.c.h.b16 %v175
    %v780 = vunpack.c.l.b16 %v176
    %v781 = vunpack.c.h.b16 %v176
    %v782 = vunpack.c.l.b16 %v177
    %v783 = vunpack.c.h.b16 %v177
    %v784 = vunpack.c.l.b16 %v178
    %v785 = vunpack.c.h.b16 %v178
    %v786 = vunpack.c.l.b16 %v179
    %v787 = vunpack.c.h.b16 %v179
    %v788 = vunpack.c.l.b16 %v180
    %v789 = vunpack.c.h.b16 %v180
    %v790 = vunpack.c.l.b16 %v181
    %v791 = vunpack.c.h.b16 %v181
    %v792 = vunpack.c.l.b16 %v182
    %v793 = vunpack.c.h.b16 %v182
    %v794 = vunpack.c.l.b16 %v183
    %v795 = vunpack.c.h.b16 %v183
    %v796 = vunpack.c.l.b16 %v184
    %v797 = vunpack.c.h.b16 %v184
    %v798 = vunpack.c.l.b16 %v185
    %v799 = vunpack.c.h.b16 %v185
    %v800 = vunpack.c.l.b16 %v186
    %v801 = vunpack.c.h.b16 %v186
    %v802 = vunpack.c.l.b16 %v187
    %v803 = vunpack.c.h.b16 %v187
    %v804 = vunpack.c.l.b16 %v188
    %v805 = vunpack.c.h.b16 %v188
    %v806 = vunpack.c.l.b16 %v189
    %v807 = vunpack.c.h.b16 %v189
    %v808 = vunpack.c.l.b16 %v190
    %v809 = vunpack.c.h.b16 %v190
    %v810 = vunpack.c.l.b16 %v191
    %v811 = vunpack.c.h.b16 %v191
    %v812 = vunpack.c.l.b16 %v192
    %v813 = vunpack.c.h.b16 %v192
    %v814 = vunpack.c.l.b16 %v193
    %v815 = vunpack.c.h.b16 %v193
    %v816 = vunpack.c.l.b16 %v194
    %v817 = vunpack.c.h.b16 %v194
    %v818 = vunpack.c.l.b16 %v195
    %v819 = vunpack.c.h.b16 %v195
    %v820 = vunpack.c.l.b16 %v196
    %v821 = vunpack.c.h.b16 %v196
    %v822 = vunpack.c.l.b16 %v197
    %v823 = vunpack.c.h.b16 %v197
    %v824 = vunpack.c.l.b16 %v198
    %v825 = vunpack.c.h.b16 %v198
    %v826 = vunpack.c.l.b16 %v199
    %v827 = vunpack.c.h.b16 %v199
    %v828 = vunpack.c.l.b16 %v200
    %v829 = vunpack.c.h.b16 %v200
    %v830 = vunpack.c.l.b16 %v201
    %v831 = vunpack.c.h.b16 %v201
    %v832 = vunpack.c.l.b16 %v202
    %v833 = vunpack.c.h.b16 %v202
    %v834 = vunpack.c.l.b16 %v203
    %v835 = vunpack.c.h.b16 %v203
    %v836 = vunpack.c.l.b16 %v204
    %v837 = vunpack.c.h.b16 %v204
    %v838 = vunpack.c.l.b16 %v205
    %v839 = vunpack.c.h.b16 %v205
    %v840 = vunpack.c.l.b16 %v206
    %v841 = vunpack.c.h.b16 %v206
    %v842 = vunpack.c.l.b16 %v207
    %v843 = vunpack.c.h.b16 %v207
    %v844 = vunpack.c.l.b16 %v208
    %v845 = vunpack.c.h.b16 %v208
    %v846 = vunpack.c.l.b16 %v209
    %v847 = vunpack.c.h.b16 %v209
    %v848 = vunpack.c.l.b16 %v210
    %v849 = vunpack.c.h.b16 %v210
    %v850 = vunpack.c.l.b16 %v211
    %v851 = vunpack.c.h.b16 %v211
    %v852 = vunpack.c.l.b16 %v212
    %v853 = vunpack.c.h.b16 %v212
    %v854 = vunpack.c.l.b16 %v213
    %v855 = vunpack.c.h.b16 %v213
    %v856 = vunpack.c.l.b16 %v214
    %v857 = vunpack.c.h.b16 %v214
    %v858 = vunpack.c.l.b16 %v215
    %v859 = vunpack.c.h.b16 %v215
    %v860 = vunpack.c.l.b16 %v216
    %v861 = vunpack.c.h.b16 %v216
    %v862 = vunpack.c.l.b16 %v217
    %v863 = vunpack.c.h.b16 %v217
    %v864 = vunpack.c.l.b16 %v218
    %v865 = vunpack.c.h.b16 %v218
    %v866 = vunpack.c.l.b16 %v219
    %v867 = vunpack.c.h.b16 %v219
    %v868 = vunpack.c.l.b16 %v220
    %v869 = vunpack.c.h.b16 %v220
    %v870 = vunpack.c.l.b16 %v221
    %v871 = vunpack.c.h.b16 %v221
    %v872 = vunpack.c.l.b16 %v222
    %v873 = vunpack.c.h.b16 %v222
    %v874 = vunpack.c.l.b16 %v223
    %v875 = vunpack.c.h.b16 %v223
    %v876 = vunpack.c.l.b16 %v224
    %v877 = vunpack.c.h.b16 %v224
    %v878 = vunpack.c.l.b16 %v225
    %v879 = vunpack.c.h.b16 %v225
    %v880 = vunpack.c.l.b16 %v226
    %v881 = vunpack.c.h.b16 %v226
    %v882 = vunpack.c.l.b16 %v227
    %v883 = vunpack.c.h.b16 %v227
    %v884 = vunpack.c.l.b16 %v228
    %v885 = vunpack.c.h.b16 %v228
    %v886 = vunpack.c.l.b16 %v229
    %v887 = vunpack.c.h.b16 %v229
    %v888 = vunpack.c.l.b16 %v230
    %v889 = vunpack.c.h.b16 %v230
    %v890 = vunpack.c.l.b16 %v231
    %v891 = vunpack.c.h.b16 %v231
    %v892 = vunpack.c.l.b16 %v232
    %v893 = vunpack.c.h.b16 %v232
    %v894 = vunpack.c.l.b16 %v233
    %v895 = vunpack.c.h.b16 %v233
    %v896 = vunpack.c.l.b16 %v234
    %v897 = vunpack.c.h.b16 %v234
    %v898 = vunpack.c.l.b16 %v235
    %v899 = vunpack.c.h.b16 %v235
    %v900 = vunpack.c.l.b16 %v236
    %v901 = vunpack.c.h.b16 %v236
    %v902 = vunpack.c.l.b16 %v237
    %v903 = vunpack.c.h.b16 %v237
    %v904 = vunpack.c.l.b16 %v238
    %v905 = vunpack.c.h.b16 %v238
    %v906 = vunpack.c.l.b16 %v239
    %v907 = vunpack.c.h.b16 %v239
    %v908 = vunpack.c.l.b16 %v240
    %v909 = vunpack.c.h.b16 %v240
    %v910 = vunpack.c.l.b16 %v241
    %v911 = vunpack.c.h.b16 %v241
    %v912 = vunpack.c.l.b16 %v242
    %v913 = vunpack.c.h.b16 %v242
    %v914 = vunpack.c.l.b16 %v243
    %v915 = vunpack.c.h.b16 %v243
    %v916 = vunpack.c.l.b16 %v244
    %v917 = vunpack.c.h.b16 %v244
    %v918 = vunpack.c.l.b16 %v245
    %v919 = vunpack.c.h.b16 %v245
    %v920 = vunpack.c.l.b16 %v246
    %v921 = vunpack.c.h.b16 %v246
    %v922 = vunpack.c.l.b16 %v247
    %v923 = vunpack.c.h.b16 %v247
    %v924 = vunpack.c.l.b16 %v248
    %v925 = vunpack.c.h.b16 %v248
    %v926 = vunpack.c.l.b16 %v249
    %v927 = vunpack.c.h.b16 %v249
    %v928 = vunpack.c.l.b16 %v250
    %v929 = vunpack.c.h.b16 %v250
    %v930 = vunpack.c.l.b16 %v251
    %v931 = vunpack.c.h.b16 %v251
    %v932 = vunpack.c.l.b16 %v252
    %v933 = vunpack.c.h.b16 %v252
    %v934 = vunpack.c.l.b16 %v253
    %v935 = vunpack.c.h.b16 %v253
    %v936 = vunpack.c.l.b16 %v254
    %v937 = vunpack.c.h.b16 %v254
    %v938 = vunpack.c.l.b16 %v255
    %v939 = vunpack.c.h.b16 %v255
    %v940 = vunpack.c.l.b16 %v256
    %v941 = vunpack.c.h.b16 %v256
    %v942 = vunpack.c.l.b16 %v257
    %v943 = vunpack.c.h.b16 %v257
    %v944 = vunpack.c.l.b16 %v258
    %v945 = vunpack.c.h.b16 %v258
    %v946 = vunpack.c.l.b16 %v259
    %v947 = vunpack.c.h.b16 %v259
    %v948 = vunpack.c.l.b16 %v260
    %v949 = vunpack.c.h.b16 %v260
    %v950 = vunpack.c.l.b16 %v261
    %v951 = vunpack.c.h.b16 %v261
    %v952 = vunpack.c.l.b16 %v262
    %v953 = vunpack.c.h.b16 %v262
    %v954 = vunpack.c.l.b16 %v263
    %v955 = vunpack.c.h.b16 %v263
    %v956 = vunpack.c.l.b16 %v264
    %v957 = vunpack.c.h.b16 %v264
    %v958 = vunpack.c.l.b16 %v265
    %v959 = vunpack.c.h.b16 %v265
    %v960 = vunpack.c.l.b16 %v266
    %v961 = vunpack.c.h.b16 %v266
    %v962 = vunpack.c.l.b16 %v267
    %v963 = vunpack.c.h.b16 %v267
    %v964 = vunpack.c.l.b16 %v268
    %v965 = vunpack.c.h.b16 %v268
    %v966 = vunpack.c.l.b16 %v269
    %v967 = vunpack.c.h.b16 %v269
    %v968 = vunpack.c.l.b16 %v270
    %v969 = vunpack.c.h.b16 %v270
    %v970 = vunpack.c.l.b16 %v271
    %v971 = vunpack.c.h.b16 %v271
    %v972 = vunpack.c.l.b16 %v272
    %v973 = vunpack.c.h.b16 %v272
    %v974 = vunpack.c.l.b16 %v273
    %v975 = vunpack.c.h.b16 %v273
    %v976 = vunpack.c.l.b16 %v274
    %v977 = vunpack.c.h.b16 %v274
    %v978 = vunpack.c.l.b16 %v275
    %v979 = vunpack.c.h.b16 %v275
    %v980 = vunpack.c.l.b16 %v276
    %v981 = vunpack.c.h.b16 %v276
    %v982 = vunpack.c.l.b16 %v277
    %v983 = vunpack.c.h.b16 %v277
    %v984 = vunpack.c.l.b16 %v278
    %v985 = vunpack.c.h.b16 %v278
    %v986 = vunpack.c.l.b16 %v279
    %v987 = vunpack.c.h.b16 %v279
    %v988 = vunpack.c.l.b16 %v280
    %v989 = vunpack.c.h.b16 %v280
    %v990 = vunpack.c.l.b16 %v281
    %v991 = vunpack.c.h.b16 %v281
    %v992 = vunpack.c.l.b16 %v282
    %v993 = vunpack.c.h.b16 %v282
    %v994 = vunpack.c.l.b16 %v283
    %v995 = vunpack.c.h.b16 %v283
    %v996 = vunpack.c.l.b16 %v284
    %v997 = vunpack.c.h.b16 %v284
    %v998 = vunpack.c.l.b16 %v285
    %v999 = vunpack.c.h.b16 %v285
    %v1000 = vunpack.c.l.b16 %v286
    %v1001 = vunpack.c.h.b16 %v286
    %v1002 = vunpack.c.l.b16 %v287
    %v1003 = vunpack.c.h.b16 %v287
    %v1004 = vunpack.c.l.b16 %v288
    %v1005 = vunpack.c.h.b16 %v288
    %v1006 = vunpack.c.l.b16 %v289
    %v1007 = vunpack.c.h.b16 %v289
    %v1008 = vunpack.c.l.b16 %v290
    %v1009 = vunpack.c.h.b16 %v290
    %v1010 = vunpack.c.l.b16 %v291
    %v1011 = vunpack.c.h.b16 %v291
    %v1012 = vunpack.c.l.b16 %v292
    %v1013 = vunpack.c.h.b16 %v292
    %v1014 = vunpack.c.l.b16 %v293
    %v1015 = vunpack.c.h.b16 %v293
    %v1016 = vunpack.c.l.b16 %v294
    %v1017 = vunpack.c.h.b16 %v294
    %v1018 = vunpack.c.l.b16 %v295
    %v1019 = vunpack.c.h.b16 %v295
    %v1020 = vunpack.c.l.b16 %v296
    %v1021 = vunpack.c.h.b16 %v296
    %v1022 = vunpack.c.l.b16 %v297
    %v1023 = vunpack.c.h.b16 %v297
    %v1024 = vunpack.c.l.b16 %v298
    %v1025 = vunpack.c.h.b16 %v298
    %v1026 = vunpack.c.l.b16 %v299
    %v1027 = vunpack.c.h.b16 %v299
    %v1028 = vunpack.c.l.b16 %v300
    %v1029 = vunpack.c.h.b16 %v300
    %v1030 = vunpack.c.l.b16 %v301
    %v1031 = vunpack.c.h.b16 %v301
    %v1032 = vunpack.c.l.b16 %v302
    %v1033 = vunpack.c.h.b16 %v302
    %v1034 = vunpack.c.l.b16 %v303
    %v1035 = vunpack.c.h.b16 %v303
    %v1036 = vunpack.c.l.b16 %v304
    %v1037 = vunpack.c.h.b16 %v304
    %v1038 = vunpack.c.l.b16 %v305
    %v1039 = vunpack.c.h.b16 %v305
    %v1040 = vunpack.c.l.b16 %v306
    %v1041 = vunpack.c.h.b16 %v306
    %v1042 = vunpack.c.l.b16 %v307
    %v1043 = vunpack.c.h.b16 %v307
    %v1044 = vunpack.c.l.b16 %v308
    %v1045 = vunpack.c.h.b16 %v308
    %v1046 = vunpack.c.l.b16 %v309
    %v1047 = vunpack.c.h.b16 %v309
    %v1048 = vunpack.c.l.b16 %v310
    %v1049 = vunpack.c.h.b16 %v310
    %v1050 = vunpack.c.l.b16 %v311
    %v1051 = vunpack.c.h.b16 %v311
    %v1052 = vunpack.c.l.b16 %v312
    %v1053 = vunpack.c.h.b16 %v312
    %v1054 = vunpack.c.l.b16 %v313
    %v1055 = vunpack.c.h.b16 %v313
    %v1056 = vunpack.c.l.b16 %v314
    %v1057 = vunpack.c.h.b16 %v314
    %v1058 = vunpack.c.l.b16 %v315
    %v1059 = vunpack.c.h.b16 %v315
    %v1060 = vunpack.c.l.b16 %v316
    %v1061 = vunpack.c.h.b16 %v316
    %v1062 = vunpack.c.l.b16 %v317
    %v1063 = vunpack.c.h.b16 %v317
    %v1064 = vunpack.c.l.b16 %v318
    %v1065 = vunpack.c.h.b16 %v318
    %v1066 = vunpack.c.l.b16 %v319
    %v1067 = vunpack.c.h.b16 %v319
    %v1068 = vunpack.c.l.b16 %v320
    %v1069 = vunpack.c.h.b16 %v320
    %v1070 = vunpack.c.l.b16 %v321
    %v1071 = vunpack.c.h.b16 %v321
    %v1072 = vpack.c.b16 %v684, %v680
    %v1073 = vpack.c.b16 %v685, %v681
    %v1074 = vpack.c.b16 %v686, %v682
    %v1075 = vpack.c.b16 %v687, %v683
    %v1076 = vpack.c.b16 %v692, %v688
    %v1077 = vpack.c.b16 %v693, %v689
    %v1078 = vpack.c.b16 %v694, %v690
    %v1079 = vpack.c.b16 %v695, %v691
    %v1080 = vpack.c.b16 %v700, %v696
    %v1081 = vpack.c.b16 %v701, %v697
    %v1082 = vpack.c.b16 %v702, %v698
    %v1083 = vpack.c.b16 %v703, %v699
    %v1084 = vpack.c.b16 %v708, %v704
    %v1085 = vpack.c.b16 %v709, %v705
    %v1086 = vpack.c.b16 %v710, %v706
    %v1087 = vpack.c.b16 %v711, %v707
    %v1088 = vpack.c.b16 %v716, %v712
    %v1089 = vpack.c.b16 %v717, %v713
    %v1090 = vpack.c.b16 %v718, %v714
    %v1091 = vpack.c.b16 %v719, %v715
    %v1092 = vpack.c.b16 %v724, %v720
    %v1093 = vpack.c.b16 %v725, %v721
    %v1094 = vpack.c.b16 %v726, %v722
    %v1095 = vpack.c.b16 %v727, %v723
    %v1096 = vpack.c.b16 %v732, %v728
    %v1097 = vpack.c.b16 %v733, %v729
    %v1098 = vpack.c.b16 %v734, %v730
    %v1099 = vpack.c.b16 %v735, %v731
    %v1100 = vpack.c.b16 %v740, %v736
    %v1101 = vpack.c.b16 %v741, %v737
    %v1102 = vpack.c.b16 %v742, %v738
    %v1103 = vpack.c.b16 %v743, %v739
    %v1104 = vpack.c.b16 %v748, %v744
    %v1105 = vpack.c.b16 %v749, %v745
    %v1106 = vpack.c.b16 %v750, %v746
    %v1107 = vpack.c.b16 %v751, %v747
    %v1108 = vpack.c.b16 %v756, %v752
    %v1109 = vpack.c.b16 %v757, %v753
    %v1110 = vpack.c.b16 %v758, %v754
    %v1111 = vpack.c.b16 %v759, %v755
    %v1112 = vpack.c.b16 %v764, %v760
    %v1113 = vpack.c.b16 %v765, %v761
    %v1114 = vpack.c.b16 %v766, %v762
    %v1115 = vpack.c.b16 %v767, %v763
    %v1116 = vpack.c.b16 %v772, %v768
    %v1117 = vpack.c.b16 %v773, %v769
    %v1118 = vpack.c.b16 %v774, %v770
    %v1119 = vpack.c.b16 %v775, %v771
    %v1120 = vpack.c.b16 %v780, %v776
    %v1121 = vpack.c.b16 %v781, %v777
    %v1122 = vpack.c.b16 %v782, %v778
    %v1123 = vpack.c.b16 %v783, %v779
    %v1124 = vpack.c.b16 %v788, %v784
    %v1125 = vpack.c.b16 %v789, %v785
    %v1126 = vpack.c.b16 %v790, %v786
    %v1127 = vpack.c.b16 %v791, %v787
    %v1128 = vpack.c.b16 %v796, %v792
    %v1129 = vpack.c.b16 %v797, %v793
    %v1130 = vpack.c.b16 %v798, %v794
    %v1131 = vpack.c.b16 %v799, %v795
    %v1132 = vpack.c.b16 %v804, %v800
    %v1133 = vpack.c.b16 %v805, %v801
    %v1134 = vpack.c.b16 %v806, %v802
    %v1135 = vpack.c.b16 %v807, %v803
    %v1136 = vpack.c.b16 %v812, %v808
    %v1137 = vpack.c.b16 %v813, %v809
    %v1138 = vpack.c.b16 %v814, %v810
    %v1139 = vpack.c.b16 %v815, %v811
    %v1140 = vpack.c.b16 %v820, %v816
    %v1141 = vpack.c.b16 %v821, %v817
    %v1142 = vpack.c.b16 %v822, %v818
    %v1143 = vpack.c.b16 %v823, %v819
    %v1144 = vpack.c.b16 %v828, %v824
    %v1145 = vpack.c.b16 %v829, %v825
    %v1146 = vpack.c.b16 %v830, %v826
    %v1147 = vpack.c.b16 %v831, %v827
    %v1148 = vpack.c.b16 %v836, %v832
    %v1149 = vpack.c.b16 %v837, %v833
    %v1150 = vpack.c.b16 %v838, %v834
    %v1151 = vpack.c.b16 %v839, %v835
    %v1152 = vpack.c.b16 %v844, %v840
    %v1153 = vpack.c.b16 %v845, %v841
    %v1154 = vpack.c.b16 %v846, %v842
    %v1155 = vpack.c.b16 %v847, %v843
    %v1156 = vpack.c.b16 %v852, %v848
    %v1157 = vpack.c.b16 %v853, %v849
    %v1158 = vpack.c.b16 %v854, %v850
    %v1159 = vpack.c.b16 %v855, %v851
    %v1160 = vpack.c.b16 %v860, %v856
    %v1161 = vpack.c.b16 %v861, %v857
    %v1162 = vpack.c.b16 %v862, %v858
    %v1163 = vpack.c.b16 %v863, %v859
    %v1164 = vpack.c.b16 %v868, %v864
    %v1165 = vpack.c.b16 %v869, %v865
    %v1166 = vpack.c.b16 %v870, %v866
    %v1167 = vpack.c.b16 %v871, %v867
    %v1168 = vpack.c.b16 %v876, %v872
    %v1169 = vpack.c.b16 %v877, %v873
    %v1170 = vpack.c.b16 %v878, %v874
    %v1171 = vpack.c.b16 %v879, %v875
    %v1172 = vpack.c.b16 %v884, %v880
    %v1173 = vpack.c.b16 %v885, %v881
    %v1174 = vpack.c.b16 %v886, %v882
    %v1175 = vpack.c.b16 %v887, %v883
    %v1176 = vpack.c.b16 %v892, %v888
    %v1177 = vpack.c.b16 %v893, %v889
    %v1178 = vpack.c.b16 %v894, %v890
    %v1179 = vpack.c.b16 %v895, %v891
    %v1180 = vpack.c.b16 %v900, %v896
    %v1181 = vpack.c.b16 %v901, %v897
    %v1182 = vpack.c.b16 %v902, %v898
    %v1183 = vpack.c.b16 %v903, %v899
    %v1184 = vpack.c.b16 %v908, %v904
    %v1185 = vpack.c.b16 %v909, %v905
    %v1186 = vpack.c.b16 %v910, %v906
    %v1187 = vpack.c.b16 %v911, %v907
    %v1188 = vpack.c.b16 %v916, %v912
    %v1189 = vpack.c.b16 %v917, %v913
    %v1190 = vpack.c.b16 %v918, %v914
    %v1191 = vpack.c.b16 %v919, %v915
    %v1192 = vpack.c.b16 %v924, %v920
    %v1193 = vpack.c.b16 %v925, %v921
    %v1194 = vpack.c.b16 %v926, %v922
    %v1195 = vpack.c.b16 %v927, %v923
    %v1196 = vpack.c.b16 %v932, %v928
    %v1197 = vpack.c.b16 %v933, %v929
    %v1198 = vpack.c.b16 %v934, %v930
    %v1199 = vpack.c.b16 %v935, %v931
    %v1200 = vpack.c.b16 %v940, %v936
    %v1201 = vpack.c.b16 %v941, %v937
    %v1202 = vpack.c.b16 %v942, %v938
    %v1203 = vpack.c.b16 %v943, %v939
    %v1204 = vpack.c.b16 %v948, %v944
    %v1205 = vpack.c.b16 %v949, %v945
    %v1206 = vpack.c.b16 %v950, %v946
    %v1207 = vpack.c.b16 %v951, %v947
    %v1208 = vpack.c.b16 %v956, %v952
    %v1209 = vpack.c.b16 %v957, %v953
    %v1210 = vpack.c.b16 %v958, %v954
    %v1211 = vpack.c.b16 %v959, %v955
    %v1212 = vpack.c.b16 %v964, %v960
    %v1213 = vpack.c.b16 %v965, %v961
    %v1214 = vpack.c.b16 %v966, %v962
    %v1215 = vpack.c.b16 %v967, %v963
    %v1216 = vpack.c.b16 %v972, %v968
    %v1217 = vpack.c.b16 %v973, %v969
    %v1218 = vpack.c.b16 %v974, %v970
    %v1219 = vpack.c.b16 %v975, %v971
    %v1220 = vpack.c.b16 %v980, %v976
    %v1221 = vpack.c.b16 %v981, %v977
    %v1222 = vpack.c.b16 %v982, %v978
    %v1223 = vpack.c.b16 %v983, %v979
    %v1224 = vpack.c.b16 %v988, %v984
    %v1225 = vpack.c.b16 %v989, %v985
    %v1226 = vpack.c.b16 %v990, %v986
    %v1227 = vpack.c.b16 %v991, %v987
    %v1228 = vpack.c.b16 %v996, %v992
    %v1229 = vpack.c.b16 %v997, %v993
    %v1230 = vpack.c.b16 %v998, %v994
    %v1231 = vpack.c.b16 %v999, %v995
    %v1232 = vpack.c.b16 %v1004, %v1000
    %v1233 = vpack.c.b16 %v1005, %v1001
    %v1234 = vpack.c.b16 %v1006, %v1002
    %v1235 = vpack.c.b16 %v1007, %v1003
    %v1236 = vpack.c.b16 %v1012, %v1008
    %v1237 = vpack.c.b16 %v1013, %v1009
    %v1238 = vpack.c.b16 %v1014, %v1010
    %v1239 = vpack.c.b16 %v1015, %v1011
    %v1240 = vpack.c.b16 %v1020, %v1016
    %v1241 = vpack.c.b16 %v1021, %v1017
    %v1242 = vpack.c.b16 %v1022, %v1018
    %v1243 = vpack.c.b16 %v1023, %v1019
    %v1244 = vpack.c.b16 %v1028, %v1024
    %v1245 = vpack.c.b16 %v1029, %v1025
    %v1246 = vpack.c.b16 %v1030, %v1026
    %v1247 = vpack.c.b16 %v1031, %v1027
    %v1248 = vpack.c.b16 %v1036, %v1032
    %v1249 = vpack.c.b16 %v1037, %v1033
    %v1250 = vpack.c.b16 %v1038, %v1034
    %v1251 = vpack.c.b16 %v1039, %v1035
    %v1252 = vpack.c.b16 %v1044, %v1040
    %v1253 = vpack.c.b16 %v1045, %v1041
    %v1254 = vpack.c.b16 %v1046, %v1042
    %v1255 = vpack.c.b16 %v1047, %v1043
    %v1256 = vpack.c.b16 %v1052, %v1048
    %v1257 = vpack.c.b16 %v1053, %v1049
    %v1258 = vpack.c.b16 %v1054, %v1050
    %v1259 = vpack.c.b16 %v1055, %v1051
    %v1260 = vpack.c.b16 %v1060, %v1056
    %v1261 = vpack.c.b16 %v1061, %v1057
    %v1262 = vpack.c.b16 %v1062, %v1058
    %v1263 = vpack.c.b16 %v1063, %v1059
    %v1264 = vpack.c.b16 %v1068, %v1064
    %v1265 = vpack.c.b16 %v1069, %v1065
    %v1266 = vpack.c.b16 %v1070, %v1066
    %v1267 = vpack.c.b16 %v1071, %v1067
    %vm1464 = vcmask 130048
    %v1466 = vsel %vm1464, %v438, 0
    %v1469 = vsel %vm1464, %v445, 0
    %v1472 = vsel %vm1464, %v452, 0
    %v1475 = vsel %vm1464, %v459, 0
    %1477 = vmatprep.subr.bf16.mxu0 %v1101
    %1478 = vmatpush1.bf16.msra.mxu0 %v1100
    %1479 = vmatprep.subr.bf16.mxu0 %v1097
    %1480 = vmatpush1.bf16.msra.mxu0 %v1096
    %1481 = vmatprep.subr.bf16.mxu0 %v1093
    %1482 = vmatpush1.bf16.msra.mxu0 %v1092
    %1483 = vmatprep.subr.bf16.mxu0 %v1089
    %1484 = vmatpush1.bf16.msra.mxu0 %v1088
    %1485 = vmatprep.subr.bf16.mxu0 %v1085
    %1486 = vmatpush1.bf16.msra.mxu0 %v1084
    %1487 = vmatprep.subr.bf16.mxu0 %v1081
    %1488 = vmatpush1.bf16.msra.mxu0 %v1080
    %1489 = vmatprep.subr.bf16.mxu0 %v1077
    %1490 = vmatpush1.bf16.msra.mxu0 %v1076
    %1491 = vmatprep.subr.bf16.mxu0 %v1073
    %1492 = vmatpush1.bf16.msra.mxu0 %v1072
    %1493 = vmatprep.subr.bf16.mxu0 %v1133
    %1494 = vmatpush2.bf16.msra.mxu0 %v1132
    %1495 = vmatprep.subr.bf16.mxu0 %v1129
    %1496 = vmatpush2.bf16.msra.mxu0 %v1128
    %1497 = vmatprep.subr.bf16.mxu0 %v1125
    %1498 = vmatpush2.bf16.msra.mxu0 %v1124
    %1499 = vmatprep.subr.bf16.mxu0 %v1121
    %1500 = vmatpush2.bf16.msra.mxu0 %v1120
    %1501 = vmatprep.subr.bf16.mxu0 %v1117
    %1502 = vmatpush2.bf16.msra.mxu0 %v1116
    %1503 = vmatprep.subr.bf16.mxu0 %v1113
    %1504 = vmatpush2.bf16.msra.mxu0 %v1112
    %1505 = vmatprep.subr.bf16.mxu0 %v1109
    %1506 = vmatpush2.bf16.msra.mxu0 %v1108
    %1507 = vmatprep.subr.bf16.mxu0 %v1105
    %1508 = vmatpush2.bf16.msra.mxu0 %v1104
    %1509 = vmatprep.mubr.bf16.mxu0 %v433
    %1510 = vmatmul.mubr.bf16.gmra.mxu0 %v432
    %v1511 = vpop.f32.mrf.mxu0
    %v1512 = vadd.f32 %v327, %v1511
    %v1513 = vpop.f32.mrf.mxu0
    %v1514 = vadd.f32 %v331, %v1513
    %v1515 = vpop.f32.mrf.mxu0
    %v1516 = vadd.f32 %v327, %v1515
    %v1517 = vpop.f32.mrf.mxu0
    %v1518 = vadd.f32 %v331, %v1517
    %1519 = vmatprep.mubr.bf16.mxu0 %v440
    %1520 = vmatmul.mubr.bf16.gmra.mxu0 %v439
    %v1521 = vpop.f32.mrf.mxu0
    %v1522 = vadd.f32 %v327, %v1521
    %v1523 = vpop.f32.mrf.mxu0
    %v1524 = vadd.f32 %v331, %v1523
    %v1525 = vpop.f32.mrf.mxu0
    %v1526 = vadd.f32 %v327, %v1525
    %v1527 = vpop.f32.mrf.mxu0
    %v1528 = vadd.f32 %v331, %v1527
    %1529 = vmatprep.mubr.bf16.mxu0 %v447
    %1530 = vmatmul.mubr.bf16.gmra.mxu0 %v446
    %v1531 = vpop.f32.mrf.mxu0
    %v1532 = vadd.f32 %v327, %v1531
    %v1533 = vpop.f32.mrf.mxu0
    %v1534 = vadd.f32 %v331, %v1533
    %v1535 = vpop.f32.mrf.mxu0
    %v1536 = vadd.f32 %v327, %v1535
    %v1537 = vpop.f32.mrf.mxu0
    %v1538 = vadd.f32 %v331, %v1537
    %1539 = vmatprep.mubr.bf16.mxu0 %v454
    %1540 = vmatmul.mubr.bf16.gmra.mxu0 %v453
    %v1541 = vpop.f32.mrf.mxu0
    %v1542 = vadd.f32 %v327, %v1541
    %v1543 = vpop.f32.mrf.mxu0
    %v1544 = vadd.f32 %v331, %v1543
    %v1545 = vpop.f32.mrf.mxu0
    %v1546 = vadd.f32 %v327, %v1545
    %v1547 = vpop.f32.mrf.mxu0
    %v1548 = vadd.f32 %v331, %v1547
    %1549 = vdwg.mxu0
    %1550 = vmatprep.subr.bf16.mxu0 %v1165
    %1551 = vmatpush1.bf16.msra.mxu0 %v1164
    %1552 = vmatprep.subr.bf16.mxu0 %v1161
    %1553 = vmatpush1.bf16.msra.mxu0 %v1160
    %1554 = vmatprep.subr.bf16.mxu0 %v1157
    %1555 = vmatpush1.bf16.msra.mxu0 %v1156
    %1556 = vmatprep.subr.bf16.mxu0 %v1153
    %1557 = vmatpush1.bf16.msra.mxu0 %v1152
    %1558 = vmatprep.subr.bf16.mxu0 %v1149
    %1559 = vmatpush1.bf16.msra.mxu0 %v1148
    %1560 = vmatprep.subr.bf16.mxu0 %v1145
    %1561 = vmatpush1.bf16.msra.mxu0 %v1144
    %1562 = vmatprep.subr.bf16.mxu0 %v1141
    %1563 = vmatpush1.bf16.msra.mxu0 %v1140
    %1564 = vmatprep.subr.bf16.mxu0 %v1137
    %1565 = vmatpush1.bf16.msra.mxu0 %v1136
    %1566 = vmatprep.subr.bf16.mxu0 %v1197
    %1567 = vmatpush2.bf16.msra.mxu0 %v1196
    %1568 = vmatprep.subr.bf16.mxu0 %v1193
    %1569 = vmatpush2.bf16.msra.mxu0 %v1192
    %1570 = vmatprep.subr.bf16.mxu0 %v1189
    %1571 = vmatpush2.bf16.msra.mxu0 %v1188
    %1572 = vmatprep.subr.bf16.mxu0 %v1185
    %1573 = vmatpush2.bf16.msra.mxu0 %v1184
    %1574 = vmatprep.subr.bf16.mxu0 %v1181
    %1575 = vmatpush2.bf16.msra.mxu0 %v1180
    %1576 = vmatprep.subr.bf16.mxu0 %v1177
    %1577 = vmatpush2.bf16.msra.mxu0 %v1176
    %1578 = vmatprep.subr.bf16.mxu0 %v1173
    %1579 = vmatpush2.bf16.msra.mxu0 %v1172
    %1580 = vmatprep.subr.bf16.mxu0 %v1169
    %1581 = vmatpush2.bf16.msra.mxu0 %v1168
    %1582 = vmatprep.mubr.bf16.mxu0 %v435
    %1583 = vmatmul.mubr.bf16.gmra.mxu0 %v434
    %v1584 = vpop.f32.mrf.mxu0
    %v1585 = vadd.f32 %v1512, %v1584
    %v1586 = vpop.f32.mrf.mxu0
    %v1587 = vadd.f32 %v1514, %v1586
    %v1588 = vpop.f32.mrf.mxu0
    %v1589 = vadd.f32 %v1516, %v1588
    %v1590 = vpop.f32.mrf.mxu0
    %v1591 = vadd.f32 %v1518, %v1590
    %1592 = vmatprep.mubr.bf16.mxu0 %v442
    %1593 = vmatmul.mubr.bf16.gmra.mxu0 %v441
    %v1594 = vpop.f32.mrf.mxu0
    %v1595 = vadd.f32 %v1522, %v1594
    %v1596 = vpop.f32.mrf.mxu0
    %v1597 = vadd.f32 %v1524, %v1596
    %v1598 = vpop.f32.mrf.mxu0
    %v1599 = vadd.f32 %v1526, %v1598
    %v1600 = vpop.f32.mrf.mxu0
    %v1601 = vadd.f32 %v1528, %v1600
    %1602 = vmatprep.mubr.bf16.mxu0 %v449
    %1603 = vmatmul.mubr.bf16.gmra.mxu0 %v448
    %v1604 = vpop.f32.mrf.mxu0
    %v1605 = vadd.f32 %v1532, %v1604
    %v1606 = vpop.f32.mrf.mxu0
    %v1607 = vadd.f32 %v1534, %v1606
    %v1608 = vpop.f32.mrf.mxu0
    %v1609 = vadd.f32 %v1536, %v1608
    %v1610 = vpop.f32.mrf.mxu0
    %v1611 = vadd.f32 %v1538, %v1610
    %1612 = vmatprep.mubr.bf16.mxu0 %v456
    %1613 = vmatmul.mubr.bf16.gmra.mxu0 %v455
    %v1614 = vpop.f32.mrf.mxu0
    %v1615 = vadd.f32 %v1542, %v1614
    %v1616 = vpop.f32.mrf.mxu0
    %v1617 = vadd.f32 %v1544, %v1616
    %v1618 = vpop.f32.mrf.mxu0
    %v1619 = vadd.f32 %v1546, %v1618
    %v1620 = vpop.f32.mrf.mxu0
    %v1621 = vadd.f32 %v1548, %v1620
    %1622 = vdwg.mxu0
    %1623 = vmatprep.subr.bf16.mxu0 %v1229
    %1624 = vmatpush1.bf16.msra.mxu0 %v1228
    %1625 = vmatprep.subr.bf16.mxu0 %v1225
    %1626 = vmatpush1.bf16.msra.mxu0 %v1224
    %1627 = vmatprep.subr.bf16.mxu0 %v1221
    %1628 = vmatpush1.bf16.msra.mxu0 %v1220
    %1629 = vmatprep.subr.bf16.mxu0 %v1217
    %1630 = vmatpush1.bf16.msra.mxu0 %v1216
    %1631 = vmatprep.subr.bf16.mxu0 %v1213
    %1632 = vmatpush1.bf16.msra.mxu0 %v1212
    %1633 = vmatprep.subr.bf16.mxu0 %v1209
    %1634 = vmatpush1.bf16.msra.mxu0 %v1208
    %1635 = vmatprep.subr.bf16.mxu0 %v1205
    %1636 = vmatpush1.bf16.msra.mxu0 %v1204
    %1637 = vmatprep.subr.bf16.mxu0 %v1201
    %1638 = vmatpush1.bf16.msra.mxu0 %v1200
    %1639 = vmatprep.subr.bf16.mxu0 %v1261
    %1640 = vmatpush2.bf16.msra.mxu0 %v1260
    %1641 = vmatprep.subr.bf16.mxu0 %v1257
    %1642 = vmatpush2.bf16.msra.mxu0 %v1256
    %1643 = vmatprep.subr.bf16.mxu0 %v1253
    %1644 = vmatpush2.bf16.msra.mxu0 %v1252
    %1645 = vmatprep.subr.bf16.mxu0 %v1249
    %1646 = vmatpush2.bf16.msra.mxu0 %v1248
    %1647 = vmatprep.subr.bf16.mxu0 %v1245
    %1648 = vmatpush2.bf16.msra.mxu0 %v1244
    %1649 = vmatprep.subr.bf16.mxu0 %v1241
    %1650 = vmatpush2.bf16.msra.mxu0 %v1240
    %1651 = vmatprep.subr.bf16.mxu0 %v1237
    %1652 = vmatpush2.bf16.msra.mxu0 %v1236
    %1653 = vmatprep.subr.bf16.mxu0 %v1233
    %1654 = vmatpush2.bf16.msra.mxu0 %v1232
    %1655 = vmatprep.mubr.bf16.mxu0 %v437
    %1656 = vmatmul.mubr.bf16.gmra.mxu0 %v436
    %v1657 = vpop.f32.mrf.mxu0
    %v1658 = vadd.f32 %v1585, %v1657
    %v1659 = vpop.f32.mrf.mxu0
    %v1660 = vadd.f32 %v1587, %v1659
    %v1661 = vpop.f32.mrf.mxu0
    %v1662 = vadd.f32 %v1589, %v1661
    %v1663 = vpop.f32.mrf.mxu0
    %v1664 = vadd.f32 %v1591, %v1663
    %1665 = vmatprep.mubr.bf16.mxu0 %v444
    %1666 = vmatmul.mubr.bf16.gmra.mxu0 %v443
    %v1667 = vpop.f32.mrf.mxu0
    %v1668 = vadd.f32 %v1595, %v1667
    %v1669 = vpop.f32.mrf.mxu0
    %v1670 = vadd.f32 %v1597, %v1669
    %v1671 = vpop.f32.mrf.mxu0
    %v1672 = vadd.f32 %v1599, %v1671
    %v1673 = vpop.f32.mrf.mxu0
    %v1674 = vadd.f32 %v1601, %v1673
    %1675 = vmatprep.mubr.bf16.mxu0 %v451
    %1676 = vmatmul.mubr.bf16.gmra.mxu0 %v450
    %v1677 = vpop.f32.mrf.mxu0
    %v1678 = vadd.f32 %v1605, %v1677
    %v1679 = vpop.f32.mrf.mxu0
    %v1680 = vadd.f32 %v1607, %v1679
    %v1681 = vpop.f32.mrf.mxu0
    %v1682 = vadd.f32 %v1609, %v1681
    %v1683 = vpop.f32.mrf.mxu0
    %v1684 = vadd.f32 %v1611, %v1683
    %1685 = vmatprep.mubr.bf16.mxu0 %v458
    %1686 = vmatmul.mubr.bf16.gmra.mxu0 %v457
    %v1687 = vpop.f32.mrf.mxu0
    %v1688 = vadd.f32 %v1615, %v1687
    %v1689 = vpop.f32.mrf.mxu0
    %v1690 = vadd.f32 %v1617, %v1689
    %v1691 = vpop.f32.mrf.mxu0
    %v1692 = vadd.f32 %v1619, %v1691
    %v1693 = vpop.f32.mrf.mxu0
    %v1694 = vadd.f32 %v1621, %v1693
    %1695 = vdwg.mxu0
    %1696 = vmatprep.subr.bf16.mxu0 0
    %1697 = vmatpush1.bf16.msra.mxu0 0
    %1698 = vmatprep.subr.bf16.mxu0 0
    %1699 = vmatpush1.bf16.msra.mxu0 0
    %1700 = vmatprep.subr.bf16.mxu0 0
    %1701 = vmatpush1.bf16.msra.mxu0 0
    %1702 = vmatprep.subr.bf16.mxu0 0
    %1703 = vmatpush1.bf16.msra.mxu0 0
    %1704 = vmatprep.subr.bf16.mxu0 0
    %1705 = vmatpush1.bf16.msra.mxu0 0
    %1706 = vmatprep.subr.bf16.mxu0 0
    %1707 = vmatpush1.bf16.msra.mxu0 0
    %1708 = vmatprep.subr.bf16.mxu0 0
    %1709 = vmatpush1.bf16.msra.mxu0 0
    %1710 = vmatprep.subr.bf16.mxu0 %v1265
    %1711 = vmatpush1.bf16.msra.mxu0 %v1264
    %1712 = vmatprep.subr.bf16.mxu0 0
    %1713 = vmatpush2.bf16.msra.mxu0 0
    %1714 = vmatprep.subr.bf16.mxu0 0
    %1715 = vmatpush2.bf16.msra.mxu0 0
    %1716 = vmatprep.subr.bf16.mxu0 0
    %1717 = vmatpush2.bf16.msra.mxu0 0
    %1718 = vmatprep.subr.bf16.mxu0 0
    %1719 = vmatpush2.bf16.msra.mxu0 0
    %1720 = vmatprep.subr.bf16.mxu0 0
    %1721 = vmatpush2.bf16.msra.mxu0 0
    %1722 = vmatprep.subr.bf16.mxu0 0
    %1723 = vmatpush2.bf16.msra.mxu0 0
    %1724 = vmatprep.subr.bf16.mxu0 0
    %1725 = vmatpush2.bf16.msra.mxu0 0
    %1726 = vmatprep.subr.bf16.mxu0 0
    %1727 = vmatpush2.bf16.msra.mxu0 0
    %1728 = vmatprep.mubr.bf16.mxu0 0
    %1729 = vmatmul.mubr.bf16.gmra.mxu0 %v1466
    %v1730 = vpop.f32.mrf.mxu0
    %v1731 = vadd.f32 %v1658, %v1730
    %v1732 = vpop.f32.mrf.mxu0
    %v1733 = vadd.f32 %v1660, %v1732
    %v1734 = vpop.f32.mrf.mxu0
    %v1735 = vadd.f32 %v1662, %v1734
    %v1736 = vpop.f32.mrf.mxu0
    %v1737 = vadd.f32 %v1664, %v1736
    %1738 = vmatprep.mubr.bf16.mxu0 0
    %1739 = vmatmul.mubr.bf16.gmra.mxu0 %v1469
    %v1740 = vpop.f32.mrf.mxu0
    %v1741 = vadd.f32 %v1668, %v1740
    %v1742 = vpop.f32.mrf.mxu0
    %v1743 = vadd.f32 %v1670, %v1742
    %v1744 = vpop.f32.mrf.mxu0
    %v1745 = vadd.f32 %v1672, %v1744
    %v1746 = vpop.f32.mrf.mxu0
    %v1747 = vadd.f32 %v1674, %v1746
    %1748 = vmatprep.mubr.bf16.mxu0 0
    %1749 = vmatmul.mubr.bf16.gmra.mxu0 %v1472
    %v1750 = vpop.f32.mrf.mxu0
    %v1751 = vadd.f32 %v1678, %v1750
    %v1752 = vpop.f32.mrf.mxu0
    %v1753 = vadd.f32 %v1680, %v1752
    %v1754 = vpop.f32.mrf.mxu0
    %v1755 = vadd.f32 %v1682, %v1754
    %v1756 = vpop.f32.mrf.mxu0
    %v1757 = vadd.f32 %v1684, %v1756
    %1758 = vmatprep.mubr.bf16.mxu0 0
    %1759 = vmatmul.mubr.bf16.gmra.mxu0 %v1475
    %v1760 = vpop.f32.mrf.mxu0
    %v1761 = vadd.f32 %v1688, %v1760
    %v1762 = vpop.f32.mrf.mxu0
    %v1763 = vadd.f32 %v1690, %v1762
    %v1764 = vpop.f32.mrf.mxu0
    %v1765 = vadd.f32 %v1692, %v1764
    %v1766 = vpop.f32.mrf.mxu0
    %v1767 = vadd.f32 %v1694, %v1766
    %1768 = vdwg.mxu0
    %1769 = vmatprep.subr.bf16.mxu0 %v1103
    %1770 = vmatpush1.bf16.msra.mxu0 %v1102
    %1771 = vmatprep.subr.bf16.mxu0 %v1099
    %1772 = vmatpush1.bf16.msra.mxu0 %v1098
    %1773 = vmatprep.subr.bf16.mxu0 %v1095
    %1774 = vmatpush1.bf16.msra.mxu0 %v1094
    %1775 = vmatprep.subr.bf16.mxu0 %v1091
    %1776 = vmatpush1.bf16.msra.mxu0 %v1090
    %1777 = vmatprep.subr.bf16.mxu0 %v1087
    %1778 = vmatpush1.bf16.msra.mxu0 %v1086
    %1779 = vmatprep.subr.bf16.mxu0 %v1083
    %1780 = vmatpush1.bf16.msra.mxu0 %v1082
    %1781 = vmatprep.subr.bf16.mxu0 %v1079
    %1782 = vmatpush1.bf16.msra.mxu0 %v1078
    %1783 = vmatprep.subr.bf16.mxu0 %v1075
    %1784 = vmatpush1.bf16.msra.mxu0 %v1074
    %1785 = vmatprep.subr.bf16.mxu0 %v1135
    %1786 = vmatpush2.bf16.msra.mxu0 %v1134
    %1787 = vmatprep.subr.bf16.mxu0 %v1131
    %1788 = vmatpush2.bf16.msra.mxu0 %v1130
    %1789 = vmatprep.subr.bf16.mxu0 %v1127
    %1790 = vmatpush2.bf16.msra.mxu0 %v1126
    %1791 = vmatprep.subr.bf16.mxu0 %v1123
    %1792 = vmatpush2.bf16.msra.mxu0 %v1122
    %1793 = vmatprep.subr.bf16.mxu0 %v1119
    %1794 = vmatpush2.bf16.msra.mxu0 %v1118
    %1795 = vmatprep.subr.bf16.mxu0 %v1115
    %1796 = vmatpush2.bf16.msra.mxu0 %v1114
    %1797 = vmatprep.subr.bf16.mxu0 %v1111
    %1798 = vmatpush2.bf16.msra.mxu0 %v1110
    %1799 = vmatprep.subr.bf16.mxu0 %v1107
    %1800 = vmatpush2.bf16.msra.mxu0 %v1106
    %1801 = vmatprep.mubr.bf16.mxu0 %v433
    %1802 = vmatmul.mubr.bf16.gmra.mxu0 %v432
    %v1803 = vpop.f32.mrf.mxu0
    %v1804 = vadd.f32 %v335, %v1803
    %v1805 = vpop.f32.mrf.mxu0
    %v1806 = vadd.f32 %v339, %v1805
    %v1807 = vpop.f32.mrf.mxu0
    %v1808 = vadd.f32 %v335, %v1807
    %v1809 = vpop.f32.mrf.mxu0
    %v1810 = vadd.f32 %v339, %v1809
    %1811 = vmatprep.mubr.bf16.mxu0 %v440
    %1812 = vmatmul.mubr.bf16.gmra.mxu0 %v439
    %v1813 = vpop.f32.mrf.mxu0
    %v1814 = vadd.f32 %v335, %v1813
    %v1815 = vpop.f32.mrf.mxu0
    %v1816 = vadd.f32 %v339, %v1815
    %v1817 = vpop.f32.mrf.mxu0
    %v1818 = vadd.f32 %v335, %v1817
    %v1819 = vpop.f32.mrf.mxu0
    %v1820 = vadd.f32 %v339, %v1819
    %1821 = vmatprep.mubr.bf16.mxu0 %v447
    %1822 = vmatmul.mubr.bf16.gmra.mxu0 %v446
    %v1823 = vpop.f32.mrf.mxu0
    %v1824 = vadd.f32 %v335, %v1823
    %v1825 = vpop.f32.mrf.mxu0
    %v1826 = vadd.f32 %v339, %v1825
    %v1827 = vpop.f32.mrf.mxu0
    %v1828 = vadd.f32 %v335, %v1827
    %v1829 = vpop.f32.mrf.mxu0
    %v1830 = vadd.f32 %v339, %v1829
    %1831 = vmatprep.mubr.bf16.mxu0 %v454
    %1832 = vmatmul.mubr.bf16.gmra.mxu0 %v453
    %v1833 = vpop.f32.mrf.mxu0
    %v1834 = vadd.f32 %v335, %v1833
    %v1835 = vpop.f32.mrf.mxu0
    %v1836 = vadd.f32 %v339, %v1835
    %v1837 = vpop.f32.mrf.mxu0
    %v1838 = vadd.f32 %v335, %v1837
    %v1839 = vpop.f32.mrf.mxu0
    %v1840 = vadd.f32 %v339, %v1839
    %1841 = vdwg.mxu0
    %1842 = vmatprep.subr.bf16.mxu0 %v1167
    %1843 = vmatpush1.bf16.msra.mxu0 %v1166
    %1844 = vmatprep.subr.bf16.mxu0 %v1163
    %1845 = vmatpush1.bf16.msra.mxu0 %v1162
    %1846 = vmatprep.subr.bf16.mxu0 %v1159
    %1847 = vmatpush1.bf16.msra.mxu0 %v1158
    %1848 = vmatprep.subr.bf16.mxu0 %v1155
    %1849 = vmatpush1.bf16.msra.mxu0 %v1154
    %1850 = vmatprep.subr.bf16.mxu0 %v1151
    %1851 = vmatpush1.bf16.msra.mxu0 %v1150
    %1852 = vmatprep.subr.bf16.mxu0 %v1147
    %1853 = vmatpush1.bf16.msra.mxu0 %v1146
    %1854 = vmatprep.subr.bf16.mxu0 %v1143
    %1855 = vmatpush1.bf16.msra.mxu0 %v1142
    %1856 = vmatprep.subr.bf16.mxu0 %v1139
    %1857 = vmatpush1.bf16.msra.mxu0 %v1138
    %1858 = vmatprep.subr.bf16.mxu0 %v1199
    %1859 = vmatpush2.bf16.msra.mxu0 %v1198
    %1860 = vmatprep.subr.bf16.mxu0 %v1195
    %1861 = vmatpush2.bf16.msra.mxu0 %v1194
    %1862 = vmatprep.subr.bf16.mxu0 %v1191
    %1863 = vmatpush2.bf16.msra.mxu0 %v1190
    %1864 = vmatprep.subr.bf16.mxu0 %v1187
    %1865 = vmatpush2.bf16.msra.mxu0 %v1186
    %1866 = vmatprep.subr.bf16.mxu0 %v1183
    %1867 = vmatpush2.bf16.msra.mxu0 %v1182
    %1868 = vmatprep.subr.bf16.mxu0 %v1179
    %1869 = vmatpush2.bf16.msra.mxu0 %v1178
    %1870 = vmatprep.subr.bf16.mxu0 %v1175
    %1871 = vmatpush2.bf16.msra.mxu0 %v1174
    %1872 = vmatprep.subr.bf16.mxu0 %v1171
    %1873 = vmatpush2.bf16.msra.mxu0 %v1170
    %1874 = vmatprep.mubr.bf16.mxu0 %v435
    %1875 = vmatmul.mubr.bf16.gmra.mxu0 %v434
    %v1876 = vpop.f32.mrf.mxu0
    %v1877 = vadd.f32 %v1804, %v1876
    %v1878 = vpop.f32.mrf.mxu0
    %v1879 = vadd.f32 %v1806, %v1878
    %v1880 = vpop.f32.mrf.mxu0
    %v1881 = vadd.f32 %v1808, %v1880
    %v1882 = vpop.f32.mrf.mxu0
    %v1883 = vadd.f32 %v1810, %v1882
    %1884 = vmatprep.mubr.bf16.mxu0 %v442
    %1885 = vmatmul.mubr.bf16.gmra.mxu0 %v441
    %v1886 = vpop.f32.mrf.mxu0
    %v1887 = vadd.f32 %v1814, %v1886
    %v1888 = vpop.f32.mrf.mxu0
    %v1889 = vadd.f32 %v1816, %v1888
    %v1890 = vpop.f32.mrf.mxu0
    %v1891 = vadd.f32 %v1818, %v1890
    %v1892 = vpop.f32.mrf.mxu0
    %v1893 = vadd.f32 %v1820, %v1892
    %1894 = vmatprep.mubr.bf16.mxu0 %v449
    %1895 = vmatmul.mubr.bf16.gmra.mxu0 %v448
    %v1896 = vpop.f32.mrf.mxu0
    %v1897 = vadd.f32 %v1824, %v1896
    %v1898 = vpop.f32.mrf.mxu0
    %v1899 = vadd.f32 %v1826, %v1898
    %v1900 = vpop.f32.mrf.mxu0
    %v1901 = vadd.f32 %v1828, %v1900
    %v1902 = vpop.f32.mrf.mxu0
    %v1903 = vadd.f32 %v1830, %v1902
    %1904 = vmatprep.mubr.bf16.mxu0 %v456
    %1905 = vmatmul.mubr.bf16.gmra.mxu0 %v455
    %v1906 = vpop.f32.mrf.mxu0
    %v1907 = vadd.f32 %v1834, %v1906
    %v1908 = vpop.f32.mrf.mxu0
    %v1909 = vadd.f32 %v1836, %v1908
    %v1910 = vpop.f32.mrf.mxu0
    %v1911 = vadd.f32 %v1838, %v1910
    %v1912 = vpop.f32.mrf.mxu0
    %v1913 = vadd.f32 %v1840, %v1912
    %1914 = vdwg.mxu0
    %1915 = vmatprep.subr.bf16.mxu0 %v1231
    %1916 = vmatpush1.bf16.msra.mxu0 %v1230
    %1917 = vmatprep.subr.bf16.mxu0 %v1227
    %1918 = vmatpush1.bf16.msra.mxu0 %v1226
    %1919 = vmatprep.subr.bf16.mxu0 %v1223
    %1920 = vmatpush1.bf16.msra.mxu0 %v1222
    %1921 = vmatprep.subr.bf16.mxu0 %v1219
    %1922 = vmatpush1.bf16.msra.mxu0 %v1218
    %1923 = vmatprep.subr.bf16.mxu0 %v1215
    %1924 = vmatpush1.bf16.msra.mxu0 %v1214
    %1925 = vmatprep.subr.bf16.mxu0 %v1211
    %1926 = vmatpush1.bf16.msra.mxu0 %v1210
    %1927 = vmatprep.subr.bf16.mxu0 %v1207
    %1928 = vmatpush1.bf16.msra.mxu0 %v1206
    %1929 = vmatprep.subr.bf16.mxu0 %v1203
    %1930 = vmatpush1.bf16.msra.mxu0 %v1202
    %1931 = vmatprep.subr.bf16.mxu0 %v1263
    %1932 = vmatpush2.bf16.msra.mxu0 %v1262
    %1933 = vmatprep.subr.bf16.mxu0 %v1259
    %1934 = vmatpush2.bf16.msra.mxu0 %v1258
    %1935 = vmatprep.subr.bf16.mxu0 %v1255
    %1936 = vmatpush2.bf16.msra.mxu0 %v1254
    %1937 = vmatprep.subr.bf16.mxu0 %v1251
    %1938 = vmatpush2.bf16.msra.mxu0 %v1250
    %1939 = vmatprep.subr.bf16.mxu0 %v1247
    %1940 = vmatpush2.bf16.msra.mxu0 %v1246
    %1941 = vmatprep.subr.bf16.mxu0 %v1243
    %1942 = vmatpush2.bf16.msra.mxu0 %v1242
    %1943 = vmatprep.subr.bf16.mxu0 %v1239
    %1944 = vmatpush2.bf16.msra.mxu0 %v1238
    %1945 = vmatprep.subr.bf16.mxu0 %v1235
    %1946 = vmatpush2.bf16.msra.mxu0 %v1234
    %1947 = vmatprep.mubr.bf16.mxu0 %v437
    %1948 = vmatmul.mubr.bf16.gmra.mxu0 %v436
    %v1949 = vpop.f32.mrf.mxu0
    %v1950 = vadd.f32 %v1877, %v1949
    %v1951 = vpop.f32.mrf.mxu0
    %v1952 = vadd.f32 %v1879, %v1951
    %v1953 = vpop.f32.mrf.mxu0
    %v1954 = vadd.f32 %v1881, %v1953
    %v1955 = vpop.f32.mrf.mxu0
    %v1956 = vadd.f32 %v1883, %v1955
    %1957 = vmatprep.mubr.bf16.mxu0 %v444
    %1958 = vmatmul.mubr.bf16.gmra.mxu0 %v443
    %v1959 = vpop.f32.mrf.mxu0
    %v1960 = vadd.f32 %v1887, %v1959
    %v1961 = vpop.f32.mrf.mxu0
    %v1962 = vadd.f32 %v1889, %v1961
    %v1963 = vpop.f32.mrf.mxu0
    %v1964 = vadd.f32 %v1891, %v1963
    %v1965 = vpop.f32.mrf.mxu0
    %v1966 = vadd.f32 %v1893, %v1965
    %1967 = vmatprep.mubr.bf16.mxu0 %v451
    %1968 = vmatmul.mubr.bf16.gmra.mxu0 %v450
    %v1969 = vpop.f32.mrf.mxu0
    %v1970 = vadd.f32 %v1897, %v1969
    %v1971 = vpop.f32.mrf.mxu0
    %v1972 = vadd.f32 %v1899, %v1971
    %v1973 = vpop.f32.mrf.mxu0
    %v1974 = vadd.f32 %v1901, %v1973
    %v1975 = vpop.f32.mrf.mxu0
    %v1976 = vadd.f32 %v1903, %v1975
    %1977 = vmatprep.mubr.bf16.mxu0 %v458
    %1978 = vmatmul.mubr.bf16.gmra.mxu0 %v457
    %v1979 = vpop.f32.mrf.mxu0
    %v1980 = vadd.f32 %v1907, %v1979
    %v1981 = vpop.f32.mrf.mxu0
    %v1982 = vadd.f32 %v1909, %v1981
    %v1983 = vpop.f32.mrf.mxu0
    %v1984 = vadd.f32 %v1911, %v1983
    %v1985 = vpop.f32.mrf.mxu0
    %v1986 = vadd.f32 %v1913, %v1985
    %1987 = vdwg.mxu0
    %1988 = vmatprep.subr.bf16.mxu0 0
    %1989 = vmatpush1.bf16.msra.mxu0 0
    %1990 = vmatprep.subr.bf16.mxu0 0
    %1991 = vmatpush1.bf16.msra.mxu0 0
    %1992 = vmatprep.subr.bf16.mxu0 0
    %1993 = vmatpush1.bf16.msra.mxu0 0
    %1994 = vmatprep.subr.bf16.mxu0 0
    %1995 = vmatpush1.bf16.msra.mxu0 0
    %1996 = vmatprep.subr.bf16.mxu0 0
    %1997 = vmatpush1.bf16.msra.mxu0 0
    %1998 = vmatprep.subr.bf16.mxu0 0
    %1999 = vmatpush1.bf16.msra.mxu0 0
    %2000 = vmatprep.subr.bf16.mxu0 0
    %2001 = vmatpush1.bf16.msra.mxu0 0
    %2002 = vmatprep.subr.bf16.mxu0 %v1267
    %2003 = vmatpush1.bf16.msra.mxu0 %v1266
    %2004 = vmatprep.subr.bf16.mxu0 0
    %2005 = vmatpush2.bf16.msra.mxu0 0
    %2006 = vmatprep.subr.bf16.mxu0 0
    %2007 = vmatpush2.bf16.msra.mxu0 0
    %2008 = vmatprep.subr.bf16.mxu0 0
    %2009 = vmatpush2.bf16.msra.mxu0 0
    %2010 = vmatprep.subr.bf16.mxu0 0
    %2011 = vmatpush2.bf16.msra.mxu0 0
    %2012 = vmatprep.subr.bf16.mxu0 0
    %2013 = vmatpush2.bf16.msra.mxu0 0
    %2014 = vmatprep.subr.bf16.mxu0 0
    %2015 = vmatpush2.bf16.msra.mxu0 0
    %2016 = vmatprep.subr.bf16.mxu0 0
    %2017 = vmatpush2.bf16.msra.mxu0 0
    %2018 = vmatprep.subr.bf16.mxu0 0
    %2019 = vmatpush2.bf16.msra.mxu0 0
    %2020 = vmatprep.mubr.bf16.mxu0 0
    %2021 = vmatmul.mubr.bf16.gmra.mxu0 %v1466
    %v2022 = vpop.f32.mrf.mxu0
    %v2023 = vadd.f32 %v1950, %v2022
    %v2024 = vpop.f32.mrf.mxu0
    %v2025 = vadd.f32 %v1952, %v2024
    %v2026 = vpop.f32.mrf.mxu0
    %v2027 = vadd.f32 %v1954, %v2026
    %v2028 = vpop.f32.mrf.mxu0
    %v2029 = vadd.f32 %v1956, %v2028
    %2030 = vmatprep.mubr.bf16.mxu0 0
    %2031 = vmatmul.mubr.bf16.gmra.mxu0 %v1469
    %v2032 = vpop.f32.mrf.mxu0
    %v2033 = vadd.f32 %v1960, %v2032
    %v2034 = vpop.f32.mrf.mxu0
    %v2035 = vadd.f32 %v1962, %v2034
    %v2036 = vpop.f32.mrf.mxu0
    %v2037 = vadd.f32 %v1964, %v2036
    %v2038 = vpop.f32.mrf.mxu0
    %v2039 = vadd.f32 %v1966, %v2038
    %2040 = vmatprep.mubr.bf16.mxu0 0
    %2041 = vmatmul.mubr.bf16.gmra.mxu0 %v1472
    %v2042 = vpop.f32.mrf.mxu0
    %v2043 = vadd.f32 %v1970, %v2042
    %v2044 = vpop.f32.mrf.mxu0
    %v2045 = vadd.f32 %v1972, %v2044
    %v2046 = vpop.f32.mrf.mxu0
    %v2047 = vadd.f32 %v1974, %v2046
    %v2048 = vpop.f32.mrf.mxu0
    %v2049 = vadd.f32 %v1976, %v2048
    %2050 = vmatprep.mubr.bf16.mxu0 0
    %2051 = vmatmul.mubr.bf16.gmra.mxu0 %v1475
    %v2052 = vpop.f32.mrf.mxu0
    %v2053 = vadd.f32 %v1980, %v2052
    %v2054 = vpop.f32.mrf.mxu0
    %v2055 = vadd.f32 %v1982, %v2054
    %v2056 = vpop.f32.mrf.mxu0
    %v2057 = vadd.f32 %v1984, %v2056
    %v2058 = vpop.f32.mrf.mxu0
    %v2059 = vadd.f32 %v1986, %v2058
    %2060 = vdwg.mxu0
    %v2061 = vmax.f32 %v1731, 0.0
    %v2062 = vmax.f32 %v1733, 0.0
    %v2063 = vmax.f32 %v2023, 0.0
    %v2064 = vmax.f32 %v2025, 0.0
    %v2065 = vmax.f32 %v1735, 0.0
    %v2066 = vmax.f32 %v1737, 0.0
    %v2067 = vmax.f32 %v2027, 0.0
    %v2068 = vmax.f32 %v2029, 0.0
    %v2069 = vmax.f32 %v1741, 0.0
    %v2070 = vmax.f32 %v1743, 0.0
    %v2071 = vmax.f32 %v2033, 0.0
    %v2072 = vmax.f32 %v2035, 0.0
    %v2073 = vmax.f32 %v1745, 0.0
    %v2074 = vmax.f32 %v1747, 0.0
    %v2075 = vmax.f32 %v2037, 0.0
    %v2076 = vmax.f32 %v2039, 0.0
    %v2077 = vmax.f32 %v1751, 0.0
    %v2078 = vmax.f32 %v1753, 0.0
    %v2079 = vmax.f32 %v2043, 0.0
    %v2080 = vmax.f32 %v2045, 0.0
    %v2081 = vmax.f32 %v1755, 0.0
    %v2082 = vmax.f32 %v1757, 0.0
    %v2083 = vmax.f32 %v2047, 0.0
    %v2084 = vmax.f32 %v2049, 0.0
    %v2085 = vmax.f32 %v1761, 0.0
    %v2086 = vmax.f32 %v1763, 0.0
    %v2087 = vmax.f32 %v2053, 0.0
    %v2088 = vmax.f32 %v2055, 0.0
    %v2089 = vmax.f32 %v1765, 0.0
    %v2090 = vmax.f32 %v1767, 0.0
    %v2091 = vmax.f32 %v2057, 0.0
    %v2092 = vmax.f32 %v2059, 0.0
    %v2093 = vpack.c.bf16 %v2065, %v2061
    %v2094 = vpack.c.bf16 %v2066, %v2062
    %v2095 = vpack.c.bf16 %v2067, %v2063
    %v2096 = vpack.c.bf16 %v2068, %v2064
    %v2097 = vpack.c.bf16 %v2073, %v2069
    %v2098 = vpack.c.bf16 %v2074, %v2070
    %v2099 = vpack.c.bf16 %v2075, %v2071
    %v2100 = vpack.c.bf16 %v2076, %v2072
    %v2101 = vpack.c.bf16 %v2081, %v2077
    %v2102 = vpack.c.bf16 %v2082, %v2078
    %v2103 = vpack.c.bf16 %v2083, %v2079
    %v2104 = vpack.c.bf16 %v2084, %v2080
    %v2105 = vpack.c.bf16 %v2089, %v2085
    %v2106 = vpack.c.bf16 %v2090, %v2086
    %v2107 = vpack.c.bf16 %v2091, %v2087
    %v2108 = vpack.c.bf16 %v2092, %v2088
    %v2109 = vld [vmem:[#allocation8] sm:$0xff]
    %v2110 = vld [vmem:[#allocation8 + $0x8] sm:$0xff]
    %v2111 = vld [vmem:[#allocation8 + $0x10] sm:$0xff]
    %v2112 = vld [vmem:[#allocation8 + $0x18] sm:$0xff]
    %v2113 = vld [vmem:[#allocation8 + $0x20] sm:$0xff]
    %v2114 = vld [vmem:[#allocation8 + $0x28] sm:$0xff]
    %v2115 = vld [vmem:[#allocation8 + $0x30] sm:$0xff]
    %v2116 = vld [vmem:[#allocation8 + $0x38] sm:$0xff]
    %v2117 = vld [vmem:[#allocation8 + $0x40] sm:$0xff]
    %v2118 = vld [vmem:[#allocation8 + $0x48] sm:$0xff]
    %v2119 = vld [vmem:[#allocation8 + $0x50] sm:$0xff]
    %v2120 = vld [vmem:[#allocation8 + $0x58] sm:$0xff]
    %v2121 = vld [vmem:[#allocation8 + $0x60] sm:$0xff]
    %v2122 = vld [vmem:[#allocation8 + $0x68] sm:$0xff]
    %v2123 = vld [vmem:[#allocation8 + $0x70] sm:$0xff]
    %v2124 = vld [vmem:[#allocation8 + $0x78] sm:$0xff]
    %v2125 = vld [vmem:[#allocation8 + $0x80] sm:$0xff]
    %v2126 = vld [vmem:[#allocation8 + $0x88] sm:$0xff]
    %v2127 = vld [vmem:[#allocation8 + $0x90] sm:$0xff]
    %v2128 = vld [vmem:[#allocation8 + $0x98] sm:$0xff]
    %v2129 = vld [vmem:[#allocation8 + $0xa0] sm:$0xff]
    %v2130 = vld [vmem:[#allocation8 + $0xa8] sm:$0xff]
    %v2131 = vld [vmem:[#allocation8 + $0xb0] sm:$0xff]
    %v2132 = vld [vmem:[#allocation8 + $0xb8] sm:$0xff]
    %v2133 = vld [vmem:[#allocation8 + $0xc0] sm:$0xff]
    %v2134 = vld [vmem:[#allocation8 + $0xc8] sm:$0xff]
    %v2135 = vld [vmem:[#allocation8 + $0xd0] sm:$0xff]
    %v2136 = vld [vmem:[#allocation8 + $0xd8] sm:$0xff]
    %v2137 = vld [vmem:[#allocation8 + $0xe0] sm:$0xff]
    %v2138 = vld [vmem:[#allocation8 + $0xe8] sm:$0xff]
    %v2139 = vld [vmem:[#allocation8 + $0xf0] sm:$0xff]
    %v2140 = vld [vmem:[#allocation8 + $0xf8] sm:$0xff]
    %v2141 = vld [vmem:[#allocation8 + $0x100] sm:$0xff]
    %v2142 = vld [vmem:[#allocation8 + $0x108] sm:$0xff]
    %v2143 = vld [vmem:[#allocation8 + $0x110] sm:$0xff]
    %v2144 = vld [vmem:[#allocation8 + $0x118] sm:$0xff]
    %v2145 = vld [vmem:[#allocation8 + $0x120] sm:$0xff]
    %v2146 = vld [vmem:[#allocation8 + $0x128] sm:$0xff]
    %v2147 = vld [vmem:[#allocation8 + $0x130] sm:$0xff]
    %v2148 = vld [vmem:[#allocation8 + $0x138] sm:$0xff]
    %v2149 = vld [vmem:[#allocation8 + $0x140] sm:$0xff]
    %v2150 = vld [vmem:[#allocation8 + $0x148] sm:$0xff]
    %v2151 = vld [vmem:[#allocation8 + $0x150] sm:$0xff]
    %v2152 = vld [vmem:[#allocation8 + $0x158] sm:$0xff]
    %v2153 = vld [vmem:[#allocation8 + $0x160] sm:$0xff]
    %v2154 = vld [vmem:[#allocation8 + $0x168] sm:$0xff]
    %v2155 = vld [vmem:[#allocation8 + $0x170] sm:$0xff]
    %v2156 = vld [vmem:[#allocation8 + $0x178] sm:$0xff]
    %v2157 = vld [vmem:[#allocation8 + $0x180] sm:$0xff]
    %v2158 = vld [vmem:[#allocation8 + $0x188] sm:$0xff]
    %v2159 = vld [vmem:[#allocation8 + $0x190] sm:$0xff]
    %v2160 = vld [vmem:[#allocation8 + $0x198] sm:$0xff]
    %v2161 = vld [vmem:[#allocation8 + $0x1a0] sm:$0xff]
    %v2162 = vld [vmem:[#allocation8 + $0x1a8] sm:$0xff]
    %v2163 = vld [vmem:[#allocation8 + $0x1b0] sm:$0xff]
    %v2164 = vld [vmem:[#allocation8 + $0x1b8] sm:$0xff]
    %v2165 = vld [vmem:[#allocation8 + $0x1c0] sm:$0xff]
    %v2166 = vld [vmem:[#allocation8 + $0x1c8] sm:$0xff]
    %v2167 = vld [vmem:[#allocation8 + $0x1d0] sm:$0xff]
    %v2168 = vld [vmem:[#allocation8 + $0x1d8] sm:$0xff]
    %v2169 = vld [vmem:[#allocation8 + $0x1e0] sm:$0xff]
    %v2170 = vld [vmem:[#allocation8 + $0x1e8] sm:$0xff]
    %v2171 = vld [vmem:[#allocation8 + $0x1f0] sm:$0xff]
    %v2172 = vld [vmem:[#allocation8 + $0x1f8] sm:$0xff]
    %v2173 = vld [vmem:[%s4] sm:$0x3]
    %v2175 = vlaneseq
    %v2176 = vshrl.u32 %v2175, 7
    %v2177 = vsub.s32 0, %v2176
    %v2178 = vrot.slane %v2173, %v2177
    %v2179 = vlaneseq
    %v2180 = vshrl.u32 %v2179, 7
    %v2181 = vsub.s32 1, %v2180
    %v2182 = vrot.slane %v2173, %v2181
    %v2249 = vunpack.c.l.b16 %v2109
    %v2250 = vunpack.c.h.b16 %v2109
    %v2251 = vunpack.c.l.b16 %v2110
    %v2252 = vunpack.c.h.b16 %v2110
    %v2253 = vunpack.c.l.b16 %v2111
    %v2254 = vunpack.c.h.b16 %v2111
    %v2255 = vunpack.c.l.b16 %v2112
    %v2256 = vunpack.c.h.b16 %v2112
    %v2257 = vunpack.c.l.b16 %v2113
    %v2258 = vunpack.c.h.b16 %v2113
    %v2259 = vunpack.c.l.b16 %v2114
    %v2260 = vunpack.c.h.b16 %v2114
    %v2261 = vunpack.c.l.b16 %v2115
    %v2262 = vunpack.c.h.b16 %v2115
    %v2263 = vunpack.c.l.b16 %v2116
    %v2264 = vunpack.c.h.b16 %v2116
    %v2265 = vunpack.c.l.b16 %v2117
    %v2266 = vunpack.c.h.b16 %v2117
    %v2267 = vunpack.c.l.b16 %v2118
    %v2268 = vunpack.c.h.b16 %v2118
    %v2269 = vunpack.c.l.b16 %v2119
    %v2270 = vunpack.c.h.b16 %v2119
    %v2271 = vunpack.c.l.b16 %v2120
    %v2272 = vunpack.c.h.b16 %v2120
    %v2273 = vunpack.c.l.b16 %v2121
    %v2274 = vunpack.c.h.b16 %v2121
    %v2275 = vunpack.c.l.b16 %v2122
    %v2276 = vunpack.c.h.b16 %v2122
    %v2277 = vunpack.c.l.b16 %v2123
    %v2278 = vunpack.c.h.b16 %v2123
    %v2279 = vunpack.c.l.b16 %v2124
    %v2280 = vunpack.c.h.b16 %v2124
    %v2281 = vunpack.c.l.b16 %v2125
    %v2282 = vunpack.c.h.b16 %v2125
    %v2283 = vunpack.c.l.b16 %v2126
    %v2284 = vunpack.c.h.b16 %v2126
    %v2285 = vunpack.c.l.b16 %v2127
    %v2286 = vunpack.c.h.b16 %v2127
    %v2287 = vunpack.c.l.b16 %v2128
    %v2288 = vunpack.c.h.b16 %v2128
    %v2289 = vunpack.c.l.b16 %v2129
    %v2290 = vunpack.c.h.b16 %v2129
    %v2291 = vunpack.c.l.b16 %v2130
    %v2292 = vunpack.c.h.b16 %v2130
    %v2293 = vunpack.c.l.b16 %v2131
    %v2294 = vunpack.c.h.b16 %v2131
    %v2295 = vunpack.c.l.b16 %v2132
    %v2296 = vunpack.c.h.b16 %v2132
    %v2297 = vunpack.c.l.b16 %v2133
    %v2298 = vunpack.c.h.b16 %v2133
    %v2299 = vunpack.c.l.b16 %v2134
    %v2300 = vunpack.c.h.b16 %v2134
    %v2301 = vunpack.c.l.b16 %v2135
    %v2302 = vunpack.c.h.b16 %v2135
    %v2303 = vunpack.c.l.b16 %v2136
    %v2304 = vunpack.c.h.b16 %v2136
    %v2305 = vunpack.c.l.b16 %v2137
    %v2306 = vunpack.c.h.b16 %v2137
    %v2307 = vunpack.c.l.b16 %v2138
    %v2308 = vunpack.c.h.b16 %v2138
    %v2309 = vunpack.c.l.b16 %v2139
    %v2310 = vunpack.c.h.b16 %v2139
    %v2311 = vunpack.c.l.b16 %v2140
    %v2312 = vunpack.c.h.b16 %v2140
    %v2313 = vunpack.c.l.b16 %v2141
    %v2314 = vunpack.c.h.b16 %v2141
    %v2315 = vunpack.c.l.b16 %v2142
    %v2316 = vunpack.c.h.b16 %v2142
    %v2317 = vunpack.c.l.b16 %v2143
    %v2318 = vunpack.c.h.b16 %v2143
    %v2319 = vunpack.c.l.b16 %v2144
    %v2320 = vunpack.c.h.b16 %v2144
    %v2321 = vunpack.c.l.b16 %v2145
    %v2322 = vunpack.c.h.b16 %v2145
    %v2323 = vunpack.c.l.b16 %v2146
    %v2324 = vunpack.c.h.b16 %v2146
    %v2325 = vunpack.c.l.b16 %v2147
    %v2326 = vunpack.c.h.b16 %v2147
    %v2327 = vunpack.c.l.b16 %v2148
    %v2328 = vunpack.c.h.b16 %v2148
    %v2329 = vunpack.c.l.b16 %v2149
    %v2330 = vunpack.c.h.b16 %v2149
    %v2331 = vunpack.c.l.b16 %v2150
    %v2332 = vunpack.c.h.b16 %v2150
    %v2333 = vunpack.c.l.b16 %v2151
    %v2334 = vunpack.c.h.b16 %v2151
    %v2335 = vunpack.c.l.b16 %v2152
    %v2336 = vunpack.c.h.b16 %v2152
    %v2337 = vunpack.c.l.b16 %v2153
    %v2338 = vunpack.c.h.b16 %v2153
    %v2339 = vunpack.c.l.b16 %v2154
    %v2340 = vunpack.c.h.b16 %v2154
    %v2341 = vunpack.c.l.b16 %v2155
    %v2342 = vunpack.c.h.b16 %v2155
    %v2343 = vunpack.c.l.b16 %v2156
    %v2344 = vunpack.c.h.b16 %v2156
    %v2345 = vunpack.c.l.b16 %v2157
    %v2346 = vunpack.c.h.b16 %v2157
    %v2347 = vunpack.c.l.b16 %v2158
    %v2348 = vunpack.c.h.b16 %v2158
    %v2349 = vunpack.c.l.b16 %v2159
    %v2350 = vunpack.c.h.b16 %v2159
    %v2351 = vunpack.c.l.b16 %v2160
    %v2352 = vunpack.c.h.b16 %v2160
    %v2353 = vunpack.c.l.b16 %v2161
    %v2354 = vunpack.c.h.b16 %v2161
    %v2355 = vunpack.c.l.b16 %v2162
    %v2356 = vunpack.c.h.b16 %v2162
    %v2357 = vunpack.c.l.b16 %v2163
    %v2358 = vunpack.c.h.b16 %v2163
    %v2359 = vunpack.c.l.b16 %v2164
    %v2360 = vunpack.c.h.b16 %v2164
    %v2361 = vunpack.c.l.b16 %v2165
    %v2362 = vunpack.c.h.b16 %v2165
    %v2363 = vunpack.c.l.b16 %v2166
    %v2364 = vunpack.c.h.b16 %v2166
    %v2365 = vunpack.c.l.b16 %v2167
    %v2366 = vunpack.c.h.b16 %v2167
    %v2367 = vunpack.c.l.b16 %v2168
    %v2368 = vunpack.c.h.b16 %v2168
    %v2369 = vunpack.c.l.b16 %v2169
    %v2370 = vunpack.c.h.b16 %v2169
    %v2371 = vunpack.c.l.b16 %v2170
    %v2372 = vunpack.c.h.b16 %v2170
    %v2373 = vunpack.c.l.b16 %v2171
    %v2374 = vunpack.c.h.b16 %v2171
    %v2375 = vunpack.c.l.b16 %v2172
    %v2376 = vunpack.c.h.b16 %v2172
    %v2377 = vpack.c.b16 %v2251, %v2249
    %v2378 = vpack.c.b16 %v2252, %v2250
    %v2379 = vpack.c.b16 %v2255, %v2253
    %v2380 = vpack.c.b16 %v2256, %v2254
    %v2381 = vpack.c.b16 %v2259, %v2257
    %v2382 = vpack.c.b16 %v2260, %v2258
    %v2383 = vpack.c.b16 %v2263, %v2261
    %v2384 = vpack.c.b16 %v2264, %v2262
    %v2385 = vpack.c.b16 %v2267, %v2265
    %v2386 = vpack.c.b16 %v2268, %v2266
    %v2387 = vpack.c.b16 %v2271, %v2269
    %v2388 = vpack.c.b16 %v2272, %v2270
    %v2389 = vpack.c.b16 %v2275, %v2273
    %v2390 = vpack.c.b16 %v2276, %v2274
    %v2391 = vpack.c.b16 %v2279, %v2277
    %v2392 = vpack.c.b16 %v2280, %v2278
    %v2393 = vpack.c.b16 %v2283, %v2281
    %v2394 = vpack.c.b16 %v2284, %v2282
    %v2395 = vpack.c.b16 %v2287, %v2285
    %v2396 = vpack.c.b16 %v2288, %v2286
    %v2397 = vpack.c.b16 %v2291, %v2289
    %v2398 = vpack.c.b16 %v2292, %v2290
    %v2399 = vpack.c.b16 %v2295, %v2293
    %v2400 = vpack.c.b16 %v2296, %v2294
    %v2401 = vpack.c.b16 %v2299, %v2297
    %v2402 = vpack.c.b16 %v2300, %v2298
    %v2403 = vpack.c.b16 %v2303, %v2301
    %v2404 = vpack.c.b16 %v2304, %v2302
    %v2405 = vpack.c.b16 %v2307, %v2305
    %v2406 = vpack.c.b16 %v2308, %v2306
    %v2407 = vpack.c.b16 %v2311, %v2309
    %v2408 = vpack.c.b16 %v2312, %v2310
    %v2409 = vpack.c.b16 %v2315, %v2313
    %v2410 = vpack.c.b16 %v2316, %v2314
    %v2411 = vpack.c.b16 %v2319, %v2317
    %v2412 = vpack.c.b16 %v2320, %v2318
    %v2413 = vpack.c.b16 %v2323, %v2321
    %v2414 = vpack.c.b16 %v2324, %v2322
    %v2415 = vpack.c.b16 %v2327, %v2325
    %v2416 = vpack.c.b16 %v2328, %v2326
    %v2417 = vpack.c.b16 %v2331, %v2329
    %v2418 = vpack.c.b16 %v2332, %v2330
    %v2419 = vpack.c.b16 %v2335, %v2333
    %v2420 = vpack.c.b16 %v2336, %v2334
    %v2421 = vpack.c.b16 %v2339, %v2337
    %v2422 = vpack.c.b16 %v2340, %v2338
    %v2423 = vpack.c.b16 %v2343, %v2341
    %v2424 = vpack.c.b16 %v2344, %v2342
    %v2425 = vpack.c.b16 %v2347, %v2345
    %v2426 = vpack.c.b16 %v2348, %v2346
    %v2427 = vpack.c.b16 %v2351, %v2349
    %v2428 = vpack.c.b16 %v2352, %v2350
    %v2429 = vpack.c.b16 %v2355, %v2353
    %v2430 = vpack.c.b16 %v2356, %v2354
    %v2431 = vpack.c.b16 %v2359, %v2357
    %v2432 = vpack.c.b16 %v2360, %v2358
    %v2433 = vpack.c.b16 %v2363, %v2361
    %v2434 = vpack.c.b16 %v2364, %v2362
    %v2435 = vpack.c.b16 %v2367, %v2365
    %v2436 = vpack.c.b16 %v2368, %v2366
    %v2437 = vpack.c.b16 %v2371, %v2369
    %v2438 = vpack.c.b16 %v2372, %v2370
    %v2439 = vpack.c.b16 %v2375, %v2373
    %v2440 = vpack.c.b16 %v2376, %v2374
    %2505 = vmatprep.subr.bf16.mxu0 %v2392
    %2506 = vmatpush1.bf16.msra.mxu0 %v2391
    %2507 = vmatprep.subr.bf16.mxu0 %v2390
    %2508 = vmatpush1.bf16.msra.mxu0 %v2389
    %2509 = vmatprep.subr.bf16.mxu0 %v2388
    %2510 = vmatpush1.bf16.msra.mxu0 %v2387
    %2511 = vmatprep.subr.bf16.mxu0 %v2386
    %2512 = vmatpush1.bf16.msra.mxu0 %v2385
    %2513 = vmatprep.subr.bf16.mxu0 %v2384
    %2514 = vmatpush1.bf16.msra.mxu0 %v2383
    %2515 = vmatprep.subr.bf16.mxu0 %v2382
    %2516 = vmatpush1.bf16.msra.mxu0 %v2381
    %2517 = vmatprep.subr.bf16.mxu0 %v2380
    %2518 = vmatpush1.bf16.msra.mxu0 %v2379
    %2519 = vmatprep.subr.bf16.mxu0 %v2378
    %2520 = vmatpush1.bf16.msra.mxu0 %v2377
    %2521 = vmatprep.subr.bf16.mxu0 %v2408
    %2522 = vmatpush2.bf16.msra.mxu0 %v2407
    %2523 = vmatprep.subr.bf16.mxu0 %v2406
    %2524 = vmatpush2.bf16.msra.mxu0 %v2405
    %2525 = vmatprep.subr.bf16.mxu0 %v2404
    %2526 = vmatpush2.bf16.msra.mxu0 %v2403
    %2527 = vmatprep.subr.bf16.mxu0 %v2402
    %2528 = vmatpush2.bf16.msra.mxu0 %v2401
    %2529 = vmatprep.subr.bf16.mxu0 %v2400
    %2530 = vmatpush2.bf16.msra.mxu0 %v2399
    %2531 = vmatprep.subr.bf16.mxu0 %v2398
    %2532 = vmatpush2.bf16.msra.mxu0 %v2397
    %2533 = vmatprep.subr.bf16.mxu0 %v2396
    %2534 = vmatpush2.bf16.msra.mxu0 %v2395
    %2535 = vmatprep.subr.bf16.mxu0 %v2394
    %2536 = vmatpush2.bf16.msra.mxu0 %v2393
    %2537 = vmatprep.mubr.bf16.mxu0 %v2094
    %2538 = vmatmul.mubr.bf16.gmra.mxu0 %v2093
    %v2539 = vpop.f32.mrf.mxu0
    %v2540 = vadd.f32 %v2178, %v2539
    %v2541 = vpop.f32.mrf.mxu0
    %v2542 = vadd.f32 %v2182, %v2541
    %v2543 = vpop.f32.mrf.mxu0
    %v2544 = vadd.f32 %v2178, %v2543
    %v2545 = vpop.f32.mrf.mxu0
    %v2546 = vadd.f32 %v2182, %v2545
    %2547 = vmatprep.mubr.bf16.mxu0 %v2098
    %2548 = vmatmul.mubr.bf16.gmra.mxu0 %v2097
    %v2549 = vpop.f32.mrf.mxu0
    %v2550 = vadd.f32 %v2178, %v2549
    %v2551 = vpop.f32.mrf.mxu0
    %v2552 = vadd.f32 %v2182, %v2551
    %v2553 = vpop.f32.mrf.mxu0
    %v2554 = vadd.f32 %v2178, %v2553
    %v2555 = vpop.f32.mrf.mxu0
    %v2556 = vadd.f32 %v2182, %v2555
    %2557 = vmatprep.mubr.bf16.mxu0 %v2102
    %2558 = vmatmul.mubr.bf16.gmra.mxu0 %v2101
    %v2559 = vpop.f32.mrf.mxu0
    %v2560 = vadd.f32 %v2178, %v2559
    %v2561 = vpop.f32.mrf.mxu0
    %v2562 = vadd.f32 %v2182, %v2561
    %v2563 = vpop.f32.mrf.mxu0
    %v2564 = vadd.f32 %v2178, %v2563
    %v2565 = vpop.f32.mrf.mxu0
    %v2566 = vadd.f32 %v2182, %v2565
    %2567 = vmatprep.mubr.bf16.mxu0 %v2106
    %2568 = vmatmul.mubr.bf16.gmra.mxu0 %v2105
    %v2569 = vpop.f32.mrf.mxu0
    %v2570 = vadd.f32 %v2178, %v2569
    %v2571 = vpop.f32.mrf.mxu0
    %v2572 = vadd.f32 %v2182, %v2571
    %v2573 = vpop.f32.mrf.mxu0
    %v2574 = vadd.f32 %v2178, %v2573
    %v2575 = vpop.f32.mrf.mxu0
    %v2576 = vadd.f32 %v2182, %v2575
    %2577 = vdwg.mxu0
    %2578 = vmatprep.subr.bf16.mxu0 %v2424
    %2579 = vmatpush1.bf16.msra.mxu0 %v2423
    %2580 = vmatprep.subr.bf16.mxu0 %v2422
    %2581 = vmatpush1.bf16.msra.mxu0 %v2421
    %2582 = vmatprep.subr.bf16.mxu0 %v2420
    %2583 = vmatpush1.bf16.msra.mxu0 %v2419
    %2584 = vmatprep.subr.bf16.mxu0 %v2418
    %2585 = vmatpush1.bf16.msra.mxu0 %v2417
    %2586 = vmatprep.subr.bf16.mxu0 %v2416
    %2587 = vmatpush1.bf16.msra.mxu0 %v2415
    %2588 = vmatprep.subr.bf16.mxu0 %v2414
    %2589 = vmatpush1.bf16.msra.mxu0 %v2413
    %2590 = vmatprep.subr.bf16.mxu0 %v2412
    %2591 = vmatpush1.bf16.msra.mxu0 %v2411
    %2592 = vmatprep.subr.bf16.mxu0 %v2410
    %2593 = vmatpush1.bf16.msra.mxu0 %v2409
    %2594 = vmatprep.subr.bf16.mxu0 %v2440
    %2595 = vmatpush2.bf16.msra.mxu0 %v2439
    %2596 = vmatprep.subr.bf16.mxu0 %v2438
    %2597 = vmatpush2.bf16.msra.mxu0 %v2437
    %2598 = vmatprep.subr.bf16.mxu0 %v2436
    %2599 = vmatpush2.bf16.msra.mxu0 %v2435
    %2600 = vmatprep.subr.bf16.mxu0 %v2434
    %2601 = vmatpush2.bf16.msra.mxu0 %v2433
    %2602 = vmatprep.subr.bf16.mxu0 %v2432
    %2603 = vmatpush2.bf16.msra.mxu0 %v2431
    %2604 = vmatprep.subr.bf16.mxu0 %v2430
    %2605 = vmatpush2.bf16.msra.mxu0 %v2429
    %2606 = vmatprep.subr.bf16.mxu0 %v2428
    %2607 = vmatpush2.bf16.msra.mxu0 %v2427
    %2608 = vmatprep.subr.bf16.mxu0 %v2426
    %2609 = vmatpush2.bf16.msra.mxu0 %v2425
    %2610 = vmatprep.mubr.bf16.mxu0 %v2096
    %2611 = vmatmul.mubr.bf16.gmra.mxu0 %v2095
    %v2612 = vpop.f32.mrf.mxu0
    %v2613 = vadd.f32 %v2540, %v2612
    %v2614 = vpop.f32.mrf.mxu0
    %v2615 = vadd.f32 %v2542, %v2614
    %v2616 = vpop.f32.mrf.mxu0
    %v2617 = vadd.f32 %v2544, %v2616
    %v2618 = vpop.f32.mrf.mxu0
    %v2619 = vadd.f32 %v2546, %v2618
    %2620 = vmatprep.mubr.bf16.mxu0 %v2100
    %2621 = vmatmul.mubr.bf16.gmra.mxu0 %v2099
    %v2622 = vpop.f32.mrf.mxu0
    %v2623 = vadd.f32 %v2550, %v2622
    %v2624 = vpop.f32.mrf.mxu0
    %v2625 = vadd.f32 %v2552, %v2624
    %v2626 = vpop.f32.mrf.mxu0
    %v2627 = vadd.f32 %v2554, %v2626
    %v2628 = vpop.f32.mrf.mxu0
    %v2629 = vadd.f32 %v2556, %v2628
    %2630 = vmatprep.mubr.bf16.mxu0 %v2104
    %2631 = vmatmul.mubr.bf16.gmra.mxu0 %v2103
    %v2632 = vpop.f32.mrf.mxu0
    %v2633 = vadd.f32 %v2560, %v2632
    %v2634 = vpop.f32.mrf.mxu0
    %v2635 = vadd.f32 %v2562, %v2634
    %v2636 = vpop.f32.mrf.mxu0
    %v2637 = vadd.f32 %v2564, %v2636
    %v2638 = vpop.f32.mrf.mxu0
    %v2639 = vadd.f32 %v2566, %v2638
    %2640 = vmatprep.mubr.bf16.mxu0 %v2108
    %2641 = vmatmul.mubr.bf16.gmra.mxu0 %v2107
    %v2642 = vpop.f32.mrf.mxu0
    %v2643 = vadd.f32 %v2570, %v2642
    %v2644 = vpop.f32.mrf.mxu0
    %v2645 = vadd.f32 %v2572, %v2644
    %v2646 = vpop.f32.mrf.mxu0
    %v2647 = vadd.f32 %v2574, %v2646
    %v2648 = vpop.f32.mrf.mxu0
    %v2649 = vadd.f32 %v2576, %v2648
    %2650 = vdwg.mxu0
    %v2651 = vmax.f32 %v2613, 0.0
    %v2652 = vmax.f32 %v2615, 0.0
    %v2653 = vmax.f32 %v2617, 0.0
    %v2654 = vmax.f32 %v2619, 0.0
    %v2655 = vmax.f32 %v2623, 0.0
    %v2656 = vmax.f32 %v2625, 0.0
    %v2657 = vmax.f32 %v2627, 0.0
    %v2658 = vmax.f32 %v2629, 0.0
    %v2659 = vmax.f32 %v2633, 0.0
    %v2660 = vmax.f32 %v2635, 0.0
    %v2661 = vmax.f32 %v2637, 0.0
    %v2662 = vmax.f32 %v2639, 0.0
    %v2663 = vmax.f32 %v2643, 0.0
    %v2664 = vmax.f32 %v2645, 0.0
    %v2665 = vmax.f32 %v2647, 0.0
    %v2666 = vmax.f32 %v2649, 0.0
    %v2667 = vpack.c.bf16 %v2653, %v2651
    %v2668 = vpack.c.bf16 %v2654, %v2652
    %v2669 = vpack.c.bf16 %v2657, %v2655
    %v2670 = vpack.c.bf16 %v2658, %v2656
    %v2671 = vpack.c.bf16 %v2661, %v2659
    %v2672 = vpack.c.bf16 %v2662, %v2660
    %v2673 = vpack.c.bf16 %v2665, %v2663
    %v2674 = vpack.c.bf16 %v2666, %v2664
    %v2675 = vld [vmem:[#allocation10] sm:$0xf]
    %v2676 = vld [vmem:[#allocation10 + $0x4] sm:$0xf]
    %v2677 = vld [vmem:[#allocation10 + $0x8] sm:$0xf]
    %v2678 = vld [vmem:[#allocation10 + $0xc] sm:$0xf]
    %v2679 = vld [vmem:[#allocation10 + $0x10] sm:$0xf]
    %v2680 = vld [vmem:[#allocation10 + $0x14] sm:$0xf]
    %v2681 = vld [vmem:[#allocation10 + $0x18] sm:$0xf]
    %v2682 = vld [vmem:[#allocation10 + $0x1c] sm:$0xf]
    %v2683 = vld [vmem:[#allocation10 + $0x20] sm:$0xf]
    %v2684 = vld [vmem:[#allocation10 + $0x24] sm:$0xf]
    %v2685 = vld [vmem:[#allocation10 + $0x28] sm:$0xf]
    %v2686 = vld [vmem:[#allocation10 + $0x2c] sm:$0xf]
    %v2687 = vld [vmem:[#allocation10 + $0x30] sm:$0xf]
    %v2688 = vld [vmem:[#allocation10 + $0x34] sm:$0xf]
    %v2689 = vld [vmem:[#allocation10 + $0x38] sm:$0xf]
    %v2690 = vld [vmem:[#allocation10 + $0x3c] sm:$0xf]
    %v2691 = vld [vmem:[#allocation10 + $0x40] sm:$0xf]
    %v2692 = vld [vmem:[#allocation10 + $0x44] sm:$0xf]
    %v2693 = vld [vmem:[#allocation10 + $0x48] sm:$0xf]
    %v2694 = vld [vmem:[#allocation10 + $0x4c] sm:$0xf]
    %v2695 = vld [vmem:[#allocation10 + $0x50] sm:$0xf]
    %v2696 = vld [vmem:[#allocation10 + $0x54] sm:$0xf]
    %v2697 = vld [vmem:[#allocation10 + $0x58] sm:$0xf]
    %v2698 = vld [vmem:[#allocation10 + $0x5c] sm:$0xf]
    %v2699 = vld [vmem:[#allocation10 + $0x60] sm:$0xf]
    %v2700 = vld [vmem:[#allocation10 + $0x64] sm:$0xf]
    %v2701 = vld [vmem:[#allocation10 + $0x68] sm:$0xf]
    %v2702 = vld [vmem:[#allocation10 + $0x6c] sm:$0xf]
    %v2703 = vld [vmem:[#allocation10 + $0x70] sm:$0xf]
    %v2704 = vld [vmem:[#allocation10 + $0x74] sm:$0xf]
    %v2705 = vld [vmem:[#allocation10 + $0x78] sm:$0xf]
    %v2706 = vld [vmem:[#allocation10 + $0x7c] sm:$0xf]
    %v2707 = vld [vmem:[%s6] sm:$0x1]
    %v2709 = vlaneseq
    %v2710 = vshrl.u32 %v2709, 7
    %v2711 = vsub.s32 0, %v2710
    %v2712 = vrot.slane %v2707, %v2711
    %v2746 = vunpack.c.l.b16 %v2675
    %v2747 = vunpack.c.l.b16 %v2676
    %v2748 = vunpack.c.l.b16 %v2677
    %v2749 = vunpack.c.l.b16 %v2678
    %v2750 = vunpack.c.l.b16 %v2679
    %v2751 = vunpack.c.l.b16 %v2680
    %v2752 = vunpack.c.l.b16 %v2681
    %v2753 = vunpack.c.l.b16 %v2682
    %v2754 = vunpack.c.l.b16 %v2683
    %v2755 = vunpack.c.l.b16 %v2684
    %v2756 = vunpack.c.l.b16 %v2685
    %v2757 = vunpack.c.l.b16 %v2686
    %v2758 = vunpack.c.l.b16 %v2687
    %v2759 = vunpack.c.l.b16 %v2688
    %v2760 = vunpack.c.l.b16 %v2689
    %v2761 = vunpack.c.l.b16 %v2690
    %v2762 = vunpack.c.l.b16 %v2691
    %v2763 = vunpack.c.l.b16 %v2692
    %v2764 = vunpack.c.l.b16 %v2693
    %v2765 = vunpack.c.l.b16 %v2694
    %v2766 = vunpack.c.l.b16 %v2695
    %v2767 = vunpack.c.l.b16 %v2696
    %v2768 = vunpack.c.l.b16 %v2697
    %v2769 = vunpack.c.l.b16 %v2698
    %v2770 = vunpack.c.l.b16 %v2699
    %v2771 = vunpack.c.l.b16 %v2700
    %v2772 = vunpack.c.l.b16 %v2701
    %v2773 = vunpack.c.l.b16 %v2702
    %v2774 = vunpack.c.l.b16 %v2703
    %v2775 = vunpack.c.l.b16 %v2704
    %v2776 = vunpack.c.l.b16 %v2705
    %v2777 = vunpack.c.l.b16 %v2706
    %v2778 = vpack.c.b16 %v2747, %v2746
    %v2779 = vpack.c.b16 %v2749, %v2748
    %v2780 = vpack.c.b16 %v2751, %v2750
    %v2781 = vpack.c.b16 %v2753, %v2752
    %v2782 = vpack.c.b16 %v2755, %v2754
    %v2783 = vpack.c.b16 %v2757, %v2756
    %v2784 = vpack.c.b16 %v2759, %v2758
    %v2785 = vpack.c.b16 %v2761, %v2760
    %v2786 = vpack.c.b16 %v2763, %v2762
    %v2787 = vpack.c.b16 %v2765, %v2764
    %v2788 = vpack.c.b16 %v2767, %v2766
    %v2789 = vpack.c.b16 %v2769, %v2768
    %v2790 = vpack.c.b16 %v2771, %v2770
    %v2791 = vpack.c.b16 %v2773, %v2772
    %v2792 = vpack.c.b16 %v2775, %v2774
    %v2793 = vpack.c.b16 %v2777, %v2776
    %2810 = vmatprep.subr.bf16.mxu0 0
    %2811 = vmatpush1.bf16.msra.mxu0 %v2785
    %2812 = vmatprep.subr.bf16.mxu0 0
    %2813 = vmatpush1.bf16.msra.mxu0 %v2784
    %2814 = vmatprep.subr.bf16.mxu0 0
    %2815 = vmatpush1.bf16.msra.mxu0 %v2783
    %2816 = vmatprep.subr.bf16.mxu0 0
    %2817 = vmatpush1.bf16.msra.mxu0 %v2782
    %2818 = vmatprep.subr.bf16.mxu0 0
    %2819 = vmatpush1.bf16.msra.mxu0 %v2781
    %2820 = vmatprep.subr.bf16.mxu0 0
    %2821 = vmatpush1.bf16.msra.mxu0 %v2780
    %2822 = vmatprep.subr.bf16.mxu0 0
    %2823 = vmatpush1.bf16.msra.mxu0 %v2779
    %2824 = vmatprep.subr.bf16.mxu0 0
    %2825 = vmatpush1.bf16.msra.mxu0 %v2778
    %2826 = vmatprep.subr.bf16.mxu0 0
    %2827 = vmatpush2.bf16.msra.mxu0 %v2793
    %2828 = vmatprep.subr.bf16.mxu0 0
    %2829 = vmatpush2.bf16.msra.mxu0 %v2792
    %2830 = vmatprep.subr.bf16.mxu0 0
    %2831 = vmatpush2.bf16.msra.mxu0 %v2791
    %2832 = vmatprep.subr.bf16.mxu0 0
    %2833 = vmatpush2.bf16.msra.mxu0 %v2790
    %2834 = vmatprep.subr.bf16.mxu0 0
    %2835 = vmatpush2.bf16.msra.mxu0 %v2789
    %2836 = vmatprep.subr.bf16.mxu0 0
    %2837 = vmatpush2.bf16.msra.mxu0 %v2788
    %2838 = vmatprep.subr.bf16.mxu0 0
    %2839 = vmatpush2.bf16.msra.mxu0 %v2787
    %2840 = vmatprep.subr.bf16.mxu0 0
    %2841 = vmatpush2.bf16.msra.mxu0 %v2786
    %2842 = vmatprep.mubr.bf16.mxu0 %v2668
    %2843 = vmatmul.mubr.bf16.gmra.mxu0 %v2667
    %v2844 = vpop.f32.mrf.mxu0
    %v2845 = vadd.f32 %v2712, %v2844
    %v2846 = vpop.f32.mrf.mxu0
    %v2847 = vpop.f32.mrf.mxu0
    %v2848 = vadd.f32 %v2712, %v2847
    %v2849 = vpop.f32.mrf.mxu0
    %2850 = vmatprep.mubr.bf16.mxu0 %v2670
    %2851 = vmatmul.mubr.bf16.gmra.mxu0 %v2669
    %v2852 = vpop.f32.mrf.mxu0
    %v2853 = vadd.f32 %v2712, %v2852
    %v2854 = vpop.f32.mrf.mxu0
    %v2855 = vpop.f32.mrf.mxu0
    %v2856 = vadd.f32 %v2712, %v2855
    %v2857 = vpop.f32.mrf.mxu0
    %2858 = vmatprep.mubr.bf16.mxu0 %v2672
    %2859 = vmatmul.mubr.bf16.gmra.mxu0 %v2671
    %v2860 = vpop.f32.mrf.mxu0
    %v2861 = vadd.f32 %v2712, %v2860
    %v2862 = vpop.f32.mrf.mxu0
    %v2863 = vpop.f32.mrf.mxu0
    %v2864 = vadd.f32 %v2712, %v2863
    %v2865 = vpop.f32.mrf.mxu0
    %2866 = vmatprep.mubr.bf16.mxu0 %v2674
    %2867 = vmatmul.mubr.bf16.gmra.mxu0 %v2673
    %v2868 = vpop.f32.mrf.mxu0
    %v2869 = vadd.f32 %v2712, %v2868
    %v2870 = vpop.f32.mrf.mxu0
    %v2871 = vpop.f32.mrf.mxu0
    %v2872 = vadd.f32 %v2712, %v2871
    %v2873 = vpop.f32.mrf.mxu0
    %2874 = vdwg.mxu0
    %v2875 = vpack.c.bf16 %v2848, %v2845
    %v2876 = vpack.c.bf16 %v2856, %v2853
    %v2877 = vpack.c.bf16 %v2864, %v2861
    %v2878 = vpack.c.bf16 %v2872, %v2869
    %v2883 = vunpack.c.l.b16 %v2875
    %v2884 = vunpack.c.h.b16 %v2875
    %v2885 = vunpack.c.l.b16 %v2876
    %v2886 = vunpack.c.h.b16 %v2876
    %v2887 = vunpack.c.l.b16 %v2877
    %v2888 = vunpack.c.h.b16 %v2877
    %v2889 = vunpack.c.l.b16 %v2878
    %v2890 = vunpack.c.h.b16 %v2878
    %v2891 = vpack.c.b16 %v2883, %v2883
    %v2892 = vpack.c.b16 %v2884, %v2884
    %v2893 = vpack.c.b16 %v2885, %v2885
    %v2894 = vpack.c.b16 %v2886, %v2886
    %v2895 = vpack.c.b16 %v2887, %v2887
    %v2896 = vpack.c.b16 %v2888, %v2888
    %v2897 = vpack.c.b16 %v2889, %v2889
    %v2898 = vpack.c.b16 %v2890, %v2890
    %2907 = vst [vmem:[#allocation11] sm:$0xf] %v2891
    %2908 = vst [vmem:[#allocation11 + $0x4] sm:$0xf] %v2892
    %2909 = vst [vmem:[#allocation11 + $0x8] sm:$0xf] %v2893
    %2910 = vst [vmem:[#allocation11 + $0xc] sm:$0xf] %v2894
    %2911 = vst [vmem:[#allocation11 + $0x10] sm:$0xf] %v2895
    %2912 = vst [vmem:[#allocation11 + $0x14] sm:$0xf] %v2896
    %2913 = vst [vmem:[#allocation11 + $0x18] sm:$0xf] %v2897
    %2914 = vst [vmem:[#allocation11 + $0x1c] sm:$0xf] %v2898
    // Predicated region
    $region50: #{tpu_custom_call.1} parent=1 // pred_check
      _
    $region51: #{tpu_custom_call.1} parent=1 // pred_check_branch
      %2916 = sbr.rel (0) target = $region53
    $region52: #{tpu_custom_call.1} parent=1 // pred_region
      %s2918 = ssub.s32 512, 512
      %2919 = vsyncadd [#allocation4], %s2918
      %s2920 = sshll.u32 [#allocation11], 4
      %s2921 = int_to_ptr.vmem [resolvable:$true] %s2920
      %2926 = dma.vmem_to_hbm [thread:$0]  %s2921, 512, %s7, [#allocation4], 64, 64, 4
    $region53: #{tpu_custom_call.1} parent=1 // pred_fallthru
      _
    // Predicated region
    $region54: #{tpu_custom_call.1} parent=1 // pred_check
      _
    $region55: #{tpu_custom_call.1} parent=1 // pred_check_branch
      %2928 = sbr.rel (0) target = $region57
    $region56: #{tpu_custom_call.1} parent=1 // pred_region
      %2929 = dma.done [#allocation4], 512
    $region57: #{tpu_custom_call.1} parent=1 // pred_fallthru
      _
    %2930 = vsyncpa [#allocation3], 1
    %2931 = vsyncpa [#allocation6], 1
    %2932 = vsyncpa [#allocation9], 1
    %2933 = vsyncpa [#allocation4], 1

// kernel: tpu_custom_call.1
$region0: #{tpu_custom_call.1}
  #allocation0 [shape = 'u32[]', space=smem, size = 0x4, offset = 0x4, fixed_abs, tag = 'smem constant byte address 0x4 - core index']
  #allocation1 [shape = 'u32[144,128]{1,0:T(1,128)}', space=vmem, size = 0x12000, scoped, tag = 'internal scratch']
  %s0 = inlined_call_operand.hbm [shape: bf16[64,784], index: 0, kind: input, shape index: {}]
  %s1 = inlined_call_operand.hbm [shape: bf16[784,512], index: 1, kind: input, shape index: {}]
  %s2 = inlined_call_operand.hbm [shape: f32[1,512], index: 2, kind: input, shape index: {}]
  %s3 = inlined_call_operand.hbm [shape: bf16[512,256], index: 3, kind: input, shape index: {}]
  %s4 = inlined_call_operand.vmem [shape: f32[1,256], index: 4, kind: input, shape index: {}]
  %s5 = inlined_call_operand.hbm [shape: bf16[256,128], index: 5, kind: input, shape index: {}]
  %s6 = inlined_call_operand.vmem [shape: f32[1,128], index: 6, kind: input, shape index: {}]
  %s7 = inlined_call_operand.hbm [shape: bf16[64,128], index: 7, kind: output, shape index: {}]
  %s8 = sld [smem:[#allocation0]]
  $region58: #{tpu_custom_call.1} parent=0
    _
  %s10 = ssub.s32 1, %s8
  %s11 = scalar_select 0, %s10, %s8
  $region1: #{tpu_custom_call.1} parent=0
    #allocation2 [shape = 'u8[114688]{0}', space=vmem, size = 0x1c000, scoped, tag = 'input window, operand 0, single buffered']
    #allocation3 [shape = 's32[1]{0}', space=sflag, size = 0x4, scoped, tag = 'scoped memory for tpu_custom_call.1']
    #allocation4 [shape = 's32[1]{0}', space=sflag, size = 0x4, scoped, tag = 'scoped memory for tpu_custom_call.1']
    #allocation5 [shape = 'u8[802816]{0}', space=vmem, size = 0xc4000, scoped, tag = 'input window, operand 1, single buffered']
    #allocation6 [shape = 's32[1]{0}', space=sflag, size = 0x4, scoped, tag = 'scoped memory for tpu_custom_call.1']
    #allocation7 [shape = 'u8[2048]{0}', space=vmem, size = 0x800, scoped, tag = 'input window, operand 2, single buffered']
    #allocation8 [shape = 'u8[262144]{0}', space=vmem, size = 0x40000, scoped, tag = 'input window, operand 3, single buffered']
    #allocation9 [shape = 's32[1]{0}', space=sflag, size = 0x4, scoped, tag = 'scoped memory for tpu_custom_call.1']
    #allocation10 [shape = 'u8[65536]{0}', space=vmem, size = 0x10000, scoped, tag = 'input window, operand 5, single buffered']
    #allocation11 [shape = 'u8[16384]{0}', space=vmem, size = 0x4000, scoped, tag = 'output window, operand 0, single buffered']
    %12 = vsyncpa [#allocation3], 0
    %13 = vsyncpa [#allocation6], 0
    %14 = vsyncpa [#allocation9], 0
    %15 = vsyncpa [#allocation4], 0
    // Predicated region
    $region2: #{tpu_custom_call.1} parent=1 // pred_check
      _
    $region3: #{tpu_custom_call.1} parent=1 // pred_check_branch
      %17 = sbr.rel (0) target = $region5
    $region4: #{tpu_custom_call.1} parent=1 // pred_region
      %s19 = ssub.s32 3584, 3584
      %20 = vsyncadd [#allocation3], %s19
      %s21 = sshll.u32 [#allocation2], 4
      %s22 = int_to_ptr.vmem [resolvable:$true] %s21
      %27 = dma.hbm_to_vmem [thread:$0]  %s0, 3584, %s22, [#allocation3], 448, 448, 28
    $region5: #{tpu_custom_call.1} parent=1 // pred_fallthru
      _
    // Predicated region
    $region6: #{tpu_custom_call.1} parent=1 // pred_check
      _
    $region7: #{tpu_custom_call.1} parent=1 // pred_check_branch
      %29 = sbr.rel (0) target = $region9
    $region8: #{tpu_custom_call.1} parent=1 // pred_region
      %s31 = ssub.s32 25088, 25088
      %32 = vsyncadd [#allocation6], %s31
      %s33 = sshll.u32 [#allocation5], 4
      %s34 = int_to_ptr.vmem [resolvable:$true] %s33
      %39 = dma.hbm_to_vmem [thread:$0]  %s1, 25088, %s34, [#allocation6], 256, 256, 16
    $region9: #{tpu_custom_call.1} parent=1 // pred_fallthru
      _
    // Predicated region
    $region10: #{tpu_custom_call.1} parent=1 // pred_check
      _
    $region11: #{tpu_custom_call.1} parent=1 // pred_check_branch
      %41 = sbr.rel (0) target = $region13
    $region12: #{tpu_custom_call.1} parent=1 // pred_region
      %s43 = ssub.s32 64, 64
      %44 = vsyncadd [#allocation6], %s43
      %s46 = sshll.u32 [#allocation7], 4
      %s47 = int_to_ptr.vmem [resolvable:$true] %s46
      %49 = dma.hbm_to_vmem [thread:$0]  %s2, 64, %s47, [#allocation6]
    $region13: #{tpu_custom_call.1} parent=1 // pred_fallthru
      _
    // Predicated region
    $region14: #{tpu_custom_call.1} parent=1 // pred_check
      _
    $region15: #{tpu_custom_call.1} parent=1 // pred_check_branch
      %51 = sbr.rel (0) target = $region17
    $region16: #{tpu_custom_call.1} parent=1 // pred_region
      %s53 = ssub.s32 8192, 8192
      %54 = vsyncadd [#allocation9], %s53
      %s55 = sshll.u32 [#allocation8], 4
      %s56 = int_to_ptr.vmem [resolvable:$true] %s55
      %61 = dma.hbm_to_vmem [thread:$0]  %s3, 8192, %s56, [#allocation9], 128, 128, 8
    $region17: #{tpu_custom_call.1} parent=1 // pred_fallthru
      _
    // Predicated region
    $region18: #{tpu_custom_call.1} parent=1 // pred_check
      _
    $region19: #{tpu_custom_call.1} parent=1 // pred_check_branch
      %63 = sbr.rel (0) target = $region21
    $region20: #{tpu_custom_call.1} parent=1 // pred_region
      _
    $region21: #{tpu_custom_call.1} parent=1 // pred_fallthru
      _
    // Predicated region
    $region22: #{tpu_custom_call.1} parent=1 // pred_check
      _
    $region23: #{tpu_custom_call.1} parent=1 // pred_check_branch
      %65 = sbr.rel (0) target = $region25
    $region24: #{tpu_custom_call.1} parent=1 // pred_region
      %s67 = ssub.s32 2048, 2048
      %68 = vsyncadd [#allocation9], %s67
      %s69 = sshll.u32 [#allocation10], 4
      %s70 = int_to_ptr.vmem [resolvable:$true] %s69
      %75 = dma.hbm_to_vmem [thread:$0]  %s5, 2048, %s70, [#allocation9], 64, 64, 4
    $region25: #{tpu_custom_call.1} parent=1 // pred_fallthru
      _
    // Predicated region
    $region26: #{tpu_custom_call.1} parent=1 // pred_check
      _
    $region27: #{tpu_custom_call.1} parent=1 // pred_check_branch
      %77 = sbr.rel (0) target = $region29
    $region28: #{tpu_custom_call.1} parent=1 // pred_region
      _
    $region29: #{tpu_custom_call.1} parent=1 // pred_fallthru
      _
    // Predicated region
    $region30: #{tpu_custom_call.1} parent=1 // pred_check
      _
    $region31: #{tpu_custom_call.1} parent=1 // pred_check_branch
      %79 = sbr.rel (0) target = $region33
    $region32: #{tpu_custom_call.1} parent=1 // pred_region
      %80 = dma.done [#allocation3], 3584
    $region33: #{tpu_custom_call.1} parent=1 // pred_fallthru
      _
    // Predicated region
    $region34: #{tpu_custom_call.1} parent=1 // pred_check
      _
    $region35: #{tpu_custom_call.1} parent=1 // pred_check_branch
      %82 = sbr.rel (0) target = $region37
    $region36: #{tpu_custom_call.1} parent=1 // pred_region
      %83 = dma.done [#allocation6], 25088
    $region37: #{tpu_custom_call.1} parent=1 // pred_fallthru
      _
    // Predicated region
    $region38: #{tpu_custom_call.1} parent=1 // pred_check
      _
    $region39: #{tpu_custom_call.1} parent=1 // pred_check_branch
      %85 = sbr.rel (0) target = $region41
    $region40: #{tpu_custom_call.1} parent=1 // pred_region
      %86 = dma.done [#allocation6], 64
    $region41: #{tpu_custom_call.1} parent=1 // pred_fallthru
      _
    // Predicated region
    $region42: #{tpu_custom_call.1} parent=1 // pred_check
      _
    $region43: #{tpu_custom_call.1} parent=1 // pred_check_branch
      %88 = sbr.rel (0) target = $region45
    $region44: #{tpu_custom_call.1} parent=1 // pred_region
      %89 = dma.done [#allocation9], 8192
    $region45: #{tpu_custom_call.1} parent=1 // pred_fallthru
      _
    // Predicated region
    $region46: #{tpu_custom_call.1} parent=1 // pred_check
      _
    $region47: #{tpu_custom_call.1} parent=1 // pred_check_branch
      %91 = sbr.rel (0) target = $region49
    $region48: #{tpu_custom_call.1} parent=1 // pred_region
      %92 = dma.done [#allocation9], 2048
    $region49: #{tpu_custom_call.1} parent=1 // pred_fallthru
      _
    %v94 = vld [vmem:[#allocation2] sm:$0xff]
    %v95 = vld [vmem:[#allocation2 + $0x8] sm:$0xff]
    %v96 = vld [vmem:[#allocation2 + $0x10] sm:$0xff]
    %v97 = vld [vmem:[#allocation2 + $0x18] sm:$0xf]
    %v98 = vld [vmem:[#allocation2 + $0x1c] sm:$0xff]
    %v99 = vld [vmem:[#allocation2 + $0x24] sm:$0xff]
    %v100 = vld [vmem:[#allocation2 + $0x2c] sm:$0xff]
    %v101 = vld [vmem:[#allocation2 + $0x34] sm:$0xf]
    %v102 = vld [vmem:[#allocation2 + $0x38] sm:$0xff]
    %v103 = vld [vmem:[#allocation2 + $0x40] sm:$0xff]
    %v104 = vld [vmem:[#allocation2 + $0x48] sm:$0xff]
    %v105 = vld [vmem:[#allocation2 + $0x50] sm:$0xf]
    %v106 = vld [vmem:[#allocation2 + $0x54] sm:$0xff]
    %v107 = vld [vmem:[#allocation2 + $0x5c] sm:$0xff]
    %v108 = vld [vmem:[#allocation2 + $0x64] sm:$0xff]
    %v109 = vld [vmem:[#allocation2 + $0x6c] sm:$0xf]
    %v110 = vld [vmem:[#allocation2 + $0x70] sm:$0xff]
    %v111 = vld [vmem:[#allocation2 + $0x78] sm:$0xff]
    %v112 = vld [vmem:[#allocation2 + $0x80] sm:$0xff]
    %v113 = vld [vmem:[#allocation2 + $0x88] sm:$0xf]
    %v114 = vld [vmem:[#allocation2 + $0x8c] sm:$0xff]
    %v115 = vld [vmem:[#allocation2 + $0x94] sm:$0xff]
    %v116 = vld [vmem:[#allocation2 + $0x9c] sm:$0xff]
    %v117 = vld [vmem:[#allocation2 + $0xa4] sm:$0xf]
    %v118 = vld [vmem:[#allocation2 + $0xa8] sm:$0xff]
    %v119 = vld [vmem:[#allocation2 + $0xb0] sm:$0xff]
    %v120 = vld [vmem:[#allocation2 + $0xb8] sm:$0xff]
    %v121 = vld [vmem:[#allocation2 + $0xc0] sm:$0xf]
    %v122 = vld [vmem:[#allocation2 + $0xc4] sm:$0xff]
    %v123 = vld [vmem:[#allocation2 + $0xcc] sm:$0xff]
    %v124 = vld [vmem:[#allocation2 + $0xd4] sm:$0xff]
    %v125 = vld [vmem:[#allocation2 + $0xdc] sm:$0xf]
    %v126 = vld [vmem:[#allocation5] sm:$0xff]
    %v127 = vld [vmem:[#allocation5 + $0x8] sm:$0xff]
    %v128 = vld [vmem:[#allocation5 + $0x10] sm:$0xff]
    %v129 = vld [vmem:[#allocation5 + $0x18] sm:$0xff]
    %v130 = vld [vmem:[#allocation5 + $0x20] sm:$0xff]
    %v131 = vld [vmem:[#allocation5 + $0x28] sm:$0xff]
    %v132 = vld [vmem:[#allocation5 + $0x30] sm:$0xff]
    %v133 = vld [vmem:[#allocation5 + $0x38] sm:$0xff]
    %v134 = vld [vmem:[#allocation5 + $0x40] sm:$0xff]
    %v135 = vld [vmem:[#allocation5 + $0x48] sm:$0xff]
    %v136 = vld [vmem:[#allocation5 + $0x50] sm:$0xff]
    %v137 = vld [vmem:[#allocation5 + $0x58] sm:$0xff]
    %v138 = vld [vmem:[#allocation5 + $0x60] sm:$0xff]
    %v139 = vld [vmem:[#allocation5 + $0x68] sm:$0xff]
    %v140 = vld [vmem:[#allocation5 + $0x70] sm:$0xff]
    %v141 = vld [vmem:[#allocation5 + $0x78] sm:$0xff]
    %v142 = vld [vmem:[#allocation5 + $0x80] sm:$0xff]
    %v143 = vld [vmem:[#allocation5 + $0x88] sm:$0xff]
    %v144 = vld [vmem:[#allocation5 + $0x90] sm:$0xff]
    %v145 = vld [vmem:[#allocation5 + $0x98] sm:$0xff]
    %v146 = vld [vmem:[#allocation5 + $0xa0] sm:$0xff]
    %v147 = vld [vmem:[#allocation5 + $0xa8] sm:$0xff]
    %v148 = vld [vmem:[#allocation5 + $0xb0] sm:$0xff]
    %v149 = vld [vmem:[#allocation5 + $0xb8] sm:$0xff]
    %v150 = vld [vmem:[#allocation5 + $0xc0] sm:$0xff]
    %v151 = vld [vmem:[#allocation5 + $0xc8] sm:$0xff]
    %v152 = vld [vmem:[#allocation5 + $0xd0] sm:$0xff]
    %v153 = vld [vmem:[#allocation5 + $0xd8] sm:$0xff]
    %v154 = vld [vmem:[#allocation5 + $0xe0] sm:$0xff]
    %v155 = vld [vmem:[#allocation5 + $0xe8] sm:$0xff]
    %v156 = vld [vmem:[#allocation5 + $0xf0] sm:$0xff]
    %v157 = vld [vmem:[#allocation5 + $0xf8] sm:$0xff]
    %v158 = vld [vmem:[#allocation5 + $0x100] sm:$0xff]
    %v159 = vld [vmem:[#allocation5 + $0x108] sm:$0xff]
    %v160 = vld [vmem:[#allocation5 + $0x110] sm:$0xff]
    %v161 = vld [vmem:[#allocation5 + $0x118] sm:$0xff]
    %v162 = vld [vmem:[#allocation5 + $0x120] sm:$0xff]
    %v163 = vld [vmem:[#allocation5 + $0x128] sm:$0xff]
    %v164 = vld [vmem:[#allocation5 + $0x130] sm:$0xff]
    %v165 = vld [vmem:[#allocation5 + $0x138] sm:$0xff]
    %v166 = vld [vmem:[#allocation5 + $0x140] sm:$0xff]
    %v167 = vld [vmem:[#allocation5 + $0x148] sm:$0xff]
    %v168 = vld [vmem:[#allocation5 + $0x150] sm:$0xff]
    %v169 = vld [vmem:[#allocation5 + $0x158] sm:$0xff]
    %v170 = vld [vmem:[#allocation5 + $0x160] sm:$0xff]
    %v171 = vld [vmem:[#allocation5 + $0x168] sm:$0xff]
    %v172 = vld [vmem:[#allocation5 + $0x170] sm:$0xff]
    %v173 = vld [vmem:[#allocation5 + $0x178] sm:$0xff]
    %v174 = vld [vmem:[#allocation5 + $0x180] sm:$0xff]
    %v175 = vld [vmem:[#allocation5 + $0x188] sm:$0xff]
    %v176 = vld [vmem:[#allocation5 + $0x190] sm:$0xff]
    %v177 = vld [vmem:[#allocation5 + $0x198] sm:$0xff]
    %v178 = vld [vmem:[#allocation5 + $0x1a0] sm:$0xff]
    %v179 = vld [vmem:[#allocation5 + $0x1a8] sm:$0xff]
    %v180 = vld [vmem:[#allocation5 + $0x1b0] sm:$0xff]
    %v181 = vld [vmem:[#allocation5 + $0x1b8] sm:$0xff]
    %v182 = vld [vmem:[#allocation5 + $0x1c0] sm:$0xff]
    %v183 = vld [vmem:[#allocation5 + $0x1c8] sm:$0xff]
    %v184 = vld [vmem:[#allocation5 + $0x1d0] sm:$0xff]
    %v185 = vld [vmem:[#allocation5 + $0x1d8] sm:$0xff]
    %v186 = vld [vmem:[#allocation5 + $0x1e0] sm:$0xff]
    %v187 = vld [vmem:[#allocation5 + $0x1e8] sm:$0xff]
    %v188 = vld [vmem:[#allocation5 + $0x1f0] sm:$0xff]
    %v189 = vld [vmem:[#allocation5 + $0x1f8] sm:$0xff]
    %v190 = vld [vmem:[#allocation5 + $0x200] sm:$0xff]
    %v191 = vld [vmem:[#allocation5 + $0x208] sm:$0xff]
    %v192 = vld [vmem:[#allocation5 + $0x210] sm:$0xff]
    %v193 = vld [vmem:[#allocation5 + $0x218] sm:$0xff]
    %v194 = vld [vmem:[#allocation5 + $0x220] sm:$0xff]
    %v195 = vld [vmem:[#allocation5 + $0x228] sm:$0xff]
    %v196 = vld [vmem:[#allocation5 + $0x230] sm:$0xff]
    %v197 = vld [vmem:[#allocation5 + $0x238] sm:$0xff]
    %v198 = vld [vmem:[#allocation5 + $0x240] sm:$0xff]
    %v199 = vld [vmem:[#allocation5 + $0x248] sm:$0xff]
    %v200 = vld [vmem:[#allocation5 + $0x250] sm:$0xff]
    %v201 = vld [vmem:[#allocation5 + $0x258] sm:$0xff]
    %v202 = vld [vmem:[#allocation5 + $0x260] sm:$0xff]
    %v203 = vld [vmem:[#allocation5 + $0x268] sm:$0xff]
    %v204 = vld [vmem:[#allocation5 + $0x270] sm:$0xff]
    %v205 = vld [vmem:[#allocation5 + $0x278] sm:$0xff]
    %v206 = vld [vmem:[#allocation5 + $0x280] sm:$0xff]
    %v207 = vld [vmem:[#allocation5 + $0x288] sm:$0xff]
    %v208 = vld [vmem:[#allocation5 + $0x290] sm:$0xff]
    %v209 = vld [vmem:[#allocation5 + $0x298] sm:$0xff]
    %v210 = vld [vmem:[#allocation5 + $0x2a0] sm:$0xff]
    %v211 = vld [vmem:[#allocation5 + $0x2a8] sm:$0xff]
    %v212 = vld [vmem:[#allocation5 + $0x2b0] sm:$0xff]
    %v213 = vld [vmem:[#allocation5 + $0x2b8] sm:$0xff]
    %v214 = vld [vmem:[#allocation5 + $0x2c0] sm:$0xff]
    %v215 = vld [vmem:[#allocation5 + $0x2c8] sm:$0xff]
    %v216 = vld [vmem:[#allocation5 + $0x2d0] sm:$0xff]
    %v217 = vld [vmem:[#allocation5 + $0x2d8] sm:$0xff]
    %v218 = vld [vmem:[#allocation5 + $0x2e0] sm:$0xff]
    %v219 = vld [vmem:[#allocation5 + $0x2e8] sm:$0xff]
    %v220 = vld [vmem:[#allocation5 + $0x2f0] sm:$0xff]
    %v221 = vld [vmem:[#allocation5 + $0x2f8] sm:$0xff]
    %v222 = vld [vmem:[#allocation5 + $0x300] sm:$0xff]
    %v223 = vld [vmem:[#allocation5 + $0x308] sm:$0xff]
    %v224 = vld [vmem:[#allocation5 + $0x310] sm:$0xff]
    %v225 = vld [vmem:[#allocation5 + $0x318] sm:$0xff]
    %v226 = vld [vmem:[#allocation5 + $0x320] sm:$0xff]
    %v227 = vld [vmem:[#allocation5 + $0x328] sm:$0xff]
    %v228 = vld [vmem:[#allocation5 + $0x330] sm:$0xff]
    %v229 = vld [vmem:[#allocation5 + $0x338] sm:$0xff]
    %v230 = vld [vmem:[#allocation5 + $0x340] sm:$0xff]
    %v231 = vld [vmem:[#allocation5 + $0x348] sm:$0xff]
    %v232 = vld [vmem:[#allocation5 + $0x350] sm:$0xff]
    %v233 = vld [vmem:[#allocation5 + $0x358] sm:$0xff]
    %v234 = vld [vmem:[#allocation5 + $0x360] sm:$0xff]
    %v235 = vld [vmem:[#allocation5 + $0x368] sm:$0xff]
    %v236 = vld [vmem:[#allocation5 + $0x370] sm:$0xff]
    %v237 = vld [vmem:[#allocation5 + $0x378] sm:$0xff]
    %v238 = vld [vmem:[#allocation5 + $0x380] sm:$0xff]
    %v239 = vld [vmem:[#allocation5 + $0x388] sm:$0xff]
    %v240 = vld [vmem:[#allocation5 + $0x390] sm:$0xff]
    %v241 = vld [vmem:[#allocation5 + $0x398] sm:$0xff]
    %v242 = vld [vmem:[#allocation5 + $0x3a0] sm:$0xff]
    %v243 = vld [vmem:[#allocation5 + $0x3a8] sm:$0xff]
    %v244 = vld [vmem:[#allocation5 + $0x3b0] sm:$0xff]
    %v245 = vld [vmem:[#allocation5 + $0x3b8] sm:$0xff]
    %v246 = vld [vmem:[#allocation5 + $0x3c0] sm:$0xff]
    %v247 = vld [vmem:[#allocation5 + $0x3c8] sm:$0xff]
    %v248 = vld [vmem:[#allocation5 + $0x3d0] sm:$0xff]
    %v249 = vld [vmem:[#allocation5 + $0x3d8] sm:$0xff]
    %v250 = vld [vmem:[#allocation5 + $0x3e0] sm:$0xff]
    %v251 = vld [vmem:[#allocation5 + $0x3e8] sm:$0xff]
    %v252 = vld [vmem:[#allocation5 + $0x3f0] sm:$0xff]
    %v253 = vld [vmem:[#allocation5 + $0x3f8] sm:$0xff]
    %v254 = vld [vmem:[#allocation5 + $0x400] sm:$0xff]
    %v255 = vld [vmem:[#allocation5 + $0x408] sm:$0xff]
    %v256 = vld [vmem:[#allocation5 + $0x410] sm:$0xff]
    %v257 = vld [vmem:[#allocation5 + $0x418] sm:$0xff]
    %v258 = vld [vmem:[#allocation5 + $0x420] sm:$0xff]
    %v259 = vld [vmem:[#allocation5 + $0x428] sm:$0xff]
    %v260 = vld [vmem:[#allocation5 + $0x430] sm:$0xff]
    %v261 = vld [vmem:[#allocation5 + $0x438] sm:$0xff]
    %v262 = vld [vmem:[#allocation5 + $0x440] sm:$0xff]
    %v263 = vld [vmem:[#allocation5 + $0x448] sm:$0xff]
    %v264 = vld [vmem:[#allocation5 + $0x450] sm:$0xff]
    %v265 = vld [vmem:[#allocation5 + $0x458] sm:$0xff]
    %v266 = vld [vmem:[#allocation5 + $0x460] sm:$0xff]
    %v267 = vld [vmem:[#allocation5 + $0x468] sm:$0xff]
    %v268 = vld [vmem:[#allocation5 + $0x470] sm:$0xff]
    %v269 = vld [vmem:[#allocation5 + $0x478] sm:$0xff]
    %v270 = vld [vmem:[#allocation5 + $0x480] sm:$0xff]
    %v271 = vld [vmem:[#allocation5 + $0x488] sm:$0xff]
    %v272 = vld [vmem:[#allocation5 + $0x490] sm:$0xff]
    %v273 = vld [vmem:[#allocation5 + $0x498] sm:$0xff]
    %v274 = vld [vmem:[#allocation5 + $0x4a0] sm:$0xff]
    %v275 = vld [vmem:[#allocation5 + $0x4a8] sm:$0xff]
    %v276 = vld [vmem:[#allocation5 + $0x4b0] sm:$0xff]
    %v277 = vld [vmem:[#allocation5 + $0x4b8] sm:$0xff]
    %v278 = vld [vmem:[#allocation5 + $0x4c0] sm:$0xff]
    %v279 = vld [vmem:[#allocation5 + $0x4c8] sm:$0xff]
    %v280 = vld [vmem:[#allocation5 + $0x4d0] sm:$0xff]
    %v281 = vld [vmem:[#allocation5 + $0x4d8] sm:$0xff]
    %v282 = vld [vmem:[#allocation5 + $0x4e0] sm:$0xff]
    %v283 = vld [vmem:[#allocation5 + $0x4e8] sm:$0xff]
    %v284 = vld [vmem:[#allocation5 + $0x4f0] sm:$0xff]
    %v285 = vld [vmem:[#allocation5 + $0x4f8] sm:$0xff]
    %v286 = vld [vmem:[#allocation5 + $0x500] sm:$0xff]
    %v287 = vld [vmem:[#allocation5 + $0x508] sm:$0xff]
    %v288 = vld [vmem:[#allocation5 + $0x510] sm:$0xff]
    %v289 = vld [vmem:[#allocation5 + $0x518] sm:$0xff]
    %v290 = vld [vmem:[#allocation5 + $0x520] sm:$0xff]
    %v291 = vld [vmem:[#allocation5 + $0x528] sm:$0xff]
    %v292 = vld [vmem:[#allocation5 + $0x530] sm:$0xff]
    %v293 = vld [vmem:[#allocation5 + $0x538] sm:$0xff]
    %v294 = vld [vmem:[#allocation5 + $0x540] sm:$0xff]
    %v295 = vld [vmem:[#allocation5 + $0x548] sm:$0xff]
    %v296 = vld [vmem:[#allocation5 + $0x550] sm:$0xff]
    %v297 = vld [vmem:[#allocation5 + $0x558] sm:$0xff]
    %v298 = vld [vmem:[#allocation5 + $0x560] sm:$0xff]
    %v299 = vld [vmem:[#allocation5 + $0x568] sm:$0xff]
    %v300 = vld [vmem:[#allocation5 + $0x570] sm:$0xff]
    %v301 = vld [vmem:[#allocation5 + $0x578] sm:$0xff]
    %v302 = vld [vmem:[#allocation5 + $0x580] sm:$0xff]
    %v303 = vld [vmem:[#allocation5 + $0x588] sm:$0xff]
    %v304 = vld [vmem:[#allocation5 + $0x590] sm:$0xff]
    %v305 = vld [vmem:[#allocation5 + $0x598] sm:$0xff]
    %v306 = vld [vmem:[#allocation5 + $0x5a0] sm:$0xff]
    %v307 = vld [vmem:[#allocation5 + $0x5a8] sm:$0xff]
    %v308 = vld [vmem:[#allocation5 + $0x5b0] sm:$0xff]
    %v309 = vld [vmem:[#allocation5 + $0x5b8] sm:$0xff]
    %v310 = vld [vmem:[#allocation5 + $0x5c0] sm:$0xff]
    %v311 = vld [vmem:[#allocation5 + $0x5c8] sm:$0xff]
    %v312 = vld [vmem:[#allocation5 + $0x5d0] sm:$0xff]
    %v313 = vld [vmem:[#allocation5 + $0x5d8] sm:$0xff]
    %v314 = vld [vmem:[#allocation5 + $0x5e0] sm:$0xff]
    %v315 = vld [vmem:[#allocation5 + $0x5e8] sm:$0xff]
    %v316 = vld [vmem:[#allocation5 + $0x5f0] sm:$0xff]
    %v317 = vld [vmem:[#allocation5 + $0x5f8] sm:$0xff]
    %v318 = vld [vmem:[#allocation5 + $0x600] sm:$0xff]
    %v319 = vld [vmem:[#allocation5 + $0x608] sm:$0xff]
    %v320 = vld [vmem:[#allocation5 + $0x610] sm:$0xff]
    %v321 = vld [vmem:[#allocation5 + $0x618] sm:$0xff]
    %v322 = vld [vmem:[#allocation7] sm:$0xf]
    %v324 = vlaneseq
    %v325 = vshrl.u32 %v324, 7
    %v326 = vsub.s32 0, %v325
    %v327 = vrot.slane %v322, %v326
    %v328 = vlaneseq
    %v329 = vshrl.u32 %v328, 7
    %v330 = vsub.s32 1, %v329
    %v331 = vrot.slane %v322, %v330
    %v332 = vlaneseq
    %v333 = vshrl.u32 %v332, 7
    %v334 = vsub.s32 2, %v333
    %v335 = vrot.slane %v322, %v334
    %v336 = vlaneseq
    %v337 = vshrl.u32 %v336, 7
    %v338 = vsub.s32 3, %v337
    %v339 = vrot.slane %v322, %v338
    %v376 = vunpack.c.l.b16 %v94
    %v377 = vunpack.c.h.b16 %v94
    %v378 = vunpack.c.l.b16 %v95
    %v379 = vunpack.c.h.b16 %v95
    %v380 = vunpack.c.l.b16 %v96
    %v381 = vunpack.c.h.b16 %v96
    %v382 = vunpack.c.l.b16 %v97
    %v383 = vunpack.c.l.b16 %v98
    %v384 = vunpack.c.h.b16 %v98
    %v385 = vunpack.c.l.b16 %v99
    %v386 = vunpack.c.h.b16 %v99
    %v387 = vunpack.c.l.b16 %v100
    %v388 = vunpack.c.h.b16 %v100
    %v389 = vunpack.c.l.b16 %v101
    %v390 = vunpack.c.l.b16 %v102
    %v391 = vunpack.c.h.b16 %v102
    %v392 = vunpack.c.l.b16 %v103
    %v393 = vunpack.c.h.b16 %v103
    %v394 = vunpack.c.l.b16 %v104
    %v395 = vunpack.c.h.b16 %v104
    %v396 = vunpack.c.l.b16 %v105
    %v397 = vunpack.c.l.b16 %v106
    %v398 = vunpack.c.h.b16 %v106
    %v399 = vunpack.c.l.b16 %v107
    %v400 = vunpack.c.h.b16 %v107
    %v401 = vunpack.c.l.b16 %v108
    %v402 = vunpack.c.h.b16 %v108
    %v403 = vunpack.c.l.b16 %v109
    %v404 = vunpack.c.l.b16 %v110
    %v405 = vunpack.c.h.b16 %v110
    %v406 = vunpack.c.l.b16 %v111
    %v407 = vunpack.c.h.b16 %v111
    %v408 = vunpack.c.l.b16 %v112
    %v409 = vunpack.c.h.b16 %v112
    %v410 = vunpack.c.l.b16 %v113
    %v411 = vunpack.c.l.b16 %v114
    %v412 = vunpack.c.h.b16 %v114
    %v413 = vunpack.c.l.b16 %v115
    %v414 = vunpack.c.h.b16 %v115
    %v415 = vunpack.c.l.b16 %v116
    %v416 = vunpack.c.h.b16 %v116
    %v417 = vunpack.c.l.b16 %v117
    %v418 = vunpack.c.l.b16 %v118
    %v419 = vunpack.c.h.b16 %v118
    %v420 = vunpack.c.l.b16 %v119
    %v421 = vunpack.c.h.b16 %v119
    %v422 = vunpack.c.l.b16 %v120
    %v423 = vunpack.c.h.b16 %v120
    %v424 = vunpack.c.l.b16 %v121
    %v425 = vunpack.c.l.b16 %v122
    %v426 = vunpack.c.h.b16 %v122
    %v427 = vunpack.c.l.b16 %v123
    %v428 = vunpack.c.h.b16 %v123
    %v429 = vunpack.c.l.b16 %v124
    %v430 = vunpack.c.h.b16 %v124
    %v431 = vunpack.c.l.b16 %v125
    %v432 = vpack.c.b16 %v383, %v376
    %v433 = vpack.c.b16 %v384, %v377
    %v434 = vpack.c.b16 %v385, %v378
    %v435 = vpack.c.b16 %v386, %v379
    %v436 = vpack.c.b16 %v387, %v380
    %v437 = vpack.c.b16 %v388, %v381
    %v438 = vpack.c.b16 %v389, %v382
    %v439 = vpack.c.b16 %v397, %v390
    %v440 = vpack.c.b16 %v398, %v391
    %v441 = vpack.c.b16 %v399, %v392
    %v442 = vpack.c.b16 %v400, %v393
    %v443 = vpack.c.b16 %v401, %v394
    %v444 = vpack.c.b16 %v402, %v395
    %v445 = vpack.c.b16 %v403, %v396
    %v446 = vpack.c.b16 %v411, %v404
    %v447 = vpack.c.b16 %v412, %v405
    %v448 = vpack.c.b16 %v413, %v406
    %v449 = vpack.c.b16 %v414, %v407
    %v450 = vpack.c.b16 %v415, %v408
    %v451 = vpack.c.b16 %v416, %v409
    %v452 = vpack.c.b16 %v417, %v410
    %v453 = vpack.c.b16 %v425, %v418
    %v454 = vpack.c.b16 %v426, %v419
    %v455 = vpack.c.b16 %v427, %v420
    %v456 = vpack.c.b16 %v428, %v421
    %v457 = vpack.c.b16 %v429, %v422
    %v458 = vpack.c.b16 %v430, %v423
    %v459 = vpack.c.b16 %v431, %v424
    %v680 = vunpack.c.l.b16 %v126
    %v681 = vunpack.c.h.b16 %v126
    %v682 = vunpack.c.l.b16 %v127
    %v683 = vunpack.c.h.b16 %v127
    %v684 = vunpack.c.l.b16 %v128
    %v685 = vunpack.c.h.b16 %v128
    %v686 = vunpack.c.l.b16 %v129
    %v687 = vunpack.c.h.b16 %v129
    %v688 = vunpack.c.l.b16 %v130
    %v689 = vunpack.c.h.b16 %v130
    %v690 = vunpack.c.l.b16 %v131
    %v691 = vunpack.c.h.b16 %v131
    %v692 = vunpack.c.l.b16 %v132
    %v693 = vunpack.c.h.b16 %v132
    %v694 = vunpack.c.l.b16 %v133
    %v695 = vunpack.c.h.b16 %v133
    %v696 = vunpack.c.l.b16 %v134
    %v697 = vunpack.c.h.b16 %v134
    %v698 = vunpack.c.l.b16 %v135
    %v699 = vunpack.c.h.b16 %v135
    %v700 = vunpack.c.l.b16 %v136
    %v701 = vunpack.c.h.b16 %v136
    %v702 = vunpack.c.l.b16 %v137
    %v703 = vunpack.c.h.b16 %v137
    %v704 = vunpack.c.l.b16 %v138
    %v705 = vunpack.c.h.b16 %v138
    %v706 = vunpack.c.l.b16 %v139
    %v707 = vunpack.c.h.b16 %v139
    %v708 = vunpack.c.l.b16 %v140
    %v709 = vunpack.c.h.b16 %v140
    %v710 = vunpack.c.l.b16 %v141
    %v711 = vunpack.c.h.b16 %v141
    %v712 = vunpack.c.l.b16 %v142
    %v713 = vunpack.c.h.b16 %v142
    %v714 = vunpack.c.l.b16 %v143
    %v715 = vunpack.c.h.b16 %v143
    %v716 = vunpack.c.l.b16 %v144
    %v717 = vunpack.c.h.b16 %v144
    %v718 = vunpack.c.l.b16 %v145
    %v719 = vunpack.c.h.b16 %v145
    %v720 = vunpack.c.l.b16 %v146
    %v721 = vunpack.c.h.b16 %v146
    %v722 = vunpack.c.l.b16 %v147
    %v723 = vunpack.c.h.b16 %v147
    %v724 = vunpack.c.l.b16 %v148
    %v725 = vunpack.c.h.b16 %v148
    %v726 = vunpack.c.l.b16 %v149
    %v727 = vunpack.c.h.b16 %v149
    %v728 = vunpack.c.l.b16 %v150
    %v729 = vunpack.c.h.b16 %v150
    %v730 = vunpack.c.l.b16 %v151
    %v731 = vunpack.c.h.b16 %v151
    %v732 = vunpack.c.l.b16 %v152
    %v733 = vunpack.c.h.b16 %v152
    %v734 = vunpack.c.l.b16 %v153
    %v735 = vunpack.c.h.b16 %v153
    %v736 = vunpack.c.l.b16 %v154
    %v737 = vunpack.c.h.b16 %v154
    %v738 = vunpack.c.l.b16 %v155
    %v739 = vunpack.c.h.b16 %v155
    %v740 = vunpack.c.l.b16 %v156
    %v741 = vunpack.c.h.b16 %v156
    %v742 = vunpack.c.l.b16 %v157
    %v743 = vunpack.c.h.b16 %v157
    %v744 = vunpack.c.l.b16 %v158
    %v745 = vunpack.c.h.b16 %v158
    %v746 = vunpack.c.l.b16 %v159
    %v747 = vunpack.c.h.b16 %v159
    %v748 = vunpack.c.l.b16 %v160
    %v749 = vunpack.c.h.b16 %v160
    %v750 = vunpack.c.l.b16 %v161
    %v751 = vunpack.c.h.b16 %v161
    %v752 = vunpack.c.l.b16 %v162
    %v753 = vunpack.c.h.b16 %v162
    %v754 = vunpack.c.l.b16 %v163
    %v755 = vunpack.c.h.b16 %v163
    %v756 = vunpack.c.l.b16 %v164
    %v757 = vunpack.c.h.b16 %v164
    %v758 = vunpack.c.l.b16 %v165
    %v759 = vunpack.c.h.b16 %v165
    %v760 = vunpack.c.l.b16 %v166
    %v761 = vunpack.c.h.b16 %v166
    %v762 = vunpack.c.l.b16 %v167
    %v763 = vunpack.c.h.b16 %v167
    %v764 = vunpack.c.l.b16 %v168
    %v765 = vunpack.c.h.b16 %v168
    %v766 = vunpack.c.l.b16 %v169
    %v767 = vunpack.c.h.b16 %v169
    %v768 = vunpack.c.l.b16 %v170
    %v769 = vunpack.c.h.b16 %v170
    %v770 = vunpack.c.l.b16 %v171
    %v771 = vunpack.c.h.b16 %v171
    %v772 = vunpack.c.l.b16 %v172
    %v773 = vunpack.c.h.b16 %v172
    %v774 = vunpack.c.l.b16 %v173
    %v775 = vunpack.c.h.b16 %v173
    %v776 = vunpack.c.l.b16 %v174
    %v777 = vunpack.c.h.b16 %v174
    %v778 = vunpack.c.l.b16 %v175
    %v779 = vunpack.c.h.b16 %v175
    %v780 = vunpack.c.l.b16 %v176
    %v781 = vunpack.c.h.b16 %v176
    %v782 = vunpack.c.l.b16 %v177
    %v783 = vunpack.c.h.b16 %v177
    %v784 = vunpack.c.l.b16 %v178
    %v785 = vunpack.c.h.b16 %v178
    %v786 = vunpack.c.l.b16 %v179
    %v787 = vunpack.c.h.b16 %v179
    %v788 = vunpack.c.l.b16 %v180
    %v789 = vunpack.c.h.b16 %v180
    %v790 = vunpack.c.l.b16 %v181
    %v791 = vunpack.c.h.b16 %v181
    %v792 = vunpack.c.l.b16 %v182
    %v793 = vunpack.c.h.b16 %v182
    %v794 = vunpack.c.l.b16 %v183
    %v795 = vunpack.c.h.b16 %v183
    %v796 = vunpack.c.l.b16 %v184
    %v797 = vunpack.c.h.b16 %v184
    %v798 = vunpack.c.l.b16 %v185
    %v799 = vunpack.c.h.b16 %v185
    %v800 = vunpack.c.l.b16 %v186
    %v801 = vunpack.c.h.b16 %v186
    %v802 = vunpack.c.l.b16 %v187
    %v803 = vunpack.c.h.b16 %v187
    %v804 = vunpack.c.l.b16 %v188
    %v805 = vunpack.c.h.b16 %v188
    %v806 = vunpack.c.l.b16 %v189
    %v807 = vunpack.c.h.b16 %v189
    %v808 = vunpack.c.l.b16 %v190
    %v809 = vunpack.c.h.b16 %v190
    %v810 = vunpack.c.l.b16 %v191
    %v811 = vunpack.c.h.b16 %v191
    %v812 = vunpack.c.l.b16 %v192
    %v813 = vunpack.c.h.b16 %v192
    %v814 = vunpack.c.l.b16 %v193
    %v815 = vunpack.c.h.b16 %v193
    %v816 = vunpack.c.l.b16 %v194
    %v817 = vunpack.c.h.b16 %v194
    %v818 = vunpack.c.l.b16 %v195
    %v819 = vunpack.c.h.b16 %v195
    %v820 = vunpack.c.l.b16 %v196
    %v821 = vunpack.c.h.b16 %v196
    %v822 = vunpack.c.l.b16 %v197
    %v823 = vunpack.c.h.b16 %v197
    %v824 = vunpack.c.l.b16 %v198
    %v825 = vunpack.c.h.b16 %v198
    %v826 = vunpack.c.l.b16 %v199
    %v827 = vunpack.c.h.b16 %v199
    %v828 = vunpack.c.l.b16 %v200
    %v829 = vunpack.c.h.b16 %v200
    %v830 = vunpack.c.l.b16 %v201
    %v831 = vunpack.c.h.b16 %v201
    %v832 = vunpack.c.l.b16 %v202
    %v833 = vunpack.c.h.b16 %v202
    %v834 = vunpack.c.l.b16 %v203
    %v835 = vunpack.c.h.b16 %v203
    %v836 = vunpack.c.l.b16 %v204
    %v837 = vunpack.c.h.b16 %v204
    %v838 = vunpack.c.l.b16 %v205
    %v839 = vunpack.c.h.b16 %v205
    %v840 = vunpack.c.l.b16 %v206
    %v841 = vunpack.c.h.b16 %v206
    %v842 = vunpack.c.l.b16 %v207
    %v843 = vunpack.c.h.b16 %v207
    %v844 = vunpack.c.l.b16 %v208
    %v845 = vunpack.c.h.b16 %v208
    %v846 = vunpack.c.l.b16 %v209
    %v847 = vunpack.c.h.b16 %v209
    %v848 = vunpack.c.l.b16 %v210
    %v849 = vunpack.c.h.b16 %v210
    %v850 = vunpack.c.l.b16 %v211
    %v851 = vunpack.c.h.b16 %v211
    %v852 = vunpack.c.l.b16 %v212
    %v853 = vunpack.c.h.b16 %v212
    %v854 = vunpack.c.l.b16 %v213
    %v855 = vunpack.c.h.b16 %v213
    %v856 = vunpack.c.l.b16 %v214
    %v857 = vunpack.c.h.b16 %v214
    %v858 = vunpack.c.l.b16 %v215
    %v859 = vunpack.c.h.b16 %v215
    %v860 = vunpack.c.l.b16 %v216
    %v861 = vunpack.c.h.b16 %v216
    %v862 = vunpack.c.l.b16 %v217
    %v863 = vunpack.c.h.b16 %v217
    %v864 = vunpack.c.l.b16 %v218
    %v865 = vunpack.c.h.b16 %v218
    %v866 = vunpack.c.l.b16 %v219
    %v867 = vunpack.c.h.b16 %v219
    %v868 = vunpack.c.l.b16 %v220
    %v869 = vunpack.c.h.b16 %v220
    %v870 = vunpack.c.l.b16 %v221
    %v871 = vunpack.c.h.b16 %v221
    %v872 = vunpack.c.l.b16 %v222
    %v873 = vunpack.c.h.b16 %v222
    %v874 = vunpack.c.l.b16 %v223
    %v875 = vunpack.c.h.b16 %v223
    %v876 = vunpack.c.l.b16 %v224
    %v877 = vunpack.c.h.b16 %v224
    %v878 = vunpack.c.l.b16 %v225
    %v879 = vunpack.c.h.b16 %v225
    %v880 = vunpack.c.l.b16 %v226
    %v881 = vunpack.c.h.b16 %v226
    %v882 = vunpack.c.l.b16 %v227
    %v883 = vunpack.c.h.b16 %v227
    %v884 = vunpack.c.l.b16 %v228
    %v885 = vunpack.c.h.b16 %v228
    %v886 = vunpack.c.l.b16 %v229
    %v887 = vunpack.c.h.b16 %v229
    %v888 = vunpack.c.l.b16 %v230
    %v889 = vunpack.c.h.b16 %v230
    %v890 = vunpack.c.l.b16 %v231
    %v891 = vunpack.c.h.b16 %v231
    %v892 = vunpack.c.l.b16 %v232
    %v893 = vunpack.c.h.b16 %v232
    %v894 = vunpack.c.l.b16 %v233
    %v895 = vunpack.c.h.b16 %v233
    %v896 = vunpack.c.l.b16 %v234
    %v897 = vunpack.c.h.b16 %v234
    %v898 = vunpack.c.l.b16 %v235
    %v899 = vunpack.c.h.b16 %v235
    %v900 = vunpack.c.l.b16 %v236
    %v901 = vunpack.c.h.b16 %v236
    %v902 = vunpack.c.l.b16 %v237
    %v903 = vunpack.c.h.b16 %v237
    %v904 = vunpack.c.l.b16 %v238
    %v905 = vunpack.c.h.b16 %v238
    %v906 = vunpack.c.l.b16 %v239
    %v907 = vunpack.c.h.b16 %v239
    %v908 = vunpack.c.l.b16 %v240
    %v909 = vunpack.c.h.b16 %v240
    %v910 = vunpack.c.l.b16 %v241
    %v911 = vunpack.c.h.b16 %v241
    %v912 = vunpack.c.l.b16 %v242
    %v913 = vunpack.c.h.b16 %v242
    %v914 = vunpack.c.l.b16 %v243
    %v915 = vunpack.c.h.b16 %v243
    %v916 = vunpack.c.l.b16 %v244
    %v917 = vunpack.c.h.b16 %v244
    %v918 = vunpack.c.l.b16 %v245
    %v919 = vunpack.c.h.b16 %v245
    %v920 = vunpack.c.l.b16 %v246
    %v921 = vunpack.c.h.b16 %v246
    %v922 = vunpack.c.l.b16 %v247
    %v923 = vunpack.c.h.b16 %v247
    %v924 = vunpack.c.l.b16 %v248
    %v925 = vunpack.c.h.b16 %v248
    %v926 = vunpack.c.l.b16 %v249
    %v927 = vunpack.c.h.b16 %v249
    %v928 = vunpack.c.l.b16 %v250
    %v929 = vunpack.c.h.b16 %v250
    %v930 = vunpack.c.l.b16 %v251
    %v931 = vunpack.c.h.b16 %v251
    %v932 = vunpack.c.l.b16 %v252
    %v933 = vunpack.c.h.b16 %v252
    %v934 = vunpack.c.l.b16 %v253
    %v935 = vunpack.c.h.b16 %v253
    %v936 = vunpack.c.l.b16 %v254
    %v937 = vunpack.c.h.b16 %v254
    %v938 = vunpack.c.l.b16 %v255
    %v939 = vunpack.c.h.b16 %v255
    %v940 = vunpack.c.l.b16 %v256
    %v941 = vunpack.c.h.b16 %v256
    %v942 = vunpack.c.l.b16 %v257
    %v943 = vunpack.c.h.b16 %v257
    %v944 = vunpack.c.l.b16 %v258
    %v945 = vunpack.c.h.b16 %v258
    %v946 = vunpack.c.l.b16 %v259
    %v947 = vunpack.c.h.b16 %v259
    %v948 = vunpack.c.l.b16 %v260
    %v949 = vunpack.c.h.b16 %v260
    %v950 = vunpack.c.l.b16 %v261
    %v951 = vunpack.c.h.b16 %v261
    %v952 = vunpack.c.l.b16 %v262
    %v953 = vunpack.c.h.b16 %v262
    %v954 = vunpack.c.l.b16 %v263
    %v955 = vunpack.c.h.b16 %v263
    %v956 = vunpack.c.l.b16 %v264
    %v957 = vunpack.c.h.b16 %v264
    %v958 = vunpack.c.l.b16 %v265
    %v959 = vunpack.c.h.b16 %v265
    %v960 = vunpack.c.l.b16 %v266
    %v961 = vunpack.c.h.b16 %v266
    %v962 = vunpack.c.l.b16 %v267
    %v963 = vunpack.c.h.b16 %v267
    %v964 = vunpack.c.l.b16 %v268
    %v965 = vunpack.c.h.b16 %v268
    %v966 = vunpack.c.l.b16 %v269
    %v967 = vunpack.c.h.b16 %v269
    %v968 = vunpack.c.l.b16 %v270
    %v969 = vunpack.c.h.b16 %v270
    %v970 = vunpack.c.l.b16 %v271
    %v971 = vunpack.c.h.b16 %v271
    %v972 = vunpack.c.l.b16 %v272
    %v973 = vunpack.c.h.b16 %v272
    %v974 = vunpack.c.l.b16 %v273
    %v975 = vunpack.c.h.b16 %v273
    %v976 = vunpack.c.l.b16 %v274
    %v977 = vunpack.c.h.b16 %v274
    %v978 = vunpack.c.l.b16 %v275
    %v979 = vunpack.c.h.b16 %v275
    %v980 = vunpack.c.l.b16 %v276
    %v981 = vunpack.c.h.b16 %v276
    %v982 = vunpack.c.l.b16 %v277
    %v983 = vunpack.c.h.b16 %v277
    %v984 = vunpack.c.l.b16 %v278
    %v985 = vunpack.c.h.b16 %v278
    %v986 = vunpack.c.l.b16 %v279
    %v987 = vunpack.c.h.b16 %v279
    %v988 = vunpack.c.l.b16 %v280
    %v989 = vunpack.c.h.b16 %v280
    %v990 = vunpack.c.l.b16 %v281
    %v991 = vunpack.c.h.b16 %v281
    %v992 = vunpack.c.l.b16 %v282
    %v993 = vunpack.c.h.b16 %v282
    %v994 = vunpack.c.l.b16 %v283
    %v995 = vunpack.c.h.b16 %v283
    %v996 = vunpack.c.l.b16 %v284
    %v997 = vunpack.c.h.b16 %v284
    %v998 = vunpack.c.l.b16 %v285
    %v999 = vunpack.c.h.b16 %v285
    %v1000 = vunpack.c.l.b16 %v286
    %v1001 = vunpack.c.h.b16 %v286
    %v1002 = vunpack.c.l.b16 %v287
    %v1003 = vunpack.c.h.b16 %v287
    %v1004 = vunpack.c.l.b16 %v288
    %v1005 = vunpack.c.h.b16 %v288
    %v1006 = vunpack.c.l.b16 %v289
    %v1007 = vunpack.c.h.b16 %v289
    %v1008 = vunpack.c.l.b16 %v290
    %v1009 = vunpack.c.h.b16 %v290
    %v1010 = vunpack.c.l.b16 %v291
    %v1011 = vunpack.c.h.b16 %v291
    %v1012 = vunpack.c.l.b16 %v292
    %v1013 = vunpack.c.h.b16 %v292
    %v1014 = vunpack.c.l.b16 %v293
    %v1015 = vunpack.c.h.b16 %v293
    %v1016 = vunpack.c.l.b16 %v294
    %v1017 = vunpack.c.h.b16 %v294
    %v1018 = vunpack.c.l.b16 %v295
    %v1019 = vunpack.c.h.b16 %v295
    %v1020 = vunpack.c.l.b16 %v296
    %v1021 = vunpack.c.h.b16 %v296
    %v1022 = vunpack.c.l.b16 %v297
    %v1023 = vunpack.c.h.b16 %v297
    %v1024 = vunpack.c.l.b16 %v298
    %v1025 = vunpack.c.h.b16 %v298
    %v1026 = vunpack.c.l.b16 %v299
    %v1027 = vunpack.c.h.b16 %v299
    %v1028 = vunpack.c.l.b16 %v300
    %v1029 = vunpack.c.h.b16 %v300
    %v1030 = vunpack.c.l.b16 %v301
    %v1031 = vunpack.c.h.b16 %v301
    %v1032 = vunpack.c.l.b16 %v302
    %v1033 = vunpack.c.h.b16 %v302
    %v1034 = vunpack.c.l.b16 %v303
    %v1035 = vunpack.c.h.b16 %v303
    %v1036 = vunpack.c.l.b16 %v304
    %v1037 = vunpack.c.h.b16 %v304
    %v1038 = vunpack.c.l.b16 %v305
    %v1039 = vunpack.c.h.b16 %v305
    %v1040 = vunpack.c.l.b16 %v306
    %v1041 = vunpack.c.h.b16 %v306
    %v1042 = vunpack.c.l.b16 %v307
    %v1043 = vunpack.c.h.b16 %v307
    %v1044 = vunpack.c.l.b16 %v308
    %v1045 = vunpack.c.h.b16 %v308
    %v1046 = vunpack.c.l.b16 %v309
    %v1047 = vunpack.c.h.b16 %v309
    %v1048 = vunpack.c.l.b16 %v310
    %v1049 = vunpack.c.h.b16 %v310
    %v1050 = vunpack.c.l.b16 %v311
    %v1051 = vunpack.c.h.b16 %v311
    %v1052 = vunpack.c.l.b16 %v312
    %v1053 = vunpack.c.h.b16 %v312
    %v1054 = vunpack.c.l.b16 %v313
    %v1055 = vunpack.c.h.b16 %v313
    %v1056 = vunpack.c.l.b16 %v314
    %v1057 = vunpack.c.h.b16 %v314
    %v1058 = vunpack.c.l.b16 %v315
    %v1059 = vunpack.c.h.b16 %v315
    %v1060 = vunpack.c.l.b16 %v316
    %v1061 = vunpack.c.h.b16 %v316
    %v1062 = vunpack.c.l.b16 %v317
    %v1063 = vunpack.c.h.b16 %v317
    %v1064 = vunpack.c.l.b16 %v318
    %v1065 = vunpack.c.h.b16 %v318
    %v1066 = vunpack.c.l.b16 %v319
    %v1067 = vunpack.c.h.b16 %v319
    %v1068 = vunpack.c.l.b16 %v320
    %v1069 = vunpack.c.h.b16 %v320
    %v1070 = vunpack.c.l.b16 %v321
    %v1071 = vunpack.c.h.b16 %v321
    %v1072 = vpack.c.b16 %v684, %v680
    %v1073 = vpack.c.b16 %v685, %v681
    %v1074 = vpack.c.b16 %v686, %v682
    %v1075 = vpack.c.b16 %v687, %v683
    %v1076 = vpack.c.b16 %v692, %v688
    %v1077 = vpack.c.b16 %v693, %v689
    %v1078 = vpack.c.b16 %v694, %v690
    %v1079 = vpack.c.b16 %v695, %v691
    %v1080 = vpack.c.b16 %v700, %v696
    %v1081 = vpack.c.b16 %v701, %v697
    %v1082 = vpack.c.b16 %v702, %v698
    %v1083 = vpack.c.b16 %v703, %v699
    %v1084 = vpack.c.b16 %v708, %v704
    %v1085 = vpack.c.b16 %v709, %v705
    %v1086 = vpack.c.b16 %v710, %v706
    %v1087 = vpack.c.b16 %v711, %v707
    %v1088 = vpack.c.b16 %v716, %v712
    %v1089 = vpack.c.b16 %v717, %v713
    %v1090 = vpack.c.b16 %v718, %v714
    %v1091 = vpack.c.b16 %v719, %v715
    %v1092 = vpack.c.b16 %v724, %v720
    %v1093 = vpack.c.b16 %v725, %v721
    %v1094 = vpack.c.b16 %v726, %v722
    %v1095 = vpack.c.b16 %v727, %v723
    %v1096 = vpack.c.b16 %v732, %v728
    %v1097 = vpack.c.b16 %v733, %v729
    %v1098 = vpack.c.b16 %v734, %v730
    %v1099 = vpack.c.b16 %v735, %v731
    %v1100 = vpack.c.b16 %v740, %v736
    %v1101 = vpack.c.b16 %v741, %v737
    %v1102 = vpack.c.b16 %v742, %v738
    %v1103 = vpack.c.b16 %v743, %v739
    %v1104 = vpack.c.b16 %v748, %v744
    %v1105 = vpack.c.b16 %v749, %v745
    %v1106 = vpack.c.b16 %v750, %v746
    %v1107 = vpack.c.b16 %v751, %v747
    %v1108 = vpack.c.b16 %v756, %v752
    %v1109 = vpack.c.b16 %v757, %v753
    %v1110 = vpack.c.b16 %v758, %v754
    %v1111 = vpack.c.b16 %v759, %v755
    %v1112 = vpack.c.b16 %v764, %v760
    %v1113 = vpack.c.b16 %v765, %v761
    %v1114 = vpack.c.b16 %v766, %v762
    %v1115 = vpack.c.b16 %v767, %v763
    %v1116 = vpack.c.b16 %v772, %v768
    %v1117 = vpack.c.b16 %v773, %v769
    %v1118 = vpack.c.b16 %v774, %v770
    %v1119 = vpack.c.b16 %v775, %v771
    %v1120 = vpack.c.b16 %v780, %v776
    %v1121 = vpack.c.b16 %v781, %v777
    %v1122 = vpack.c.b16 %v782, %v778
    %v1123 = vpack.c.b16 %v783, %v779
    %v1124 = vpack.c.b16 %v788, %v784
    %v1125 = vpack.c.b16 %v789, %v785
    %v1126 = vpack.c.b16 %v790, %v786
    %v1127 = vpack.c.b16 %v791, %v787
    %v1128 = vpack.c.b16 %v796, %v792
    %v1129 = vpack.c.b16 %v797, %v793
    %v1130 = vpack.c.b16 %v798, %v794
    %v1131 = vpack.c.b16 %v799, %v795
    %v1132 = vpack.c.b16 %v804, %v800
    %v1133 = vpack.c.b16 %v805, %v801
    %v1134 = vpack.c.b16 %v806, %v802
    %v1135 = vpack.c.b16 %v807, %v803
    %v1136 = vpack.c.b16 %v812, %v808
    %v1137 = vpack.c.b16 %v813, %v809
    %v1138 = vpack.c.b16 %v814, %v810
    %v1139 = vpack.c.b16 %v815, %v811
    %v1140 = vpack.c.b16 %v820, %v816
    %v1141 = vpack.c.b16 %v821, %v817
    %v1142 = vpack.c.b16 %v822, %v818
    %v1143 = vpack.c.b16 %v823, %v819
    %v1144 = vpack.c.b16 %v828, %v824
    %v1145 = vpack.c.b16 %v829, %v825
    %v1146 = vpack.c.b16 %v830, %v826
    %v1147 = vpack.c.b16 %v831, %v827
    %v1148 = vpack.c.b16 %v836, %v832
    %v1149 = vpack.c.b16 %v837, %v833
    %v1150 = vpack.c.b16 %v838, %v834
    %v1151 = vpack.c.b16 %v839, %v835
    %v1152 = vpack.c.b16 %v844, %v840
    %v1153 = vpack.c.b16 %v845, %v841
    %v1154 = vpack.c.b16 %v846, %v842
    %v1155 = vpack.c.b16 %v847, %v843
    %v1156 = vpack.c.b16 %v852, %v848
    %v1157 = vpack.c.b16 %v853, %v849
    %v1158 = vpack.c.b16 %v854, %v850
    %v1159 = vpack.c.b16 %v855, %v851
    %v1160 = vpack.c.b16 %v860, %v856
    %v1161 = vpack.c.b16 %v861, %v857
    %v1162 = vpack.c.b16 %v862, %v858
    %v1163 = vpack.c.b16 %v863, %v859
    %v1164 = vpack.c.b16 %v868, %v864
    %v1165 = vpack.c.b16 %v869, %v865
    %v1166 = vpack.c.b16 %v870, %v866
    %v1167 = vpack.c.b16 %v871, %v867
    %v1168 = vpack.c.b16 %v876, %v872
    %v1169 = vpack.c.b16 %v877, %v873
    %v1170 = vpack.c.b16 %v878, %v874
    %v1171 = vpack.c.b16 %v879, %v875
    %v1172 = vpack.c.b16 %v884, %v880
    %v1173 = vpack.c.b16 %v885, %v881
    %v1174 = vpack.c.b16 %v886, %v882
    %v1175 = vpack.c.b16 %v887, %v883
    %v1176 = vpack.c.b16 %v892, %v888
    %v1177 = vpack.c.b16 %v893, %v889
    %v1178 = vpack.c.b16 %v894, %v890
    %v1179 = vpack.c.b16 %v895, %v891
    %v1180 = vpack.c.b16 %v900, %v896
    %v1181 = vpack.c.b16 %v901, %v897
    %v1182 = vpack.c.b16 %v902, %v898
    %v1183 = vpack.c.b16 %v903, %v899
    %v1184 = vpack.c.b16 %v908, %v904
    %v1185 = vpack.c.b16 %v909, %v905
    %v1186 = vpack.c.b16 %v910, %v906
    %v1187 = vpack.c.b16 %v911, %v907
    %v1188 = vpack.c.b16 %v916, %v912
    %v1189 = vpack.c.b16 %v917, %v913
    %v1190 = vpack.c.b16 %v918, %v914
    %v1191 = vpack.c.b16 %v919, %v915
    %v1192 = vpack.c.b16 %v924, %v920
    %v1193 = vpack.c.b16 %v925, %v921
    %v1194 = vpack.c.b16 %v926, %v922
    %v1195 = vpack.c.b16 %v927, %v923
    %v1196 = vpack.c.b16 %v932, %v928
    %v1197 = vpack.c.b16 %v933, %v929
    %v1198 = vpack.c.b16 %v934, %v930
    %v1199 = vpack.c.b16 %v935, %v931
    %v1200 = vpack.c.b16 %v940, %v936
    %v1201 = vpack.c.b16 %v941, %v937
    %v1202 = vpack.c.b16 %v942, %v938
    %v1203 = vpack.c.b16 %v943, %v939
    %v1204 = vpack.c.b16 %v948, %v944
    %v1205 = vpack.c.b16 %v949, %v945
    %v1206 = vpack.c.b16 %v950, %v946
    %v1207 = vpack.c.b16 %v951, %v947
    %v1208 = vpack.c.b16 %v956, %v952
    %v1209 = vpack.c.b16 %v957, %v953
    %v1210 = vpack.c.b16 %v958, %v954
    %v1211 = vpack.c.b16 %v959, %v955
    %v1212 = vpack.c.b16 %v964, %v960
    %v1213 = vpack.c.b16 %v965, %v961
    %v1214 = vpack.c.b16 %v966, %v962
    %v1215 = vpack.c.b16 %v967, %v963
    %v1216 = vpack.c.b16 %v972, %v968
    %v1217 = vpack.c.b16 %v973, %v969
    %v1218 = vpack.c.b16 %v974, %v970
    %v1219 = vpack.c.b16 %v975, %v971
    %v1220 = vpack.c.b16 %v980, %v976
    %v1221 = vpack.c.b16 %v981, %v977
    %v1222 = vpack.c.b16 %v982, %v978
    %v1223 = vpack.c.b16 %v983, %v979
    %v1224 = vpack.c.b16 %v988, %v984
    %v1225 = vpack.c.b16 %v989, %v985
    %v1226 = vpack.c.b16 %v990, %v986
    %v1227 = vpack.c.b16 %v991, %v987
    %v1228 = vpack.c.b16 %v996, %v992
    %v1229 = vpack.c.b16 %v997, %v993
    %v1230 = vpack.c.b16 %v998, %v994
    %v1231 = vpack.c.b16 %v999, %v995
    %v1232 = vpack.c.b16 %v1004, %v1000
    %v1233 = vpack.c.b16 %v1005, %v1001
    %v1234 = vpack.c.b16 %v1006, %v1002
    %v1235 = vpack.c.b16 %v1007, %v1003
    %v1236 = vpack.c.b16 %v1012, %v1008
    %v1237 = vpack.c.b16 %v1013, %v1009
    %v1238 = vpack.c.b16 %v1014, %v1010
    %v1239 = vpack.c.b16 %v1015, %v1011
    %v1240 = vpack.c.b16 %v1020, %v1016
    %v1241 = vpack.c.b16 %v1021, %v1017
    %v1242 = vpack.c.b16 %v1022, %v1018
    %v1243 = vpack.c.b16 %v1023, %v1019
    %v1244 = vpack.c.b16 %v1028, %v1024
    %v1245 = vpack.c.b16 %v1029, %v1025
    %v1246 = vpack.c.b16 %v1030, %v1026
    %v1247 = vpack.c.b16 %v1031, %v1027
    %v1248 = vpack.c.b16 %v1036, %v1032
    %v1249 = vpack.c.b16 %v1037, %v1033
    %v1250 = vpack.c.b16 %v1038, %v1034
    %v1251 = vpack.c.b16 %v1039, %v1035
    %v1252 = vpack.c.b16 %v1044, %v1040
    %v1253 = vpack.c.b16 %v1045, %v1041
    %v1254 = vpack.c.b16 %v1046, %v1042
    %v1255 = vpack.c.b16 %v1047, %v1043
    %v1256 = vpack.c.b16 %v1052, %v1048
    %v1257 = vpack.c.b16 %v1053, %v1049
    %v1258 = vpack.c.b16 %v1054, %v1050
    %v1259 = vpack.c.b16 %v1055, %v1051
    %v1260 = vpack.c.b16 %v1060, %v1056
    %v1261 = vpack.c.b16 %v1061, %v1057
    %v1262 = vpack.c.b16 %v1062, %v1058
    %v1263 = vpack.c.b16 %v1063, %v1059
    %v1264 = vpack.c.b16 %v1068, %v1064
    %v1265 = vpack.c.b16 %v1069, %v1065
    %v1266 = vpack.c.b16 %v1070, %v1066
    %v1267 = vpack.c.b16 %v1071, %v1067
    %vm1464 = vcmask 130048
    %v1466 = vsel %vm1464, %v438, 0
    %v1469 = vsel %vm1464, %v445, 0
    %v1472 = vsel %vm1464, %v452, 0
    %v1475 = vsel %vm1464, %v459, 0
    %1477 = vmatprep.subr.bf16.mxu0 %v1101
    %1478 = vmatpush1.bf16.msra.mxu0 %v1100
    %1479 = vmatprep.subr.bf16.mxu0 %v1097
    %1480 = vmatpush1.bf16.msra.mxu0 %v1096
    %1481 = vmatprep.subr.bf16.mxu0 %v1093
    %1482 = vmatpush1.bf16.msra.mxu0 %v1092
    %1483 = vmatprep.subr.bf16.mxu0 %v1089
    %1484 = vmatpush1.bf16.msra.mxu0 %v1088
    %1485 = vmatprep.subr.bf16.mxu0 %v1085
    %1486 = vmatpush1.bf16.msra.mxu0 %v1084
    %1487 = vmatprep.subr.bf16.mxu0 %v1081
    %1488 = vmatpush1.bf16.msra.mxu0 %v1080
    %1489 = vmatprep.subr.bf16.mxu0 %v1077
    %1490 = vmatpush1.bf16.msra.mxu0 %v1076
    %1491 = vmatprep.subr.bf16.mxu0 %v1073
    %1492 = vmatpush1.bf16.msra.mxu0 %v1072
    %1493 = vmatprep.subr.bf16.mxu0 %v1133
    %1494 = vmatpush2.bf16.msra.mxu0 %v1132
    %1495 = vmatprep.subr.bf16.mxu0 %v1129
    %1496 = vmatpush2.bf16.msra.mxu0 %v1128
    %1497 = vmatprep.subr.bf16.mxu0 %v1125
    %1498 = vmatpush2.bf16.msra.mxu0 %v1124
    %1499 = vmatprep.subr.bf16.mxu0 %v1121
    %1500 = vmatpush2.bf16.msra.mxu0 %v1120
    %1501 = vmatprep.subr.bf16.mxu0 %v1117
    %1502 = vmatpush2.bf16.msra.mxu0 %v1116
    %1503 = vmatprep.subr.bf16.mxu0 %v1113
    %1504 = vmatpush2.bf16.msra.mxu0 %v1112
    %1505 = vmatprep.subr.bf16.mxu0 %v1109
    %1506 = vmatpush2.bf16.msra.mxu0 %v1108
    %1507 = vmatprep.subr.bf16.mxu0 %v1105
    %1508 = vmatpush2.bf16.msra.mxu0 %v1104
    %1509 = vmatprep.mubr.bf16.mxu0 %v433
    %1510 = vmatmul.mubr.bf16.gmra.mxu0 %v432
    %v1511 = vpop.f32.mrf.mxu0
    %v1512 = vadd.f32 %v327, %v1511
    %v1513 = vpop.f32.mrf.mxu0
    %v1514 = vadd.f32 %v331, %v1513
    %v1515 = vpop.f32.mrf.mxu0
    %v1516 = vadd.f32 %v327, %v1515
    %v1517 = vpop.f32.mrf.mxu0
    %v1518 = vadd.f32 %v331, %v1517
    %1519 = vmatprep.mubr.bf16.mxu0 %v440
    %1520 = vmatmul.mubr.bf16.gmra.mxu0 %v439
    %v1521 = vpop.f32.mrf.mxu0
    %v1522 = vadd.f32 %v327, %v1521
    %v1523 = vpop.f32.mrf.mxu0
    %v1524 = vadd.f32 %v331, %v1523
    %v1525 = vpop.f32.mrf.mxu0
    %v1526 = vadd.f32 %v327, %v1525
    %v1527 = vpop.f32.mrf.mxu0
    %v1528 = vadd.f32 %v331, %v1527
    %1529 = vmatprep.mubr.bf16.mxu0 %v447
    %1530 = vmatmul.mubr.bf16.gmra.mxu0 %v446
    %v1531 = vpop.f32.mrf.mxu0
    %v1532 = vadd.f32 %v327, %v1531
    %v1533 = vpop.f32.mrf.mxu0
    %v1534 = vadd.f32 %v331, %v1533
    %v1535 = vpop.f32.mrf.mxu0
    %v1536 = vadd.f32 %v327, %v1535
    %v1537 = vpop.f32.mrf.mxu0
    %v1538 = vadd.f32 %v331, %v1537
    %1539 = vmatprep.mubr.bf16.mxu0 %v454
    %1540 = vmatmul.mubr.bf16.gmra.mxu0 %v453
    %v1541 = vpop.f32.mrf.mxu0
    %v1542 = vadd.f32 %v327, %v1541
    %v1543 = vpop.f32.mrf.mxu0
    %v1544 = vadd.f32 %v331, %v1543
    %v1545 = vpop.f32.mrf.mxu0
    %v1546 = vadd.f32 %v327, %v1545
    %v1547 = vpop.f32.mrf.mxu0
    %v1548 = vadd.f32 %v331, %v1547
    %1549 = vdwg.mxu0
    %1550 = vmatprep.subr.bf16.mxu0 %v1165
    %1551 = vmatpush1.bf16.msra.mxu0 %v1164
    %1552 = vmatprep.subr.bf16.mxu0 %v1161
    %1553 = vmatpush1.bf16.msra.mxu0 %v1160
    %1554 = vmatprep.subr.bf16.mxu0 %v1157
    %1555 = vmatpush1.bf16.msra.mxu0 %v1156
    %1556 = vmatprep.subr.bf16.mxu0 %v1153
    %1557 = vmatpush1.bf16.msra.mxu0 %v1152
    %1558 = vmatprep.subr.bf16.mxu0 %v1149
    %1559 = vmatpush1.bf16.msra.mxu0 %v1148
    %1560 = vmatprep.subr.bf16.mxu0 %v1145
    %1561 = vmatpush1.bf16.msra.mxu0 %v1144
    %1562 = vmatprep.subr.bf16.mxu0 %v1141
    %1563 = vmatpush1.bf16.msra.mxu0 %v1140
    %1564 = vmatprep.subr.bf16.mxu0 %v1137
    %1565 = vmatpush1.bf16.msra.mxu0 %v1136
    %1566 = vmatprep.subr.bf16.mxu0 %v1197
    %1567 = vmatpush2.bf16.msra.mxu0 %v1196
    %1568 = vmatprep.subr.bf16.mxu0 %v1193
    %1569 = vmatpush2.bf16.msra.mxu0 %v1192
    %1570 = vmatprep.subr.bf16.mxu0 %v1189
    %1571 = vmatpush2.bf16.msra.mxu0 %v1188
    %1572 = vmatprep.subr.bf16.mxu0 %v1185
    %1573 = vmatpush2.bf16.msra.mxu0 %v1184
    %1574 = vmatprep.subr.bf16.mxu0 %v1181
    %1575 = vmatpush2.bf16.msra.mxu0 %v1180
    %1576 = vmatprep.subr.bf16.mxu0 %v1177
    %1577 = vmatpush2.bf16.msra.mxu0 %v1176
    %1578 = vmatprep.subr.bf16.mxu0 %v1173
    %1579 = vmatpush2.bf16.msra.mxu0 %v1172
    %1580 = vmatprep.subr.bf16.mxu0 %v1169
    %1581 = vmatpush2.bf16.msra.mxu0 %v1168
    %1582 = vmatprep.mubr.bf16.mxu0 %v435
    %1583 = vmatmul.mubr.bf16.gmra.mxu0 %v434
    %v1584 = vpop.f32.mrf.mxu0
    %v1585 = vadd.f32 %v1512, %v1584
    %v1586 = vpop.f32.mrf.mxu0
    %v1587 = vadd.f32 %v1514, %v1586
    %v1588 = vpop.f32.mrf.mxu0
    %v1589 = vadd.f32 %v1516, %v1588
    %v1590 = vpop.f32.mrf.mxu0
    %v1591 = vadd.f32 %v1518, %v1590
    %1592 = vmatprep.mubr.bf16.mxu0 %v442
    %1593 = vmatmul.mubr.bf16.gmra.mxu0 %v441
    %v1594 = vpop.f32.mrf.mxu0
    %v1595 = vadd.f32 %v1522, %v1594
    %v1596 = vpop.f32.mrf.mxu0
    %v1597 = vadd.f32 %v1524, %v1596
    %v1598 = vpop.f32.mrf.mxu0
    %v1599 = vadd.f32 %v1526, %v1598
    %v1600 = vpop.f32.mrf.mxu0
    %v1601 = vadd.f32 %v1528, %v1600
    %1602 = vmatprep.mubr.bf16.mxu0 %v449
    %1603 = vmatmul.mubr.bf16.gmra.mxu0 %v448
    %v1604 = vpop.f32.mrf.mxu0
    %v1605 = vadd.f32 %v1532, %v1604
    %v1606 = vpop.f32.mrf.mxu0
    %v1607 = vadd.f32 %v1534, %v1606
    %v1608 = vpop.f32.mrf.mxu0
    %v1609 = vadd.f32 %v1536, %v1608
    %v1610 = vpop.f32.mrf.mxu0
    %v1611 = vadd.f32 %v1538, %v1610
    %1612 = vmatprep.mubr.bf16.mxu0 %v456
    %1613 = vmatmul.mubr.bf16.gmra.mxu0 %v455
    %v1614 = vpop.f32.mrf.mxu0
    %v1615 = vadd.f32 %v1542, %v1614
    %v1616 = vpop.f32.mrf.mxu0
    %v1617 = vadd.f32 %v1544, %v1616
    %v1618 = vpop.f32.mrf.mxu0
    %v1619 = vadd.f32 %v1546, %v1618
    %v1620 = vpop.f32.mrf.mxu0
    %v1621 = vadd.f32 %v1548, %v1620
    %1622 = vdwg.mxu0
    %1623 = vmatprep.subr.bf16.mxu0 %v1229
    %1624 = vmatpush1.bf16.msra.mxu0 %v1228
    %1625 = vmatprep.subr.bf16.mxu0 %v1225
    %1626 = vmatpush1.bf16.msra.mxu0 %v1224
    %1627 = vmatprep.subr.bf16.mxu0 %v1221
    %1628 = vmatpush1.bf16.msra.mxu0 %v1220
    %1629 = vmatprep.subr.bf16.mxu0 %v1217
    %1630 = vmatpush1.bf16.msra.mxu0 %v1216
    %1631 = vmatprep.subr.bf16.mxu0 %v1213
    %1632 = vmatpush1.bf16.msra.mxu0 %v1212
    %1633 = vmatprep.subr.bf16.mxu0 %v1209
    %1634 = vmatpush1.bf16.msra.mxu0 %v1208
    %1635 = vmatprep.subr.bf16.mxu0 %v1205
    %1636 = vmatpush1.bf16.msra.mxu0 %v1204
    %1637 = vmatprep.subr.bf16.mxu0 %v1201
    %1638 = vmatpush1.bf16.msra.mxu0 %v1200
    %1639 = vmatprep.subr.bf16.mxu0 %v1261
    %1640 = vmatpush2.bf16.msra.mxu0 %v1260
    %1641 = vmatprep.subr.bf16.mxu0 %v1257
    %1642 = vmatpush2.bf16.msra.mxu0 %v1256
    %1643 = vmatprep.subr.bf16.mxu0 %v1253
    %1644 = vmatpush2.bf16.msra.mxu0 %v1252
    %1645 = vmatprep.subr.bf16.mxu0 %v1249
    %1646 = vmatpush2.bf16.msra.mxu0 %v1248
    %1647 = vmatprep.subr.bf16.mxu0 %v1245
    %1648 = vmatpush2.bf16.msra.mxu0 %v1244
    %1649 = vmatprep.subr.bf16.mxu0 %v1241
    %1650 = vmatpush2.bf16.msra.mxu0 %v1240
    %1651 = vmatprep.subr.bf16.mxu0 %v1237
    %1652 = vmatpush2.bf16.msra.mxu0 %v1236
    %1653 = vmatprep.subr.bf16.mxu0 %v1233
    %1654 = vmatpush2.bf16.msra.mxu0 %v1232
    %1655 = vmatprep.mubr.bf16.mxu0 %v437
    %1656 = vmatmul.mubr.bf16.gmra.mxu0 %v436
    %v1657 = vpop.f32.mrf.mxu0
    %v1658 = vadd.f32 %v1585, %v1657
    %v1659 = vpop.f32.mrf.mxu0
    %v1660 = vadd.f32 %v1587, %v1659
    %v1661 = vpop.f32.mrf.mxu0
    %v1662 = vadd.f32 %v1589, %v1661
    %v1663 = vpop.f32.mrf.mxu0
    %v1664 = vadd.f32 %v1591, %v1663
    %1665 = vmatprep.mubr.bf16.mxu0 %v444
    %1666 = vmatmul.mubr.bf16.gmra.mxu0 %v443
    %v1667 = vpop.f32.mrf.mxu0
    %v1668 = vadd.f32 %v1595, %v1667
    %v1669 = vpop.f32.mrf.mxu0
    %v1670 = vadd.f32 %v1597, %v1669
    %v1671 = vpop.f32.mrf.mxu0
    %v1672 = vadd.f32 %v1599, %v1671
    %v1673 = vpop.f32.mrf.mxu0
    %v1674 = vadd.f32 %v1601, %v1673
    %1675 = vmatprep.mubr.bf16.mxu0 %v451
    %1676 = vmatmul.mubr.bf16.gmra.mxu0 %v450
    %v1677 = vpop.f32.mrf.mxu0
    %v1678 = vadd.f32 %v1605, %v1677
    %v1679 = vpop.f32.mrf.mxu0
    %v1680 = vadd.f32 %v1607, %v1679
    %v1681 = vpop.f32.mrf.mxu0
    %v1682 = vadd.f32 %v1609, %v1681
    %v1683 = vpop.f32.mrf.mxu0
    %v1684 = vadd.f32 %v1611, %v1683
    %1685 = vmatprep.mubr.bf16.mxu0 %v458
    %1686 = vmatmul.mubr.bf16.gmra.mxu0 %v457
    %v1687 = vpop.f32.mrf.mxu0
    %v1688 = vadd.f32 %v1615, %v1687
    %v1689 = vpop.f32.mrf.mxu0
    %v1690 = vadd.f32 %v1617, %v1689
    %v1691 = vpop.f32.mrf.mxu0
    %v1692 = vadd.f32 %v1619, %v1691
    %v1693 = vpop.f32.mrf.mxu0
    %v1694 = vadd.f32 %v1621, %v1693
    %1695 = vdwg.mxu0
    %1696 = vmatprep.subr.bf16.mxu0 0
    %1697 = vmatpush1.bf16.msra.mxu0 0
    %1698 = vmatprep.subr.bf16.mxu0 0
    %1699 = vmatpush1.bf16.msra.mxu0 0
    %1700 = vmatprep.subr.bf16.mxu0 0
    %1701 = vmatpush1.bf16.msra.mxu0 0
    %1702 = vmatprep.subr.bf16.mxu0 0
    %1703 = vmatpush1.bf16.msra.mxu0 0
    %1704 = vmatprep.subr.bf16.mxu0 0
    %1705 = vmatpush1.bf16.msra.mxu0 0
    %1706 = vmatprep.subr.bf16.mxu0 0
    %1707 = vmatpush1.bf16.msra.mxu0 0
    %1708 = vmatprep.subr.bf16.mxu0 0
    %1709 = vmatpush1.bf16.msra.mxu0 0
    %1710 = vmatprep.subr.bf16.mxu0 %v1265
    %1711 = vmatpush1.bf16.msra.mxu0 %v1264
    %1712 = vmatprep.subr.bf16.mxu0 0
    %1713 = vmatpush2.bf16.msra.mxu0 0
    %1714 = vmatprep.subr.bf16.mxu0 0
    %1715 = vmatpush2.bf16.msra.mxu0 0
    %1716 = vmatprep.subr.bf16.mxu0 0
    %1717 = vmatpush2.bf16.msra.mxu0 0
    %1718 = vmatprep.subr.bf16.mxu0 0
    %1719 = vmatpush2.bf16.msra.mxu0 0
    %1720 = vmatprep.subr.bf16.mxu0 0
    %1721 = vmatpush2.bf16.msra.mxu0 0
    %1722 = vmatprep.subr.bf16.mxu0 0
    %1723 = vmatpush2.bf16.msra.mxu0 0
    %1724 = vmatprep.subr.bf16.mxu0 0
    %1725 = vmatpush2.bf16.msra.mxu0 0
    %1726 = vmatprep.subr.bf16.mxu0 0
    %1727 = vmatpush2.bf16.msra.mxu0 0
    %1728 = vmatprep.mubr.bf16.mxu0 0
    %1729 = vmatmul.mubr.bf16.gmra.mxu0 %v1466
    %v1730 = vpop.f32.mrf.mxu0
    %v1731 = vadd.f32 %v1658, %v1730
    %v1732 = vpop.f32.mrf.mxu0
    %v1733 = vadd.f32 %v1660, %v1732
    %v1734 = vpop.f32.mrf.mxu0
    %v1735 = vadd.f32 %v1662, %v1734
    %v1736 = vpop.f32.mrf.mxu0
    %v1737 = vadd.f32 %v1664, %v1736
    %1738 = vmatprep.mubr.bf16.mxu0 0
    %1739 = vmatmul.mubr.bf16.gmra.mxu0 %v1469
    %v1740 = vpop.f32.mrf.mxu0
    %v1741 = vadd.f32 %v1668, %v1740
    %v1742 = vpop.f32.mrf.mxu0
    %v1743 = vadd.f32 %v1670, %v1742
    %v1744 = vpop.f32.mrf.mxu0
    %v1745 = vadd.f32 %v1672, %v1744
    %v1746 = vpop.f32.mrf.mxu0
    %v1747 = vadd.f32 %v1674, %v1746
    %1748 = vmatprep.mubr.bf16.mxu0 0
    %1749 = vmatmul.mubr.bf16.gmra.mxu0 %v1472
    %v1750 = vpop.f32.mrf.mxu0
    %v1751 = vadd.f32 %v1678, %v1750
    %v1752 = vpop.f32.mrf.mxu0
    %v1753 = vadd.f32 %v1680, %v1752
    %v1754 = vpop.f32.mrf.mxu0
    %v1755 = vadd.f32 %v1682, %v1754
    %v1756 = vpop.f32.mrf.mxu0
    %v1757 = vadd.f32 %v1684, %v1756
    %1758 = vmatprep.mubr.bf16.mxu0 0
    %1759 = vmatmul.mubr.bf16.gmra.mxu0 %v1475
    %v1760 = vpop.f32.mrf.mxu0
    %v1761 = vadd.f32 %v1688, %v1760
    %v1762 = vpop.f32.mrf.mxu0
    %v1763 = vadd.f32 %v1690, %v1762
    %v1764 = vpop.f32.mrf.mxu0
    %v1765 = vadd.f32 %v1692, %v1764
    %v1766 = vpop.f32.mrf.mxu0
    %v1767 = vadd.f32 %v1694, %v1766
    %1768 = vdwg.mxu0
    %1769 = vmatprep.subr.bf16.mxu0 %v1103
    %1770 = vmatpush1.bf16.msra.mxu0 %v1102
    %1771 = vmatprep.subr.bf16.mxu0 %v1099
    %1772 = vmatpush1.bf16.msra.mxu0 %v1098
    %1773 = vmatprep.subr.bf16.mxu0 %v1095
    %1774 = vmatpush1.bf16.msra.mxu0 %v1094
    %1775 = vmatprep.subr.bf16.mxu0 %v1091
    %1776 = vmatpush1.bf16.msra.mxu0 %v1090
    %1777 = vmatprep.subr.bf16.mxu0 %v1087
    %1778 = vmatpush1.bf16.msra.mxu0 %v1086
    %1779 = vmatprep.subr.bf16.mxu0 %v1083
    %1780 = vmatpush1.bf16.msra.mxu0 %v1082
    %1781 = vmatprep.subr.bf16.mxu0 %v1079
    %1782 = vmatpush1.bf16.msra.mxu0 %v1078
    %1783 = vmatprep.subr.bf16.mxu0 %v1075
    %1784 = vmatpush1.bf16.msra.mxu0 %v1074
    %1785 = vmatprep.subr.bf16.mxu0 %v1135
    %1786 = vmatpush2.bf16.msra.mxu0 %v1134
    %1787 = vmatprep.subr.bf16.mxu0 %v1131
    %1788 = vmatpush2.bf16.msra.mxu0 %v1130
    %1789 = vmatprep.subr.bf16.mxu0 %v1127
    %1790 = vmatpush2.bf16.msra.mxu0 %v1126
    %1791 = vmatprep.subr.bf16.mxu0 %v1123
    %1792 = vmatpush2.bf16.msra.mxu0 %v1122
    %1793 = vmatprep.subr.bf16.mxu0 %v1119
    %1794 = vmatpush2.bf16.msra.mxu0 %v1118
    %1795 = vmatprep.subr.bf16.mxu0 %v1115
    %1796 = vmatpush2.bf16.msra.mxu0 %v1114
    %1797 = vmatprep.subr.bf16.mxu0 %v1111
    %1798 = vmatpush2.bf16.msra.mxu0 %v1110
    %1799 = vmatprep.subr.bf16.mxu0 %v1107
    %1800 = vmatpush2.bf16.msra.mxu0 %v1106
    %1801 = vmatprep.mubr.bf16.mxu0 %v433
    %1802 = vmatmul.mubr.bf16.gmra.mxu0 %v432
    %v1803 = vpop.f32.mrf.mxu0
    %v1804 = vadd.f32 %v335, %v1803
    %v1805 = vpop.f32.mrf.mxu0
    %v1806 = vadd.f32 %v339, %v1805
    %v1807 = vpop.f32.mrf.mxu0
    %v1808 = vadd.f32 %v335, %v1807
    %v1809 = vpop.f32.mrf.mxu0
    %v1810 = vadd.f32 %v339, %v1809
    %1811 = vmatprep.mubr.bf16.mxu0 %v440
    %1812 = vmatmul.mubr.bf16.gmra.mxu0 %v439
    %v1813 = vpop.f32.mrf.mxu0
    %v1814 = vadd.f32 %v335, %v1813
    %v1815 = vpop.f32.mrf.mxu0
    %v1816 = vadd.f32 %v339, %v1815
    %v1817 = vpop.f32.mrf.mxu0
    %v1818 = vadd.f32 %v335, %v1817
    %v1819 = vpop.f32.mrf.mxu0
    %v1820 = vadd.f32 %v339, %v1819
    %1821 = vmatprep.mubr.bf16.mxu0 %v447
    %1822 = vmatmul.mubr.bf16.gmra.mxu0 %v446
    %v1823 = vpop.f32.mrf.mxu0
    %v1824 = vadd.f32 %v335, %v1823
    %v1825 = vpop.f32.mrf.mxu0
    %v1826 = vadd.f32 %v339, %v1825
    %v1827 = vpop.f32.mrf.mxu0
    %v1828 = vadd.f32 %v335, %v1827
    %v1829 = vpop.f32.mrf.mxu0
    %v1830 = vadd.f32 %v339, %v1829
    %1831 = vmatprep.mubr.bf16.mxu0 %v454
    %1832 = vmatmul.mubr.bf16.gmra.mxu0 %v453
    %v1833 = vpop.f32.mrf.mxu0
    %v1834 = vadd.f32 %v335, %v1833
    %v1835 = vpop.f32.mrf.mxu0
    %v1836 = vadd.f32 %v339, %v1835
    %v1837 = vpop.f32.mrf.mxu0
    %v1838 = vadd.f32 %v335, %v1837
    %v1839 = vpop.f32.mrf.mxu0
    %v1840 = vadd.f32 %v339, %v1839
    %1841 = vdwg.mxu0
    %1842 = vmatprep.subr.bf16.mxu0 %v1167
    %1843 = vmatpush1.bf16.msra.mxu0 %v1166
    %1844 = vmatprep.subr.bf16.mxu0 %v1163
    %1845 = vmatpush1.bf16.msra.mxu0 %v1162
    %1846 = vmatprep.subr.bf16.mxu0 %v1159
    %1847 = vmatpush1.bf16.msra.mxu0 %v1158
    %1848 = vmatprep.subr.bf16.mxu0 %v1155
    %1849 = vmatpush1.bf16.msra.mxu0 %v1154
    %1850 = vmatprep.subr.bf16.mxu0 %v1151
    %1851 = vmatpush1.bf16.msra.mxu0 %v1150
    %1852 = vmatprep.subr.bf16.mxu0 %v1147
    %1853 = vmatpush1.bf16.msra.mxu0 %v1146
    %1854 = vmatprep.subr.bf16.mxu0 %v1143
    %1855 = vmatpush1.bf16.msra.mxu0 %v1142
    %1856 = vmatprep.subr.bf16.mxu0 %v1139
    %1857 = vmatpush1.bf16.msra.mxu0 %v1138
    %1858 = vmatprep.subr.bf16.mxu0 %v1199
    %1859 = vmatpush2.bf16.msra.mxu0 %v1198
    %1860 = vmatprep.subr.bf16.mxu0 %v1195
    %1861 = vmatpush2.bf16.msra.mxu0 %v1194
    %1862 = vmatprep.subr.bf16.mxu0 %v1191
    %1863 = vmatpush2.bf16.msra.mxu0 %v1190
    %1864 = vmatprep.subr.bf16.mxu0 %v1187
    %1865 = vmatpush2.bf16.msra.mxu0 %v1186
    %1866 = vmatprep.subr.bf16.mxu0 %v1183
    %1867 = vmatpush2.bf16.msra.mxu0 %v1182
    %1868 = vmatprep.subr.bf16.mxu0 %v1179
    %1869 = vmatpush2.bf16.msra.mxu0 %v1178
    %1870 = vmatprep.subr.bf16.mxu0 %v1175
    %1871 = vmatpush2.bf16.msra.mxu0 %v1174
    %1872 = vmatprep.subr.bf16.mxu0 %v1171
    %1873 = vmatpush2.bf16.msra.mxu0 %v1170
    %1874 = vmatprep.mubr.bf16.mxu0 %v435
    %1875 = vmatmul.mubr.bf16.gmra.mxu0 %v434
    %v1876 = vpop.f32.mrf.mxu0
    %v1877 = vadd.f32 %v1804, %v1876
    %v1878 = vpop.f32.mrf.mxu0
    %v1879 = vadd.f32 %v1806, %v1878
    %v1880 = vpop.f32.mrf.mxu0
    %v1881 = vadd.f32 %v1808, %v1880
    %v1882 = vpop.f32.mrf.mxu0
    %v1883 = vadd.f32 %v1810, %v1882
    %1884 = vmatprep.mubr.bf16.mxu0 %v442
    %1885 = vmatmul.mubr.bf16.gmra.mxu0 %v441
    %v1886 = vpop.f32.mrf.mxu0
    %v1887 = vadd.f32 %v1814, %v1886
    %v1888 = vpop.f32.mrf.mxu0
    %v1889 = vadd.f32 %v1816, %v1888
    %v1890 = vpop.f32.mrf.mxu0
    %v1891 = vadd.f32 %v1818, %v1890
    %v1892 = vpop.f32.mrf.mxu0
    %v1893 = vadd.f32 %v1820, %v1892
    %1894 = vmatprep.mubr.bf16.mxu0 %v449
    %1895 = vmatmul.mubr.bf16.gmra.mxu0 %v448
    %v1896 = vpop.f32.mrf.mxu0
    %v1897 = vadd.f32 %v1824, %v1896
    %v1898 = vpop.f32.mrf.mxu0
    %v1899 = vadd.f32 %v1826, %v1898
    %v1900 = vpop.f32.mrf.mxu0
    %v1901 = vadd.f32 %v1828, %v1900
    %v1902 = vpop.f32.mrf.mxu0
    %v1903 = vadd.f32 %v1830, %v1902
    %1904 = vmatprep.mubr.bf16.mxu0 %v456
    %1905 = vmatmul.mubr.bf16.gmra.mxu0 %v455
    %v1906 = vpop.f32.mrf.mxu0
    %v1907 = vadd.f32 %v1834, %v1906
    %v1908 = vpop.f32.mrf.mxu0
    %v1909 = vadd.f32 %v1836, %v1908
    %v1910 = vpop.f32.mrf.mxu0
    %v1911 = vadd.f32 %v1838, %v1910
    %v1912 = vpop.f32.mrf.mxu0
    %v1913 = vadd.f32 %v1840, %v1912
    %1914 = vdwg.mxu0
    %1915 = vmatprep.subr.bf16.mxu0 %v1231
    %1916 = vmatpush1.bf16.msra.mxu0 %v1230
    %1917 = vmatprep.subr.bf16.mxu0 %v1227
    %1918 = vmatpush1.bf16.msra.mxu0 %v1226
    %1919 = vmatprep.subr.bf16.mxu0 %v1223
    %1920 = vmatpush1.bf16.msra.mxu0 %v1222
    %1921 = vmatprep.subr.bf16.mxu0 %v1219
    %1922 = vmatpush1.bf16.msra.mxu0 %v1218
    %1923 = vmatprep.subr.bf16.mxu0 %v1215
    %1924 = vmatpush1.bf16.msra.mxu0 %v1214
    %1925 = vmatprep.subr.bf16.mxu0 %v1211
    %1926 = vmatpush1.bf16.msra.mxu0 %v1210
    %1927 = vmatprep.subr.bf16.mxu0 %v1207
    %1928 = vmatpush1.bf16.msra.mxu0 %v1206
    %1929 = vmatprep.subr.bf16.mxu0 %v1203
    %1930 = vmatpush1.bf16.msra.mxu0 %v1202
    %1931 = vmatprep.subr.bf16.mxu0 %v1263
    %1932 = vmatpush2.bf16.msra.mxu0 %v1262
    %1933 = vmatprep.subr.bf16.mxu0 %v1259
    %1934 = vmatpush2.bf16.msra.mxu0 %v1258
    %1935 = vmatprep.subr.bf16.mxu0 %v1255
    %1936 = vmatpush2.bf16.msra.mxu0 %v1254
    %1937 = vmatprep.subr.bf16.mxu0 %v1251
    %1938 = vmatpush2.bf16.msra.mxu0 %v1250
    %1939 = vmatprep.subr.bf16.mxu0 %v1247
    %1940 = vmatpush2.bf16.msra.mxu0 %v1246
    %1941 = vmatprep.subr.bf16.mxu0 %v1243
    %1942 = vmatpush2.bf16.msra.mxu0 %v1242
    %1943 = vmatprep.subr.bf16.mxu0 %v1239
    %1944 = vmatpush2.bf16.msra.mxu0 %v1238
    %1945 = vmatprep.subr.bf16.mxu0 %v1235
    %1946 = vmatpush2.bf16.msra.mxu0 %v1234
    %1947 = vmatprep.mubr.bf16.mxu0 %v437
    %1948 = vmatmul.mubr.bf16.gmra.mxu0 %v436
    %v1949 = vpop.f32.mrf.mxu0
    %v1950 = vadd.f32 %v1877, %v1949
    %v1951 = vpop.f32.mrf.mxu0
    %v1952 = vadd.f32 %v1879, %v1951
    %v1953 = vpop.f32.mrf.mxu0
    %v1954 = vadd.f32 %v1881, %v1953
    %v1955 = vpop.f32.mrf.mxu0
    %v1956 = vadd.f32 %v1883, %v1955
    %1957 = vmatprep.mubr.bf16.mxu0 %v444
    %1958 = vmatmul.mubr.bf16.gmra.mxu0 %v443
    %v1959 = vpop.f32.mrf.mxu0
    %v1960 = vadd.f32 %v1887, %v1959
    %v1961 = vpop.f32.mrf.mxu0
    %v1962 = vadd.f32 %v1889, %v1961
    %v1963 = vpop.f32.mrf.mxu0
    %v1964 = vadd.f32 %v1891, %v1963
    %v1965 = vpop.f32.mrf.mxu0
    %v1966 = vadd.f32 %v1893, %v1965
    %1967 = vmatprep.mubr.bf16.mxu0 %v451
    %1968 = vmatmul.mubr.bf16.gmra.mxu0 %v450
    %v1969 = vpop.f32.mrf.mxu0
    %v1970 = vadd.f32 %v1897, %v1969
    %v1971 = vpop.f32.mrf.mxu0
    %v1972 = vadd.f32 %v1899, %v1971
    %v1973 = vpop.f32.mrf.mxu0
    %v1974 = vadd.f32 %v1901, %v1973
    %v1975 = vpop.f32.mrf.mxu0
    %v1976 = vadd.f32 %v1903, %v1975
    %1977 = vmatprep.mubr.bf16.mxu0 %v458
    %1978 = vmatmul.mubr.bf16.gmra.mxu0 %v457
    %v1979 = vpop.f32.mrf.mxu0
    %v1980 = vadd.f32 %v1907, %v1979
    %v1981 = vpop.f32.mrf.mxu0
    %v1982 = vadd.f32 %v1909, %v1981
    %v1983 = vpop.f32.mrf.mxu0
    %v1984 = vadd.f32 %v1911, %v1983
    %v1985 = vpop.f32.mrf.mxu0
    %v1986 = vadd.f32 %v1913, %v1985
    %1987 = vdwg.mxu0
    %1988 = vmatprep.subr.bf16.mxu0 0
    %1989 = vmatpush1.bf16.msra.mxu0 0
    %1990 = vmatprep.subr.bf16.mxu0 0
    %1991 = vmatpush1.bf16.msra.mxu0 0
    %1992 = vmatprep.subr.bf16.mxu0 0
    %1993 = vmatpush1.bf16.msra.mxu0 0
    %1994 = vmatprep.subr.bf16.mxu0 0
    %1995 = vmatpush1.bf16.msra.mxu0 0
    %1996 = vmatprep.subr.bf16.mxu0 0
    %1997 = vmatpush1.bf16.msra.mxu0 0
    %1998 = vmatprep.subr.bf16.mxu0 0
    %1999 = vmatpush1.bf16.msra.mxu0 0
    %2000 = vmatprep.subr.bf16.mxu0 0
    %2001 = vmatpush1.bf16.msra.mxu0 0
    %2002 = vmatprep.subr.bf16.mxu0 %v1267
    %2003 = vmatpush1.bf16.msra.mxu0 %v1266
    %2004 = vmatprep.subr.bf16.mxu0 0
    %2005 = vmatpush2.bf16.msra.mxu0 0
    %2006 = vmatprep.subr.bf16.mxu0 0
    %2007 = vmatpush2.bf16.msra.mxu0 0
    %2008 = vmatprep.subr.bf16.mxu0 0
    %2009 = vmatpush2.bf16.msra.mxu0 0
    %2010 = vmatprep.subr.bf16.mxu0 0
    %2011 = vmatpush2.bf16.msra.mxu0 0
    %2012 = vmatprep.subr.bf16.mxu0 0
    %2013 = vmatpush2.bf16.msra.mxu0 0
    %2014 = vmatprep.subr.bf16.mxu0 0
    %2015 = vmatpush2.bf16.msra.mxu0 0
    %2016 = vmatprep.subr.bf16.mxu0 0
    %2017 = vmatpush2.bf16.msra.mxu0 0
    %2018 = vmatprep.subr.bf16.mxu0 0
    %2019 = vmatpush2.bf16.msra.mxu0 0
    %2020 = vmatprep.mubr.bf16.mxu0 0
    %2021 = vmatmul.mubr.bf16.gmra.mxu0 %v1466
    %v2022 = vpop.f32.mrf.mxu0
    %v2023 = vadd.f32 %v1950, %v2022
    %v2024 = vpop.f32.mrf.mxu0
    %v2025 = vadd.f32 %v1952, %v2024
    %v2026 = vpop.f32.mrf.mxu0
    %v2027 = vadd.f32 %v1954, %v2026
    %v2028 = vpop.f32.mrf.mxu0
    %v2029 = vadd.f32 %v1956, %v2028
    %2030 = vmatprep.mubr.bf16.mxu0 0
    %2031 = vmatmul.mubr.bf16.gmra.mxu0 %v1469
    %v2032 = vpop.f32.mrf.mxu0
    %v2033 = vadd.f32 %v1960, %v2032
    %v2034 = vpop.f32.mrf.mxu0
    %v2035 = vadd.f32 %v1962, %v2034
    %v2036 = vpop.f32.mrf.mxu0
    %v2037 = vadd.f32 %v1964, %v2036
    %v2038 = vpop.f32.mrf.mxu0
    %v2039 = vadd.f32 %v1966, %v2038
    %2040 = vmatprep.mubr.bf16.mxu0 0
    %2041 = vmatmul.mubr.bf16.gmra.mxu0 %v1472
    %v2042 = vpop.f32.mrf.mxu0
    %v2043 = vadd.f32 %v1970, %v2042
    %v2044 = vpop.f32.mrf.mxu0
    %v2045 = vadd.f32 %v1972, %v2044
    %v2046 = vpop.f32.mrf.mxu0
    %v2047 = vadd.f32 %v1974, %v2046
    %v2048 = vpop.f32.mrf.mxu0
    %v2049 = vadd.f32 %v1976, %v2048
    %2050 = vmatprep.mubr.bf16.mxu0 0
    %2051 = vmatmul.mubr.bf16.gmra.mxu0 %v1475
    %v2052 = vpop.f32.mrf.mxu0
    %v2053 = vadd.f32 %v1980, %v2052
    %v2054 = vpop.f32.mrf.mxu0
    %v2055 = vadd.f32 %v1982, %v2054
    %v2056 = vpop.f32.mrf.mxu0
    %v2057 = vadd.f32 %v1984, %v2056
    %v2058 = vpop.f32.mrf.mxu0
    %v2059 = vadd.f32 %v1986, %v2058
    %2060 = vdwg.mxu0
    %v2061 = vmax.f32 %v1731, 0.0
    %v2062 = vmax.f32 %v1733, 0.0
    %v2063 = vmax.f32 %v2023, 0.0
    %v2064 = vmax.f32 %v2025, 0.0
    %v2065 = vmax.f32 %v1735, 0.0
    %v2066 = vmax.f32 %v1737, 0.0
    %v2067 = vmax.f32 %v2027, 0.0
    %v2068 = vmax.f32 %v2029, 0.0
    %v2069 = vmax.f32 %v1741, 0.0
    %v2070 = vmax.f32 %v1743, 0.0
    %v2071 = vmax.f32 %v2033, 0.0
    %v2072 = vmax.f32 %v2035, 0.0
    %v2073 = vmax.f32 %v1745, 0.0
    %v2074 = vmax.f32 %v1747, 0.0
    %v2075 = vmax.f32 %v2037, 0.0
    %v2076 = vmax.f32 %v2039, 0.0
    %v2077 = vmax.f32 %v1751, 0.0
    %v2078 = vmax.f32 %v1753, 0.0
    %v2079 = vmax.f32 %v2043, 0.0
    %v2080 = vmax.f32 %v2045, 0.0
    %v2081 = vmax.f32 %v1755, 0.0
    %v2082 = vmax.f32 %v1757, 0.0
    %v2083 = vmax.f32 %v2047, 0.0
    %v2084 = vmax.f32 %v2049, 0.0
    %v2085 = vmax.f32 %v1761, 0.0
    %v2086 = vmax.f32 %v1763, 0.0
    %v2087 = vmax.f32 %v2053, 0.0
    %v2088 = vmax.f32 %v2055, 0.0
    %v2089 = vmax.f32 %v1765, 0.0
    %v2090 = vmax.f32 %v1767, 0.0
    %v2091 = vmax.f32 %v2057, 0.0
    %v2092 = vmax.f32 %v2059, 0.0
    %v2093 = vpack.c.bf16 %v2065, %v2061
    %v2094 = vpack.c.bf16 %v2066, %v2062
    %v2095 = vpack.c.bf16 %v2067, %v2063
    %v2096 = vpack.c.bf16 %v2068, %v2064
    %v2097 = vpack.c.bf16 %v2073, %v2069
    %v2098 = vpack.c.bf16 %v2074, %v2070
    %v2099 = vpack.c.bf16 %v2075, %v2071
    %v2100 = vpack.c.bf16 %v2076, %v2072
    %v2101 = vpack.c.bf16 %v2081, %v2077
    %v2102 = vpack.c.bf16 %v2082, %v2078
    %v2103 = vpack.c.bf16 %v2083, %v2079
    %v2104 = vpack.c.bf16 %v2084, %v2080
    %v2105 = vpack.c.bf16 %v2089, %v2085
    %v2106 = vpack.c.bf16 %v2090, %v2086
    %v2107 = vpack.c.bf16 %v2091, %v2087
    %v2108 = vpack.c.bf16 %v2092, %v2088
    %v2109 = vld [vmem:[#allocation8] sm:$0xff]
    %v2110 = vld [vmem:[#allocation8 + $0x8] sm:$0xff]
    %v2111 = vld [vmem:[#allocation8 + $0x10] sm:$0xff]
    %v2112 = vld [vmem:[#allocation8 + $0x18] sm:$0xff]
    %v2113 = vld [vmem:[#allocation8 + $0x20] sm:$0xff]
    %v2114 = vld [vmem:[#allocation8 + $0x28] sm:$0xff]
    %v2115 = vld [vmem:[#allocation8 + $0x30] sm:$0xff]
    %v2116 = vld [vmem:[#allocation8 + $0x38] sm:$0xff]
    %v2117 = vld [vmem:[#allocation8 + $0x40] sm:$0xff]
    %v2118 = vld [vmem:[#allocation8 + $0x48] sm:$0xff]
    %v2119 = vld [vmem:[#allocation8 + $0x50] sm:$0xff]
    %v2120 = vld [vmem:[#allocation8 + $0x58] sm:$0xff]
    %v2121 = vld [vmem:[#allocation8 + $0x60] sm:$0xff]
    %v2122 = vld [vmem:[#allocation8 + $0x68] sm:$0xff]
    %v2123 = vld [vmem:[#allocation8 + $0x70] sm:$0xff]
    %v2124 = vld [vmem:[#allocation8 + $0x78] sm:$0xff]
    %v2125 = vld [vmem:[#allocation8 + $0x80] sm:$0xff]
    %v2126 = vld [vmem:[#allocation8 + $0x88] sm:$0xff]
    %v2127 = vld [vmem:[#allocation8 + $0x90] sm:$0xff]
    %v2128 = vld [vmem:[#allocation8 + $0x98] sm:$0xff]
    %v2129 = vld [vmem:[#allocation8 + $0xa0] sm:$0xff]
    %v2130 = vld [vmem:[#allocation8 + $0xa8] sm:$0xff]
    %v2131 = vld [vmem:[#allocation8 + $0xb0] sm:$0xff]
    %v2132 = vld [vmem:[#allocation8 + $0xb8] sm:$0xff]
    %v2133 = vld [vmem:[#allocation8 + $0xc0] sm:$0xff]
    %v2134 = vld [vmem:[#allocation8 + $0xc8] sm:$0xff]
    %v2135 = vld [vmem:[#allocation8 + $0xd0] sm:$0xff]
    %v2136 = vld [vmem:[#allocation8 + $0xd8] sm:$0xff]
    %v2137 = vld [vmem:[#allocation8 + $0xe0] sm:$0xff]
    %v2138 = vld [vmem:[#allocation8 + $0xe8] sm:$0xff]
    %v2139 = vld [vmem:[#allocation8 + $0xf0] sm:$0xff]
    %v2140 = vld [vmem:[#allocation8 + $0xf8] sm:$0xff]
    %v2141 = vld [vmem:[#allocation8 + $0x100] sm:$0xff]
    %v2142 = vld [vmem:[#allocation8 + $0x108] sm:$0xff]
    %v2143 = vld [vmem:[#allocation8 + $0x110] sm:$0xff]
    %v2144 = vld [vmem:[#allocation8 + $0x118] sm:$0xff]
    %v2145 = vld [vmem:[#allocation8 + $0x120] sm:$0xff]
    %v2146 = vld [vmem:[#allocation8 + $0x128] sm:$0xff]
    %v2147 = vld [vmem:[#allocation8 + $0x130] sm:$0xff]
    %v2148 = vld [vmem:[#allocation8 + $0x138] sm:$0xff]
    %v2149 = vld [vmem:[#allocation8 + $0x140] sm:$0xff]
    %v2150 = vld [vmem:[#allocation8 + $0x148] sm:$0xff]
    %v2151 = vld [vmem:[#allocation8 + $0x150] sm:$0xff]
    %v2152 = vld [vmem:[#allocation8 + $0x158] sm:$0xff]
    %v2153 = vld [vmem:[#allocation8 + $0x160] sm:$0xff]
    %v2154 = vld [vmem:[#allocation8 + $0x168] sm:$0xff]
    %v2155 = vld [vmem:[#allocation8 + $0x170] sm:$0xff]
    %v2156 = vld [vmem:[#allocation8 + $0x178] sm:$0xff]
    %v2157 = vld [vmem:[#allocation8 + $0x180] sm:$0xff]
    %v2158 = vld [vmem:[#allocation8 + $0x188] sm:$0xff]
    %v2159 = vld [vmem:[#allocation8 + $0x190] sm:$0xff]
    %v2160 = vld [vmem:[#allocation8 + $0x198] sm:$0xff]
    %v2161 = vld [vmem:[#allocation8 + $0x1a0] sm:$0xff]
    %v2162 = vld [vmem:[#allocation8 + $0x1a8] sm:$0xff]
    %v2163 = vld [vmem:[#allocation8 + $0x1b0] sm:$0xff]
    %v2164 = vld [vmem:[#allocation8 + $0x1b8] sm:$0xff]
    %v2165 = vld [vmem:[#allocation8 + $0x1c0] sm:$0xff]
    %v2166 = vld [vmem:[#allocation8 + $0x1c8] sm:$0xff]
    %v2167 = vld [vmem:[#allocation8 + $0x1d0] sm:$0xff]
    %v2168 = vld [vmem:[#allocation8 + $0x1d8] sm:$0xff]
    %v2169 = vld [vmem:[#allocation8 + $0x1e0] sm:$0xff]
    %v2170 = vld [vmem:[#allocation8 + $0x1e8] sm:$0xff]
    %v2171 = vld [vmem:[#allocation8 + $0x1f0] sm:$0xff]
    %v2172 = vld [vmem:[#allocation8 + $0x1f8] sm:$0xff]
    %v2173 = vld [vmem:[%s4] sm:$0x3]
    %v2175 = vlaneseq
    %v2176 = vshrl.u32 %v2175, 7
    %v2177 = vsub.s32 0, %v2176
    %v2178 = vrot.slane %v2173, %v2177
    %v2179 = vlaneseq
    %v2180 = vshrl.u32 %v2179, 7
    %v2181 = vsub.s32 1, %v2180
    %v2182 = vrot.slane %v2173, %v2181
    %v2249 = vunpack.c.l.b16 %v2109
    %v2250 = vunpack.c.h.b16 %v2109
    %v2251 = vunpack.c.l.b16 %v2110
    %v2252 = vunpack.c.h.b16 %v2110
    %v2253 = vunpack.c.l.b16 %v2111
    %v2254 = vunpack.c.h.b16 %v2111
    %v2255 = vunpack.c.l.b16 %v2112
    %v2256 = vunpack.c.h.b16 %v2112
    %v2257 = vunpack.c.l.b16 %v2113
    %v2258 = vunpack.c.h.b16 %v2113
    %v2259 = vunpack.c.l.b16 %v2114
    %v2260 = vunpack.c.h.b16 %v2114
    %v2261 = vunpack.c.l.b16 %v2115
    %v2262 = vunpack.c.h.b16 %v2115
    %v2263 = vunpack.c.l.b16 %v2116
    %v2264 = vunpack.c.h.b16 %v2116
    %v2265 = vunpack.c.l.b16 %v2117
    %v2266 = vunpack.c.h.b16 %v2117
    %v2267 = vunpack.c.l.b16 %v2118
    %v2268 = vunpack.c.h.b16 %v2118
    %v2269 = vunpack.c.l.b16 %v2119
    %v2270 = vunpack.c.h.b16 %v2119
    %v2271 = vunpack.c.l.b16 %v2120
    %v2272 = vunpack.c.h.b16 %v2120
    %v2273 = vunpack.c.l.b16 %v2121
    %v2274 = vunpack.c.h.b16 %v2121
    %v2275 = vunpack.c.l.b16 %v2122
    %v2276 = vunpack.c.h.b16 %v2122
    %v2277 = vunpack.c.l.b16 %v2123
    %v2278 = vunpack.c.h.b16 %v2123
    %v2279 = vunpack.c.l.b16 %v2124
    %v2280 = vunpack.c.h.b16 %v2124
    %v2281 = vunpack.c.l.b16 %v2125
    %v2282 = vunpack.c.h.b16 %v2125
    %v2283 = vunpack.c.l.b16 %v2126
    %v2284 = vunpack.c.h.b16 %v2126
    %v2285 = vunpack.c.l.b16 %v2127
    %v2286 = vunpack.c.h.b16 %v2127
    %v2287 = vunpack.c.l.b16 %v2128
    %v2288 = vunpack.c.h.b16 %v2128
    %v2289 = vunpack.c.l.b16 %v2129
    %v2290 = vunpack.c.h.b16 %v2129
    %v2291 = vunpack.c.l.b16 %v2130
    %v2292 = vunpack.c.h.b16 %v2130
    %v2293 = vunpack.c.l.b16 %v2131
    %v2294 = vunpack.c.h.b16 %v2131
    %v2295 = vunpack.c.l.b16 %v2132
    %v2296 = vunpack.c.h.b16 %v2132
    %v2297 = vunpack.c.l.b16 %v2133
    %v2298 = vunpack.c.h.b16 %v2133
    %v2299 = vunpack.c.l.b16 %v2134
    %v2300 = vunpack.c.h.b16 %v2134
    %v2301 = vunpack.c.l.b16 %v2135
    %v2302 = vunpack.c.h.b16 %v2135
    %v2303 = vunpack.c.l.b16 %v2136
    %v2304 = vunpack.c.h.b16 %v2136
    %v2305 = vunpack.c.l.b16 %v2137
    %v2306 = vunpack.c.h.b16 %v2137
    %v2307 = vunpack.c.l.b16 %v2138
    %v2308 = vunpack.c.h.b16 %v2138
    %v2309 = vunpack.c.l.b16 %v2139
    %v2310 = vunpack.c.h.b16 %v2139
    %v2311 = vunpack.c.l.b16 %v2140
    %v2312 = vunpack.c.h.b16 %v2140
    %v2313 = vunpack.c.l.b16 %v2141
    %v2314 = vunpack.c.h.b16 %v2141
    %v2315 = vunpack.c.l.b16 %v2142
    %v2316 = vunpack.c.h.b16 %v2142
    %v2317 = vunpack.c.l.b16 %v2143
    %v2318 = vunpack.c.h.b16 %v2143
    %v2319 = vunpack.c.l.b16 %v2144
    %v2320 = vunpack.c.h.b16 %v2144
    %v2321 = vunpack.c.l.b16 %v2145
    %v2322 = vunpack.c.h.b16 %v2145
    %v2323 = vunpack.c.l.b16 %v2146
    %v2324 = vunpack.c.h.b16 %v2146
    %v2325 = vunpack.c.l.b16 %v2147
    %v2326 = vunpack.c.h.b16 %v2147
    %v2327 = vunpack.c.l.b16 %v2148
    %v2328 = vunpack.c.h.b16 %v2148
    %v2329 = vunpack.c.l.b16 %v2149
    %v2330 = vunpack.c.h.b16 %v2149
    %v2331 = vunpack.c.l.b16 %v2150
    %v2332 = vunpack.c.h.b16 %v2150
    %v2333 = vunpack.c.l.b16 %v2151
    %v2334 = vunpack.c.h.b16 %v2151
    %v2335 = vunpack.c.l.b16 %v2152
    %v2336 = vunpack.c.h.b16 %v2152
    %v2337 = vunpack.c.l.b16 %v2153
    %v2338 = vunpack.c.h.b16 %v2153
    %v2339 = vunpack.c.l.b16 %v2154
    %v2340 = vunpack.c.h.b16 %v2154
    %v2341 = vunpack.c.l.b16 %v2155
    %v2342 = vunpack.c.h.b16 %v2155
    %v2343 = vunpack.c.l.b16 %v2156
    %v2344 = vunpack.c.h.b16 %v2156
    %v2345 = vunpack.c.l.b16 %v2157
    %v2346 = vunpack.c.h.b16 %v2157
    %v2347 = vunpack.c.l.b16 %v2158
    %v2348 = vunpack.c.h.b16 %v2158
    %v2349 = vunpack.c.l.b16 %v2159
    %v2350 = vunpack.c.h.b16 %v2159
    %v2351 = vunpack.c.l.b16 %v2160
    %v2352 = vunpack.c.h.b16 %v2160
    %v2353 = vunpack.c.l.b16 %v2161
    %v2354 = vunpack.c.h.b16 %v2161
    %v2355 = vunpack.c.l.b16 %v2162
    %v2356 = vunpack.c.h.b16 %v2162
    %v2357 = vunpack.c.l.b16 %v2163
    %v2358 = vunpack.c.h.b16 %v2163
    %v2359 = vunpack.c.l.b16 %v2164
    %v2360 = vunpack.c.h.b16 %v2164
    %v2361 = vunpack.c.l.b16 %v2165
    %v2362 = vunpack.c.h.b16 %v2165
    %v2363 = vunpack.c.l.b16 %v2166
    %v2364 = vunpack.c.h.b16 %v2166
    %v2365 = vunpack.c.l.b16 %v2167
    %v2366 = vunpack.c.h.b16 %v2167
    %v2367 = vunpack.c.l.b16 %v2168
    %v2368 = vunpack.c.h.b16 %v2168
    %v2369 = vunpack.c.l.b16 %v2169
    %v2370 = vunpack.c.h.b16 %v2169
    %v2371 = vunpack.c.l.b16 %v2170
    %v2372 = vunpack.c.h.b16 %v2170
    %v2373 = vunpack.c.l.b16 %v2171
    %v2374 = vunpack.c.h.b16 %v2171
    %v2375 = vunpack.c.l.b16 %v2172
    %v2376 = vunpack.c.h.b16 %v2172
    %v2377 = vpack.c.b16 %v2251, %v2249
    %v2378 = vpack.c.b16 %v2252, %v2250
    %v2379 = vpack.c.b16 %v2255, %v2253
    %v2380 = vpack.c.b16 %v2256, %v2254
    %v2381 = vpack.c.b16 %v2259, %v2257
    %v2382 = vpack.c.b16 %v2260, %v2258
    %v2383 = vpack.c.b16 %v2263, %v2261
    %v2384 = vpack.c.b16 %v2264, %v2262
    %v2385 = vpack.c.b16 %v2267, %v2265
    %v2386 = vpack.c.b16 %v2268, %v2266
    %v2387 = vpack.c.b16 %v2271, %v2269
    %v2388 = vpack.c.b16 %v2272, %v2270
    %v2389 = vpack.c.b16 %v2275, %v2273
    %v2390 = vpack.c.b16 %v2276, %v2274
    %v2391 = vpack.c.b16 %v2279, %v2277
    %v2392 = vpack.c.b16 %v2280, %v2278
    %v2393 = vpack.c.b16 %v2283, %v2281
    %v2394 = vpack.c.b16 %v2284, %v2282
    %v2395 = vpack.c.b16 %v2287, %v2285
    %v2396 = vpack.c.b16 %v2288, %v2286
    %v2397 = vpack.c.b16 %v2291, %v2289
    %v2398 = vpack.c.b16 %v2292, %v2290
    %v2399 = vpack.c.b16 %v2295, %v2293
    %v2400 = vpack.c.b16 %v2296, %v2294
    %v2401 = vpack.c.b16 %v2299, %v2297
    %v2402 = vpack.c.b16 %v2300, %v2298
    %v2403 = vpack.c.b16 %v2303, %v2301
    %v2404 = vpack.c.b16 %v2304, %v2302
    %v2405 = vpack.c.b16 %v2307, %v2305
    %v2406 = vpack.c.b16 %v2308, %v2306
    %v2407 = vpack.c.b16 %v2311, %v2309
    %v2408 = vpack.c.b16 %v2312, %v2310
    %v2409 = vpack.c.b16 %v2315, %v2313
    %v2410 = vpack.c.b16 %v2316, %v2314
    %v2411 = vpack.c.b16 %v2319, %v2317
    %v2412 = vpack.c.b16 %v2320, %v2318
    %v2413 = vpack.c.b16 %v2323, %v2321
    %v2414 = vpack.c.b16 %v2324, %v2322
    %v2415 = vpack.c.b16 %v2327, %v2325
    %v2416 = vpack.c.b16 %v2328, %v2326
    %v2417 = vpack.c.b16 %v2331, %v2329
    %v2418 = vpack.c.b16 %v2332, %v2330
    %v2419 = vpack.c.b16 %v2335, %v2333
    %v2420 = vpack.c.b16 %v2336, %v2334
    %v2421 = vpack.c.b16 %v2339, %v2337
    %v2422 = vpack.c.b16 %v2340, %v2338
    %v2423 = vpack.c.b16 %v2343, %v2341
    %v2424 = vpack.c.b16 %v2344, %v2342
    %v2425 = vpack.c.b16 %v2347, %v2345
    %v2426 = vpack.c.b16 %v2348, %v2346
    %v2427 = vpack.c.b16 %v2351, %v2349
    %v2428 = vpack.c.b16 %v2352, %v2350
    %v2429 = vpack.c.b16 %v2355, %v2353
    %v2430 = vpack.c.b16 %v2356, %v2354
    %v2431 = vpack.c.b16 %v2359, %v2357
    %v2432 = vpack.c.b16 %v2360, %v2358
    %v2433 = vpack.c.b16 %v2363, %v2361
    %v2434 = vpack.c.b16 %v2364, %v2362
    %v2435 = vpack.c.b16 %v2367, %v2365
    %v2436 = vpack.c.b16 %v2368, %v2366
    %v2437 = vpack.c.b16 %v2371, %v2369
    %v2438 = vpack.c.b16 %v2372, %v2370
    %v2439 = vpack.c.b16 %v2375, %v2373
    %v2440 = vpack.c.b16 %v2376, %v2374
    %2505 = vmatprep.subr.bf16.mxu0 %v2392
    %2506 = vmatpush1.bf16.msra.mxu0 %v2391
    %2507 = vmatprep.subr.bf16.mxu0 %v2390
    %2508 = vmatpush1.bf16.msra.mxu0 %v2389
    %2509 = vmatprep.subr.bf16.mxu0 %v2388
    %2510 = vmatpush1.bf16.msra.mxu0 %v2387
    %2511 = vmatprep.subr.bf16.mxu0 %v2386
    %2512 = vmatpush1.bf16.msra.mxu0 %v2385
    %2513 = vmatprep.subr.bf16.mxu0 %v2384
    %2514 = vmatpush1.bf16.msra.mxu0 %v2383
    %2515 = vmatprep.subr.bf16.mxu0 %v2382
    %2516 = vmatpush1.bf16.msra.mxu0 %v2381
    %2517 = vmatprep.subr.bf16.mxu0 %v2380
    %2518 = vmatpush1.bf16.msra.mxu0 %v2379
    %2519 = vmatprep.subr.bf16.mxu0 %v2378
    %2520 = vmatpush1.bf16.msra.mxu0 %v2377
    %2521 = vmatprep.subr.bf16.mxu0 %v2408
    %2522 = vmatpush2.bf16.msra.mxu0 %v2407
    %2523 = vmatprep.subr.bf16.mxu0 %v2406
    %2524 = vmatpush2.bf16.msra.mxu0 %v2405
    %2525 = vmatprep.subr.bf16.mxu0 %v2404
    %2526 = vmatpush2.bf16.msra.mxu0 %v2403
    %2527 = vmatprep.subr.bf16.mxu0 %v2402
    %2528 = vmatpush2.bf16.msra.mxu0 %v2401
    %2529 = vmatprep.subr.bf16.mxu0 %v2400
    %2530 = vmatpush2.bf16.msra.mxu0 %v2399
    %2531 = vmatprep.subr.bf16.mxu0 %v2398
    %2532 = vmatpush2.bf16.msra.mxu0 %v2397
    %2533 = vmatprep.subr.bf16.mxu0 %v2396
    %2534 = vmatpush2.bf16.msra.mxu0 %v2395
    %2535 = vmatprep.subr.bf16.mxu0 %v2394
    %2536 = vmatpush2.bf16.msra.mxu0 %v2393
    %2537 = vmatprep.mubr.bf16.mxu0 %v2094
    %2538 = vmatmul.mubr.bf16.gmra.mxu0 %v2093
    %v2539 = vpop.f32.mrf.mxu0
    %v2540 = vadd.f32 %v2178, %v2539
    %v2541 = vpop.f32.mrf.mxu0
    %v2542 = vadd.f32 %v2182, %v2541
    %v2543 = vpop.f32.mrf.mxu0
    %v2544 = vadd.f32 %v2178, %v2543
    %v2545 = vpop.f32.mrf.mxu0
    %v2546 = vadd.f32 %v2182, %v2545
    %2547 = vmatprep.mubr.bf16.mxu0 %v2098
    %2548 = vmatmul.mubr.bf16.gmra.mxu0 %v2097
    %v2549 = vpop.f32.mrf.mxu0
    %v2550 = vadd.f32 %v2178, %v2549
    %v2551 = vpop.f32.mrf.mxu0
    %v2552 = vadd.f32 %v2182, %v2551
    %v2553 = vpop.f32.mrf.mxu0
    %v2554 = vadd.f32 %v2178, %v2553
    %v2555 = vpop.f32.mrf.mxu0
    %v2556 = vadd.f32 %v2182, %v2555
    %2557 = vmatprep.mubr.bf16.mxu0 %v2102
    %2558 = vmatmul.mubr.bf16.gmra.mxu0 %v2101
    %v2559 = vpop.f32.mrf.mxu0
    %v2560 = vadd.f32 %v2178, %v2559
    %v2561 = vpop.f32.mrf.mxu0
    %v2562 = vadd.f32 %v2182, %v2561
    %v2563 = vpop.f32.mrf.mxu0
    %v2564 = vadd.f32 %v2178, %v2563
    %v2565 = vpop.f32.mrf.mxu0
    %v2566 = vadd.f32 %v2182, %v2565
    %2567 = vmatprep.mubr.bf16.mxu0 %v2106
    %2568 = vmatmul.mubr.bf16.gmra.mxu0 %v2105
    %v2569 = vpop.f32.mrf.mxu0
    %v2570 = vadd.f32 %v2178, %v2569
    %v2571 = vpop.f32.mrf.mxu0
    %v2572 = vadd.f32 %v2182, %v2571
    %v2573 = vpop.f32.mrf.mxu0
    %v2574 = vadd.f32 %v2178, %v2573
    %v2575 = vpop.f32.mrf.mxu0
    %v2576 = vadd.f32 %v2182, %v2575
    %2577 = vdwg.mxu0
    %2578 = vmatprep.subr.bf16.mxu0 %v2424
    %2579 = vmatpush1.bf16.msra.mxu0 %v2423
    %2580 = vmatprep.subr.bf16.mxu0 %v2422
    %2581 = vmatpush1.bf16.msra.mxu0 %v2421
    %2582 = vmatprep.subr.bf16.mxu0 %v2420
    %2583 = vmatpush1.bf16.msra.mxu0 %v2419
    %2584 = vmatprep.subr.bf16.mxu0 %v2418
    %2585 = vmatpush1.bf16.msra.mxu0 %v2417
    %2586 = vmatprep.subr.bf16.mxu0 %v2416
    %2587 = vmatpush1.bf16.msra.mxu0 %v2415
    %2588 = vmatprep.subr.bf16.mxu0 %v2414
    %2589 = vmatpush1.bf16.msra.mxu0 %v2413
    %2590 = vmatprep.subr.bf16.mxu0 %v2412
    %2591 = vmatpush1.bf16.msra.mxu0 %v2411
    %2592 = vmatprep.subr.bf16.mxu0 %v2410
    %2593 = vmatpush1.bf16.msra.mxu0 %v2409
    %2594 = vmatprep.subr.bf16.mxu0 %v2440
    %2595 = vmatpush2.bf16.msra.mxu0 %v2439
    %2596 = vmatprep.subr.bf16.mxu0 %v2438
    %2597 = vmatpush2.bf16.msra.mxu0 %v2437
    %2598 = vmatprep.subr.bf16.mxu0 %v2436
    %2599 = vmatpush2.bf16.msra.mxu0 %v2435
    %2600 = vmatprep.subr.bf16.mxu0 %v2434
    %2601 = vmatpush2.bf16.msra.mxu0 %v2433
    %2602 = vmatprep.subr.bf16.mxu0 %v2432
    %2603 = vmatpush2.bf16.msra.mxu0 %v2431
    %2604 = vmatprep.subr.bf16.mxu0 %v2430
    %2605 = vmatpush2.bf16.msra.mxu0 %v2429
    %2606 = vmatprep.subr.bf16.mxu0 %v2428
    %2607 = vmatpush2.bf16.msra.mxu0 %v2427
    %2608 = vmatprep.subr.bf16.mxu0 %v2426
    %2609 = vmatpush2.bf16.msra.mxu0 %v2425
    %2610 = vmatprep.mubr.bf16.mxu0 %v2096
    %2611 = vmatmul.mubr.bf16.gmra.mxu0 %v2095
    %v2612 = vpop.f32.mrf.mxu0
    %v2613 = vadd.f32 %v2540, %v2612
    %v2614 = vpop.f32.mrf.mxu0
    %v2615 = vadd.f32 %v2542, %v2614
    %v2616 = vpop.f32.mrf.mxu0
    %v2617 = vadd.f32 %v2544, %v2616
    %v2618 = vpop.f32.mrf.mxu0
    %v2619 = vadd.f32 %v2546, %v2618
    %2620 = vmatprep.mubr.bf16.mxu0 %v2100
    %2621 = vmatmul.mubr.bf16.gmra.mxu0 %v2099
    %v2622 = vpop.f32.mrf.mxu0
    %v2623 = vadd.f32 %v2550, %v2622
    %v2624 = vpop.f32.mrf.mxu0
    %v2625 = vadd.f32 %v2552, %v2624
    %v2626 = vpop.f32.mrf.mxu0
    %v2627 = vadd.f32 %v2554, %v2626
    %v2628 = vpop.f32.mrf.mxu0
    %v2629 = vadd.f32 %v2556, %v2628
    %2630 = vmatprep.mubr.bf16.mxu0 %v2104
    %2631 = vmatmul.mubr.bf16.gmra.mxu0 %v2103
    %v2632 = vpop.f32.mrf.mxu0
    %v2633 = vadd.f32 %v2560, %v2632
    %v2634 = vpop.f32.mrf.mxu0
    %v2635 = vadd.f32 %v2562, %v2634
    %v2636 = vpop.f32.mrf.mxu0
    %v2637 = vadd.f32 %v2564, %v2636
    %v2638 = vpop.f32.mrf.mxu0
    %v2639 = vadd.f32 %v2566, %v2638
    %2640 = vmatprep.mubr.bf16.mxu0 %v2108
    %2641 = vmatmul.mubr.bf16.gmra.mxu0 %v2107
    %v2642 = vpop.f32.mrf.mxu0
    %v2643 = vadd.f32 %v2570, %v2642
    %v2644 = vpop.f32.mrf.mxu0
    %v2645 = vadd.f32 %v2572, %v2644
    %v2646 = vpop.f32.mrf.mxu0
    %v2647 = vadd.f32 %v2574, %v2646
    %v2648 = vpop.f32.mrf.mxu0
    %v2649 = vadd.f32 %v2576, %v2648
    %2650 = vdwg.mxu0
    %v2651 = vmax.f32 %v2613, 0.0
    %v2652 = vmax.f32 %v2615, 0.0
    %v2653 = vmax.f32 %v2617, 0.0
    %v2654 = vmax.f32 %v2619, 0.0
    %v2655 = vmax.f32 %v2623, 0.0
    %v2656 = vmax.f32 %v2625, 0.0
    %v2657 = vmax.f32 %v2627, 0.0
    %v2658 = vmax.f32 %v2629, 0.0
    %v2659 = vmax.f32 %v2633, 0.0
    %v2660 = vmax.f32 %v2635, 0.0
    %v2661 = vmax.f32 %v2637, 0.0
    %v2662 = vmax.f32 %v2639, 0.0
    %v2663 = vmax.f32 %v2643, 0.0
    %v2664 = vmax.f32 %v2645, 0.0
    %v2665 = vmax.f32 %v2647, 0.0
    %v2666 = vmax.f32 %v2649, 0.0
    %v2667 = vpack.c.bf16 %v2653, %v2651
    %v2668 = vpack.c.bf16 %v2654, %v2652
    %v2669 = vpack.c.bf16 %v2657, %v2655
    %v2670 = vpack.c.bf16 %v2658, %v2656
    %v2671 = vpack.c.bf16 %v2661, %v2659
    %v2672 = vpack.c.bf16 %v2662, %v2660
    %v2673 = vpack.c.bf16 %v2665, %v2663
    %v2674 = vpack.c.bf16 %v2666, %v2664
    %v2675 = vld [vmem:[#allocation10] sm:$0xf]
    %v2676 = vld [vmem:[#allocation10 + $0x4] sm:$0xf]
    %v2677 = vld [vmem:[#allocation10 + $0x8] sm:$0xf]
    %v2678 = vld [vmem:[#allocation10 + $0xc] sm:$0xf]
    %v2679 = vld [vmem:[#allocation10 + $0x10] sm:$0xf]
    %v2680 = vld [vmem:[#allocation10 + $0x14] sm:$0xf]
    %v2681 = vld [vmem:[#allocation10 + $0x18] sm:$0xf]
    %v2682 = vld [vmem:[#allocation10 + $0x1c] sm:$0xf]
    %v2683 = vld [vmem:[#allocation10 + $0x20] sm:$0xf]
    %v2684 = vld [vmem:[#allocation10 + $0x24] sm:$0xf]
    %v2685 = vld [vmem:[#allocation10 + $0x28] sm:$0xf]
    %v2686 = vld [vmem:[#allocation10 + $0x2c] sm:$0xf]
    %v2687 = vld [vmem:[#allocation10 + $0x30] sm:$0xf]
    %v2688 = vld [vmem:[#allocation10 + $0x34] sm:$0xf]
    %v2689 = vld [vmem:[#allocation10 + $0x38] sm:$0xf]
    %v2690 = vld [vmem:[#allocation10 + $0x3c] sm:$0xf]
    %v2691 = vld [vmem:[#allocation10 + $0x40] sm:$0xf]
    %v2692 = vld [vmem:[#allocation10 + $0x44] sm:$0xf]
    %v2693 = vld [vmem:[#allocation10 + $0x48] sm:$0xf]
    %v2694 = vld [vmem:[#allocation10 + $0x4c] sm:$0xf]
    %v2695 = vld [vmem:[#allocation10 + $0x50] sm:$0xf]
    %v2696 = vld [vmem:[#allocation10 + $0x54] sm:$0xf]
    %v2697 = vld [vmem:[#allocation10 + $0x58] sm:$0xf]
    %v2698 = vld [vmem:[#allocation10 + $0x5c] sm:$0xf]
    %v2699 = vld [vmem:[#allocation10 + $0x60] sm:$0xf]
    %v2700 = vld [vmem:[#allocation10 + $0x64] sm:$0xf]
    %v2701 = vld [vmem:[#allocation10 + $0x68] sm:$0xf]
    %v2702 = vld [vmem:[#allocation10 + $0x6c] sm:$0xf]
    %v2703 = vld [vmem:[#allocation10 + $0x70] sm:$0xf]
    %v2704 = vld [vmem:[#allocation10 + $0x74] sm:$0xf]
    %v2705 = vld [vmem:[#allocation10 + $0x78] sm:$0xf]
    %v2706 = vld [vmem:[#allocation10 + $0x7c] sm:$0xf]
    %v2707 = vld [vmem:[%s6] sm:$0x1]
    %v2709 = vlaneseq
    %v2710 = vshrl.u32 %v2709, 7
    %v2711 = vsub.s32 0, %v2710
    %v2712 = vrot.slane %v2707, %v2711
    %v2746 = vunpack.c.l.b16 %v2675
    %v2747 = vunpack.c.l.b16 %v2676
    %v2748 = vunpack.c.l.b16 %v2677
    %v2749 = vunpack.c.l.b16 %v2678
    %v2750 = vunpack.c.l.b16 %v2679
    %v2751 = vunpack.c.l.b16 %v2680
    %v2752 = vunpack.c.l.b16 %v2681
    %v2753 = vunpack.c.l.b16 %v2682
    %v2754 = vunpack.c.l.b16 %v2683
    %v2755 = vunpack.c.l.b16 %v2684
    %v2756 = vunpack.c.l.b16 %v2685
    %v2757 = vunpack.c.l.b16 %v2686
    %v2758 = vunpack.c.l.b16 %v2687
    %v2759 = vunpack.c.l.b16 %v2688
    %v2760 = vunpack.c.l.b16 %v2689
    %v2761 = vunpack.c.l.b16 %v2690
    %v2762 = vunpack.c.l.b16 %v2691
    %v2763 = vunpack.c.l.b16 %v2692
    %v2764 = vunpack.c.l.b16 %v2693
    %v2765 = vunpack.c.l.b16 %v2694
    %v2766 = vunpack.c.l.b16 %v2695
    %v2767 = vunpack.c.l.b16 %v2696
    %v2768 = vunpack.c.l.b16 %v2697
    %v2769 = vunpack.c.l.b16 %v2698
    %v2770 = vunpack.c.l.b16 %v2699
    %v2771 = vunpack.c.l.b16 %v2700
    %v2772 = vunpack.c.l.b16 %v2701
    %v2773 = vunpack.c.l.b16 %v2702
    %v2774 = vunpack.c.l.b16 %v2703
    %v2775 = vunpack.c.l.b16 %v2704
    %v2776 = vunpack.c.l.b16 %v2705
    %v2777 = vunpack.c.l.b16 %v2706
    %v2778 = vpack.c.b16 %v2747, %v2746
    %v2779 = vpack.c.b16 %v2749, %v2748
    %v2780 = vpack.c.b16 %v2751, %v2750
    %v2781 = vpack.c.b16 %v2753, %v2752
    %v2782 = vpack.c.b16 %v2755, %v2754
    %v2783 = vpack.c.b16 %v2757, %v2756
    %v2784 = vpack.c.b16 %v2759, %v2758
    %v2785 = vpack.c.b16 %v2761, %v2760
    %v2786 = vpack.c.b16 %v2763, %v2762
    %v2787 = vpack.c.b16 %v2765, %v2764
    %v2788 = vpack.c.b16 %v2767, %v2766
    %v2789 = vpack.c.b16 %v2769, %v2768
    %v2790 = vpack.c.b16 %v2771, %v2770
    %v2791 = vpack.c.b16 %v2773, %v2772
    %v2792 = vpack.c.b16 %v2775, %v2774
    %v2793 = vpack.c.b16 %v2777, %v2776
    %2810 = vmatprep.subr.bf16.mxu0 0
    %2811 = vmatpush1.bf16.msra.mxu0 %v2785
    %2812 = vmatprep.subr.bf16.mxu0 0
    %2813 = vmatpush1.bf16.msra.mxu0 %v2784
    %2814 = vmatprep.subr.bf16.mxu0 0
    %2815 = vmatpush1.bf16.msra.mxu0 %v2783
    %2816 = vmatprep.subr.bf16.mxu0 0
    %2817 = vmatpush1.bf16.msra.mxu0 %v2782
    %2818 = vmatprep.subr.bf16.mxu0 0
    %2819 = vmatpush1.bf16.msra.mxu0 %v2781
    %2820 = vmatprep.subr.bf16.mxu0 0
    %2821 = vmatpush1.bf16.msra.mxu0 %v2780
    %2822 = vmatprep.subr.bf16.mxu0 0
    %2823 = vmatpush1.bf16.msra.mxu0 %v2779
    %2824 = vmatprep.subr.bf16.mxu0 0
    %2825 = vmatpush1.bf16.msra.mxu0 %v2778
    %2826 = vmatprep.subr.bf16.mxu0 0
    %2827 = vmatpush2.bf16.msra.mxu0 %v2793
    %2828 = vmatprep.subr.bf16.mxu0 0
    %2829 = vmatpush2.bf16.msra.mxu0 %v2792
    %2830 = vmatprep.subr.bf16.mxu0 0
    %2831 = vmatpush2.bf16.msra.mxu0 %v2791
    %2832 = vmatprep.subr.bf16.mxu0 0
    %2833 = vmatpush2.bf16.msra.mxu0 %v2790
    %2834 = vmatprep.subr.bf16.mxu0 0
    %2835 = vmatpush2.bf16.msra.mxu0 %v2789
    %2836 = vmatprep.subr.bf16.mxu0 0
    %2837 = vmatpush2.bf16.msra.mxu0 %v2788
    %2838 = vmatprep.subr.bf16.mxu0 0
    %2839 = vmatpush2.bf16.msra.mxu0 %v2787
    %2840 = vmatprep.subr.bf16.mxu0 0
    %2841 = vmatpush2.bf16.msra.mxu0 %v2786
    %2842 = vmatprep.mubr.bf16.mxu0 %v2668
    %2843 = vmatmul.mubr.bf16.gmra.mxu0 %v2667
    %v2844 = vpop.f32.mrf.mxu0
    %v2845 = vadd.f32 %v2712, %v2844
    %v2846 = vpop.f32.mrf.mxu0
    %v2847 = vpop.f32.mrf.mxu0
    %v2848 = vadd.f32 %v2712, %v2847
    %v2849 = vpop.f32.mrf.mxu0
    %2850 = vmatprep.mubr.bf16.mxu0 %v2670
    %2851 = vmatmul.mubr.bf16.gmra.mxu0 %v2669
    %v2852 = vpop.f32.mrf.mxu0
    %v2853 = vadd.f32 %v2712, %v2852
    %v2854 = vpop.f32.mrf.mxu0
    %v2855 = vpop.f32.mrf.mxu0
    %v2856 = vadd.f32 %v2712, %v2855
    %v2857 = vpop.f32.mrf.mxu0
    %2858 = vmatprep.mubr.bf16.mxu0 %v2672
    %2859 = vmatmul.mubr.bf16.gmra.mxu0 %v2671
    %v2860 = vpop.f32.mrf.mxu0
    %v2861 = vadd.f32 %v2712, %v2860
    %v2862 = vpop.f32.mrf.mxu0
    %v2863 = vpop.f32.mrf.mxu0
    %v2864 = vadd.f32 %v2712, %v2863
    %v2865 = vpop.f32.mrf.mxu0
    %2866 = vmatprep.mubr.bf16.mxu0 %v2674
    %2867 = vmatmul.mubr.bf16.gmra.mxu0 %v2673
    %v2868 = vpop.f32.mrf.mxu0
    %v2869 = vadd.f32 %v2712, %v2868
    %v2870 = vpop.f32.mrf.mxu0
    %v2871 = vpop.f32.mrf.mxu0
    %v2872 = vadd.f32 %v2712, %v2871
    %v2873 = vpop.f32.mrf.mxu0
    %2874 = vdwg.mxu0
    %v2875 = vpack.c.bf16 %v2848, %v2845
    %v2876 = vpack.c.bf16 %v2856, %v2853
    %v2877 = vpack.c.bf16 %v2864, %v2861
    %v2878 = vpack.c.bf16 %v2872, %v2869
    %v2883 = vunpack.c.l.b16 %v2875
    %v2884 = vunpack.c.h.b16 %v2875
    %v2885 = vunpack.c.l.b16 %v2876
    %v2886 = vunpack.c.h.b16 %v2876
    %v2887 = vunpack.c.l.b16 %v2877
    %v2888 = vunpack.c.h.b16 %v2877
    %v2889 = vunpack.c.l.b16 %v2878
    %v2890 = vunpack.c.h.b16 %v2878
    %v2891 = vpack.c.b16 %v2883, %v2883
    %v2892 = vpack.c.b16 %v2884, %v2884
    %v2893 = vpack.c.b16 %v2885, %v2885
    %v2894 = vpack.c.b16 %v2886, %v2886
    %v2895 = vpack.c.b16 %v2887, %v2887
    %v2896 = vpack.c.b16 %v2888, %v2888
    %v2897 = vpack.c.b16 %v2889, %v2889
    %v2898 = vpack.c.b16 %v2890, %v2890
    %2907 = vst [vmem:[#allocation11] sm:$0xf] %v2891
    %2908 = vst [vmem:[#allocation11 + $0x4] sm:$0xf] %v2892
    %2909 = vst [vmem:[#allocation11 + $0x8] sm:$0xf] %v2893
    %2910 = vst [vmem:[#allocation11 + $0xc] sm:$0xf] %v2894
    %2911 = vst [vmem:[#allocation11 + $0x10] sm:$0xf] %v2895
    %2912 = vst [vmem:[#allocation11 + $0x14] sm:$0xf] %v2896
    %2913 = vst [vmem:[#allocation11 + $0x18] sm:$0xf] %v2897
    %2914 = vst [vmem:[#allocation11 + $0x1c] sm:$0xf] %v2898
    // Predicated region
    $region50: #{tpu_custom_call.1} parent=1 // pred_check
      _
    $region51: #{tpu_custom_call.1} parent=1 // pred_check_branch
      %2916 = sbr.rel (0) target = $region53
    $region52: #{tpu_custom_call.1} parent=1 // pred_region
      %s2918 = ssub.s32 512, 512
      %2919 = vsyncadd [#allocation4], %s2918
      %s2920 = sshll.u32 [#allocation11], 4
      %s2921 = int_to_ptr.vmem [resolvable:$true] %s2920
      %2926 = dma.vmem_to_hbm [thread:$0]  %s2921, 512, %s7, [#allocation4], 64, 64, 4
    $region53: #{tpu_custom_call.1} parent=1 // pred_fallthru
      _
    // Predicated region
    $region54: #{tpu_custom_call.1} parent=1 // pred_check
      _
    $region55: #{tpu_custom_call.1} parent=1 // pred_check_branch
      %2928 = sbr.rel (0) target = $region57
    $region56: #{tpu_custom_call.1} parent=1 // pred_region
      %2929 = dma.done [#allocation4], 512
    $region57: #{tpu_custom_call.1} parent=1 // pred_fallthru
      _
    %2930 = vsyncpa [#allocation3], 1
    %2931 = vsyncpa [#allocation6], 1
    %2932 = vsyncpa [#allocation9], 1
    %2933 = vsyncpa [#allocation4], 1

</llo_original>
